<compile_context>
chip_gen: v5e
topology: v5e:2x2
jax: 0.10.0
libtpu: 0.0.40
codegen_flags: <defaults>
</compile_context>

<pallas_src>
import functools

import jax
import jax.numpy as jnp
from jax.experimental import pallas as pl
from jax.experimental.pallas import tpu as pltpu


# ----------------------------------------------------------------------------- tuning helpers


def _vmem_budget_bytes():
    """Generation-aware scoped-VMEM budget: ~75% of physical (48 MiB v7x, 96 MiB v5e/v6e)."""
    cap = None
    try:
        info = pltpu.get_tpu_info()
        cap = getattr(info, "vmem_capacity_bytes", None)
    except Exception:
        cap = None
    if not cap:
        cap = 64 * 1024 * 1024  # unknown -> assume the smallest generation (v7x) and stay safe
    return int(cap) * 3 // 4


def _block_divisor(n, target):
    b = max(min(n, target), 1)
    while n % b:
        b -= 1
    return b


def _tile_rows(m, target):
    """Largest row tile <= target that divides m and is a multiple of 8 (or m itself)."""
    if m <= target:
        return m
    t = (target // 8) * 8
    while t >= 8:
        if m % t == 0:
            return t
        t -= 8
    return m


def _pick_row_tile(m, k, n, budget):
    # double-buffered bf16 in/out tiles + f32 temporaries per row; weight block resident (x2).
    per_row = 2 * 2 * (k + n) + 4 * (k + n)
    weight = 2 * 2 * k * n
    row_budget = max(budget - weight, budget // 8)
    cap = min(max((row_budget // per_row) // 8 * 8, 8), 4096)
    return _tile_rows(m, cap)


def _pick_window_block(nw, t, d, budget):
    # per window-token: ~f32 intermediates (x, qkv, hidden, residuals) + double-buffered bf16 io.
    weight = 2 * 2 * 12 * d * d                 # double-buffered bf16 qkv/proj/fc1/fc2
    token_budget = max(budget - weight, budget // 8)
    per_window = t * d * 48
    cap = max(int(token_budget // per_window), 1)
    if nw >= 2:
        cap = min(cap, nw // 2)                 # keep grid length >= 2 (v7x: 2 TensorCores)
    return _block_divisor(nw, max(cap, 1))


# ----------------------------------------------------------------------------- kernels


def _layer_norm_f32(x, gamma, beta, eps=1e-5):
    mu = jnp.mean(x, axis=-1, keepdims=True)
    var = jnp.mean(jnp.square(x - mu), axis=-1, keepdims=True)
    return (x - mu) * jax.lax.rsqrt(var + eps) * gamma + beta


def _conv3x3_kernel(xpad_ref, w_ref, b_ref, out_ref):
    # xpad_ref: (1, 1, H+2, W+2) f32   w_ref: (1, 9, D) bf16   b_ref: (1, 1, D) f32
    # out_ref : (1, 1, H, W, D) bf16   -- one (contrast, image) per grid step.
    H, W, D = out_ref.shape[2], out_ref.shape[3], out_ref.shape[4]
    xp = xpad_ref[0, 0].astype(jnp.float32)          # (H+2, W+2)
    w = w_ref[0].astype(jnp.float32)                 # (9, D), loaded/hoisted once per step
    acc = jnp.zeros((H, W, D), jnp.float32)
    for ky in range(3):
        for kx in range(3):
            tap = xp[ky:ky + H, kx:kx + W]           # (H, W)
            acc = acc + tap[:, :, None] * w[3 * ky + kx][None, None, :]
    out_ref[0, 0] = (acc + b_ref[0].astype(jnp.float32)).astype(out_ref.dtype)


def _linear_kernel(x_ref, w_ref, b_ref, o_ref):
    # bf16 x bf16 MXU matmul, f32 accumulation.
    y = jnp.dot(x_ref[...], w_ref[...], preferred_element_type=jnp.float32)
    y = y + b_ref[...].astype(jnp.float32)
    o_ref[...] = y.astype(o_ref.dtype)


def _ln_linear_kernel(x_ref, g_ref, b_ref, w_ref, bias_ref, o_ref):
    # Fused LayerNorm (f32 stats) -> Linear (bf16 MXU operands, f32 accumulation).
    x = x_ref[...].astype(jnp.float32)
    xn = _layer_norm_f32(x, g_ref[...].astype(jnp.float32), b_ref[...].astype(jnp.float32))
    y = jnp.dot(xn.astype(w_ref.dtype), w_ref[...], preferred_element_type=jnp.float32)
    y = y + bias_ref[...].astype(jnp.float32)
    o_ref[...] = y.astype(o_ref.dtype)


def _fused_block_kernel(x_ref, g1_ref, b1_ref, qkvw_ref, qkvb_ref, pw_ref, pb_ref,
                        g2_ref, b2_ref, f1w_ref, f1b_ref, f2w_ref, f2b_ref, o_ref,
                        *, num_heads):
    # One whole pre-norm transformer block on a (wb, T, D) tile of windows; every
    # intermediate (qkv, attention, MLP hidden) stays in VMEM.
    wb, T, D = x_ref.shape
    Dh = D // num_heads
    scale = 1.0 / float(Dh) ** 0.5
    M = wb * T

    x = x_ref[...].astype(jnp.float32).reshape(M, D)

    # LN1 -> qkv
    xn1 = _layer_norm_f32(x, g1_ref[...].astype(jnp.float32), b1_ref[...].astype(jnp.float32))
    qkv = jnp.dot(xn1.astype(qkvw_ref.dtype), qkvw_ref[...],
                  preferred_element_type=jnp.float32)
    qkv = (qkv + qkvb_ref[...].astype(jnp.float32)).reshape(wb, T, 3 * D)

    # Window attention; the output projection is folded into the per-head loop:
    # each head's (M, Dh) output is multiplied by the matching (Dh, D) row-slice of proj_w
    # and accumulated into the residual -> no masked sub-128-lane stores, no HBM round trip.
    pw = pw_ref[...]
    t1 = x + pb_ref[...].astype(jnp.float32)
    for h in range(num_heads):
        q = qkv[:, :, h * Dh:(h + 1) * Dh] * scale
        k = qkv[:, :, D + h * Dh:D + (h + 1) * Dh]
        v = qkv[:, :, 2 * D + h * Dh:2 * D + (h + 1) * Dh]
        s = jnp.einsum("wtd,wsd->wts", q, k, preferred_element_type=jnp.float32)
        s = s - jnp.max(s, axis=-1, keepdims=True)
        p = jnp.exp(s)
        p = p * pl.reciprocal(jnp.sum(p, axis=-1, keepdims=True), approx=True)
        oh = jnp.einsum("wts,wsd->wtd", p, v, preferred_element_type=jnp.float32)
        t1 = t1 + jnp.dot(oh.reshape(M, Dh).astype(pw.dtype),
                          pw[h * Dh:(h + 1) * Dh, :],
                          preferred_element_type=jnp.float32)

    # LN2 -> MLP (GELU) -> residual
    # TODO(synk): PyTorch nn.GELU defaults to exact erf; tanh approximation used.
    xn2 = _layer_norm_f32(t1, g2_ref[...].astype(jnp.float32), b2_ref[...].astype(jnp.float32))
    hid = jnp.dot(xn2.astype(f1w_ref.dtype), f1w_ref[...], preferred_element_type=jnp.float32)
    hid = jax.nn.gelu(hid + f1b_ref[...].astype(jnp.float32))
    t2 = jnp.dot(hid.astype(f2w_ref.dtype), f2w_ref[...], preferred_element_type=jnp.float32)
    t2 = t2 + f2b_ref[...].astype(jnp.float32) + t1
    o_ref[...] = t2.reshape(wb, T, D).astype(o_ref.dtype)


# ----------------------------------------------------------------------------- wrappers


def pallas_linear(x, w, b, *, budget, out_dtype=None):
    M, K = x.shape
    N = w.shape[1]
    tm = _pick_row_tile(M, K, N, budget)
    return pl.pallas_call(
        _linear_kernel,
        grid=(M // tm,),
        in_specs=[pl.BlockSpec((tm, K), lambda i: (i, 0)),
                  pl.BlockSpec((K, N), lambda i: (0, 0)),
                  pl.BlockSpec((1, N), lambda i: (0, 0))],
        out_specs=pl.BlockSpec((tm, N), lambda i: (i, 0)),
        out_shape=jax.ShapeDtypeStruct((M, N), out_dtype or x.dtype),
        compiler_params=pltpu.CompilerParams(
            dimension_semantics=("parallel",), vmem_limit_bytes=budget),
    )(x, w, b)


def pallas_ln_linear(x, gamma, beta, w, b, *, budget):
    M, K = x.shape
    N = w.shape[1]
    tm = _pick_row_tile(M, K, N, budget)
    return pl.pallas_call(
        _ln_linear_kernel,
        grid=(M // tm,),
        in_specs=[pl.BlockSpec((tm, K), lambda i: (i, 0)),
                  pl.BlockSpec((1, K), lambda i: (0, 0)),
                  pl.BlockSpec((1, K), lambda i: (0, 0)),
                  pl.BlockSpec((K, N), lambda i: (0, 0)),
                  pl.BlockSpec((1, N), lambda i: (0, 0))],
        out_specs=pl.BlockSpec((tm, N), lambda i: (i, 0)),
        out_shape=jax.ShapeDtypeStruct((M, N), x.dtype),
        compiler_params=pltpu.CompilerParams(
            dimension_semantics=("parallel",), vmem_limit_bytes=budget),
    )(x, gamma, beta, w, b)


def pallas_swin_block(xw, p, num_heads, *, budget):
    # xw: (NW, T, D) window tokens -> (NW, T, D); one fused pallas_call per block.
    NW, T, D = xw.shape
    assert D % num_heads == 0
    wb = _pick_window_block(NW, T, D, budget)

    weight_args = [
        (p["norm1_g"], (1, D)), (p["norm1_b"], (1, D)),
        (p["qkv_w"], (D, 3 * D)), (p["qkv_b"], (1, 3 * D)),
        (p["proj_w"], (D, D)), (p["proj_b"], (1, D)),
        (p["norm2_g"], (1, D)), (p["norm2_b"], (1, D)),
        (p["fc1_w"], (D, 4 * D)), (p["fc1_b"], (1, 4 * D)),
        (p["fc2_w"], (4 * D, D)), (p["fc2_b"], (1, D)),
    ]
    in_specs = [pl.BlockSpec((wb, T, D), lambda i: (i, 0, 0))]
    in_specs += [pl.BlockSpec(shape, lambda i, n=len(shape): (0,) * n)
                 for _, shape in weight_args]

    return pl.pallas_call(
        functools.partial(_fused_block_kernel, num_heads=num_heads),
        grid=(NW // wb,),
        in_specs=in_specs,
        out_specs=pl.BlockSpec((wb, T, D), lambda i: (i, 0, 0)),
        out_shape=jax.ShapeDtypeStruct((NW, T, D), xw.dtype),
        compiler_params=pltpu.CompilerParams(
            dimension_semantics=("parallel",), vmem_limit_bytes=budget),
    )(xw, *[a for a, _ in weight_args])


def multi_contrast_image_encoding(x, contrasts, conv_w, conv_b, *, budget):
    # x: (B, C_sel, H, W) f32 -> (B, C_sel, H, W, D) bf16; grid over (contrast, image).
    B, C, H, W = x.shape
    D = conv_w.shape[-1]
    xpad = jnp.pad(x, ((0, 0), (0, 0), (1, 1), (1, 1)))
    w_sel = conv_w[contrasts]                            # (C, 9, D) bf16
    b_sel = conv_b[contrasts].reshape(C, 1, D)           # (C, 1, D) f32
    return pl.pallas_call(
        _conv3x3_kernel,
        grid=(C, B),
        in_specs=[pl.BlockSpec((1, 1, H + 2, W + 2), lambda c, b: (b, c, 0, 0)),
                  pl.BlockSpec((1, 9, D), lambda c, b: (c, 0, 0)),
                  pl.BlockSpec((1, 1, D), lambda c, b: (c, 0, 0))],
        out_specs=pl.BlockSpec((1, 1, H, W, D), lambda c, b: (b, c, 0, 0, 0)),
        out_shape=jax.ShapeDtypeStruct((B, C, H, W, D), jnp.bfloat16),
        compiler_params=pltpu.CompilerParams(
            dimension_semantics=("parallel", "parallel"), vmem_limit_bytes=budget),
    )(xpad, w_sel, b_sel)


# ----------------------------------------------------------------------------- model glue


def _trunc_normal(key, shape, std=0.02):
    return std * jax.random.truncated_normal(key, -2.0, 2.0, shape, jnp.float32)


def _init_block_params(key, D):
    ks = jax.random.split(key, 4)
    hidden = 4 * D
    bf = jnp.bfloat16
    f32 = jnp.float32
    return dict(
        norm1_g=jnp.ones((1, D), f32), norm1_b=jnp.zeros((1, D), f32),
        qkv_w=_trunc_normal(ks[0], (D, 3 * D)).astype(bf),
        qkv_b=jnp.zeros((1, 3 * D), f32),
        proj_w=_trunc_normal(ks[1], (D, D)).astype(bf),
        proj_b=jnp.zeros((1, D), f32),
        norm2_g=jnp.ones((1, D), f32), norm2_b=jnp.zeros((1, D), f32),
        fc1_w=_trunc_normal(ks[2], (D, hidden)).astype(bf),
        fc1_b=jnp.zeros((1, hidden), f32),
        fc2_w=_trunc_normal(ks[3], (hidden, D)).astype(bf),
        fc2_b=jnp.zeros((1, D), f32),
    )


def _init_down_layer_params(key, d_in, patch, do_reduce):
    k_merge, k_block = jax.random.split(key)
    merged = d_in * patch * patch
    p = {}
    if do_reduce:
        d_out = 2 * d_in
        p["merge_norm_g"] = jnp.ones((1, merged), jnp.float32)
        p["merge_norm_b"] = jnp.zeros((1, merged), jnp.float32)
        p["merge_w"] = _trunc_normal(k_merge, (merged, d_out)).astype(jnp.bfloat16)
        p["merge_b"] = jnp.zeros((1, d_out), jnp.float32)
    else:
        d_out = merged
    p["block"] = _init_block_params(k_block, d_out)
    return p


def _swin_block_forward(x, p, window_size, num_heads, budget):
    B, C, H, W, D = x.shape
    ws = window_size
    Hn, Wn = H // ws, W // ws
    NW, T = B * Hn * Wn, C * ws * ws
    # TODO(synk): window partition / un-partition are XLA-level transposes; folding them
    #             into the BlockSpec index_map would save two HBM round trips per block.
    xw = x.reshape(B, C, Hn, ws, Wn, ws, D).transpose(0, 2, 4, 1, 3, 5, 6).reshape(NW, T, D)
    out = pallas_swin_block(xw, p, num_heads, budget=budget)
    out = out.reshape(B, Hn, Wn, C, ws, ws, D).transpose(0, 3, 1, 4, 2, 5, 6)
    return out.reshape(B, C, H, W, D)


def _encoder_down_layer_forward(x, p, patch, do_reduce, window_size, num_heads, budget):
    B, C, H, W, D = x.shape
    Hn, Wn = H // patch, W // patch
    x = x.reshape(B, C, Hn, patch, Wn, patch, D)
    x = x.transpose(0, 1, 2, 4, 3, 5, 6).reshape(B, C, Hn, Wn, patch * patch * D)
    if do_reduce:
        merged = patch * patch * D
        flat = pallas_ln_linear(x.reshape(B * C * Hn * Wn, merged),
                                p["merge_norm_g"], p["merge_norm_b"],
                                p["merge_w"], p["merge_b"], budget=budget)
        x = flat.reshape(B, C, Hn, Wn, 2 * D)
    return _swin_block_forward(x, p["block"], window_size, num_heads, budget)


class MultiContrastDiscriminatorPallas:
    def __init__(self, dim, num_layers, window_size, shift_size, num_contrasts,
                 num_heads, patch_size=2, key=None):
        if key is None:
            key = jax.random.PRNGKey(0)
        self.dim = dim
        self.num_layers = num_layers
        self.window_size = window_size
        self.shift_size = shift_size      # TODO(synk): shifted windows not implemented
        self.num_heads = num_heads
        self.patch_size = patch_size
        self.vmem_budget = _vmem_budget_bytes()

        k_conv, k_patch, k_down, k_out = jax.random.split(key, 4)
        params = {}
        params["conv_w"] = (0.02 * jax.random.normal(
            k_conv, (num_contrasts, 9, dim), jnp.float32)).astype(jnp.bfloat16)
        params["conv_b"] = jnp.zeros((num_contrasts, dim), jnp.float32)
        params["patches"] = _init_down_layer_params(
            k_patch, dim, patch_size * 2, do_reduce=False)
        params["down"] = []
        down_keys = jax.random.split(k_down, max(num_layers - 1, 1))
        for i in range(num_layers - 1):
            d_in = dim * (1 << i) * patch_size ** 4
            params["down"].append(
                _init_down_layer_params(down_keys[i], d_in, patch_size, do_reduce=True))
        d_final = dim * (1 << (num_layers - 1)) * patch_size ** 4
        # Classifier weight padded to 128 output lanes for a lane-dense store; only
        # column 0 is the real output (sliced in __call__).
        w0 = _trunc_normal(k_out, (d_final, 1))
        params["out_w"] = jnp.pad(w0, ((0, 0), (0, 127))).astype(jnp.bfloat16)
        params["out_b"] = jnp.zeros((1, 128), jnp.float32)
        self.params = params

    def __call__(self, x, generated_contrasts):
        contrasts = jnp.asarray(generated_contrasts, jnp.int32)
        p = self.params
        budget = self.vmem_budget
        h = multi_contrast_image_encoding(x, contrasts, p["conv_w"], p["conv_b"],
                                          budget=budget)
        h = _encoder_down_layer_forward(
            h, p["patches"], self.patch_size * 2, False,
            self.window_size, self.num_heads, budget)
        for i in range(self.num_layers - 1):
            h = _encoder_down_layer_forward(
                h, p["down"][i], self.patch_size, True,
                self.window_size, self.num_heads, budget)
        B, C, Hf, Wf, Df = h.shape
        out = pallas_linear(h.reshape(B * C * Hf * Wf, Df), p["out_w"], p["out_b"],
                            budget=budget, out_dtype=jnp.float32)
        return out[:, :1].reshape(B, C, Hf, Wf, 1)


# ----------------------------------------------------------------------------- main


if __name__ == "__main__":
    dim, num_layers, window_size, shift_size = 4, 2, 2, 1
    num_contrasts, num_heads, patch_size = 3, 2, 2
    B, H, W = 2, 16, 16
    generated_contrasts = (0, 2)            # which contrasts the generator produced
    C = len(generated_contrasts)

    key = jax.random.PRNGKey(0)
    k_model, k_x = jax.random.split(key)
    model = MultiContrastDiscriminatorPallas(
        dim, num_layers, window_size, shift_size, num_contrasts, num_heads,
        patch_size=patch_size, key=k_model)

    x = jax.random.normal(k_x, (B, C, H, W), jnp.float32)
    fwd = jax.jit(lambda inp: model(inp, generated_contrasts))
    out = fwd(x)
    jax.block_until_ready(out)
    assert out.shape == (B, C, H // (patch_size * 2) // patch_size,
                         W // (patch_size * 2) // patch_size, 1), out.shape
    print("KERNEL_OK")
</pallas_src>

<mosaic_0001>
module attributes {stable_mosaic.version = 11 : i64} {
  func.func @_conv3x3_kernel(%arg0: i32, %arg1: i32, %arg2: memref<1x1x18x18xf32, #tpu.memory_space<vmem>>, %arg3: memref<1x9x4xbf16, #tpu.memory_space<vmem>>, %arg4: memref<1x1x4xf32, #tpu.memory_space<vmem>>, %arg5: memref<1x1x16x16x4xbf16, #tpu.memory_space<vmem>>) attributes {dimension_semantics = [#tpu.dimension_semantics<parallel>, #tpu.dimension_semantics<parallel>], iteration_bounds = array<i64: 2, 2>, scalar_prefetch = 0 : i64, scratch_operands = 0 : i64, tpu.core_type = #tpu.core_type<tc>, window_params = [{transform_indices = @transform_0, window_bounds = array<i64: 1, 1, 18, 18>}, {transform_indices = @transform_1, window_bounds = array<i64: 1, 9, 4>}, {transform_indices = @transform_2, window_bounds = array<i64: 1, 1, 4>}, {transform_indices = @transform_3, window_bounds = array<i64: 1, 1, 16, 16, 4>}]} {
    %c0 = arith.constant 0 : index
    %c0_0 = arith.constant 0 : index
    %c0_1 = arith.constant 0 : index
    %c0_2 = arith.constant 0 : index
    %0 = vector.load %arg2[%c0, %c0_0, %c0_1, %c0_2] : memref<1x1x18x18xf32, #tpu.memory_space<vmem>>, vector<1x1x18x18xf32>
    %1 = vector.shape_cast %0 : vector<1x1x18x18xf32> to vector<18x18xf32>
    %c0_3 = arith.constant 0 : index
    %c0_4 = arith.constant 0 : index
    %c0_5 = arith.constant 0 : index
    %2 = vector.load %arg3[%c0_3, %c0_4, %c0_5] : memref<1x9x4xbf16, #tpu.memory_space<vmem>>, vector<1x9x4xbf16>
    %3 = vector.shape_cast %2 : vector<1x9x4xbf16> to vector<9x4xbf16>
    %4 = arith.extf %3 : vector<9x4xbf16> to vector<9x4xf32>
    %cst = arith.constant 0.000000e+00 : f32
    %5 = vector.broadcast %cst : f32 to vector<16x16x4xf32>
    %6 = vector.extract_strided_slice %1 {offsets = [0, 0], sizes = [16, 16], strides = [1, 1]} : vector<18x18xf32> to vector<16x16xf32>
    %7 = vector.shape_cast %6 : vector<16x16xf32> to vector<16x16x1xf32>
    %8 = vector.extract_strided_slice %4 {offsets = [0, 0], sizes = [1, 4], strides = [1, 1]} : vector<9x4xf32> to vector<1x4xf32>
    %9 = vector.shape_cast %8 : vector<1x4xf32> to vector<4xf32>
    %10 = vector.shape_cast %9 : vector<4xf32> to vector<1x1x4xf32>
    %11 = vector.broadcast %7 : vector<16x16x1xf32> to vector<16x16x4xf32>
    %12 = vector.broadcast %10 : vector<1x1x4xf32> to vector<16x16x4xf32>
    %13 = arith.mulf %11, %12 : vector<16x16x4xf32>
    %14 = arith.addf %5, %13 : vector<16x16x4xf32>
    %15 = vector.extract_strided_slice %1 {offsets = [0, 1], sizes = [16, 16], strides = [1, 1]} : vector<18x18xf32> to vector<16x16xf32>
    %16 = vector.shape_cast %15 : vector<16x16xf32> to vector<16x16x1xf32>
    %17 = vector.extract_strided_slice %4 {offsets = [1, 0], sizes = [1, 4], strides = [1, 1]} : vector<9x4xf32> to vector<1x4xf32>
    %18 = vector.shape_cast %17 : vector<1x4xf32> to vector<4xf32>
    %19 = vector.shape_cast %18 : vector<4xf32> to vector<1x1x4xf32>
    %20 = vector.broadcast %16 : vector<16x16x1xf32> to vector<16x16x4xf32>
    %21 = vector.broadcast %19 : vector<1x1x4xf32> to vector<16x16x4xf32>
    %22 = arith.mulf %20, %21 : vector<16x16x4xf32>
    %23 = arith.addf %14, %22 : vector<16x16x4xf32>
    %24 = vector.extract_strided_slice %1 {offsets = [0, 2], sizes = [16, 16], strides = [1, 1]} : vector<18x18xf32> to vector<16x16xf32>
    %25 = vector.shape_cast %24 : vector<16x16xf32> to vector<16x16x1xf32>
    %26 = vector.extract_strided_slice %4 {offsets = [2, 0], sizes = [1, 4], strides = [1, 1]} : vector<9x4xf32> to vector<1x4xf32>
    %27 = vector.shape_cast %26 : vector<1x4xf32> to vector<4xf32>
    %28 = vector.shape_cast %27 : vector<4xf32> to vector<1x1x4xf32>
    %29 = vector.broadcast %25 : vector<16x16x1xf32> to vector<16x16x4xf32>
    %30 = vector.broadcast %28 : vector<1x1x4xf32> to vector<16x16x4xf32>
    %31 = arith.mulf %29, %30 : vector<16x16x4xf32>
    %32 = arith.addf %23, %31 : vector<16x16x4xf32>
    %33 = vector.extract_strided_slice %1 {offsets = [1, 0], sizes = [16, 16], strides = [1, 1]} : vector<18x18xf32> to vector<16x16xf32>
    %34 = vector.shape_cast %33 : vector<16x16xf32> to vector<16x16x1xf32>
    %35 = vector.extract_strided_slice %4 {offsets = [3, 0], sizes = [1, 4], strides = [1, 1]} : vector<9x4xf32> to vector<1x4xf32>
    %36 = vector.shape_cast %35 : vector<1x4xf32> to vector<4xf32>
    %37 = vector.shape_cast %36 : vector<4xf32> to vector<1x1x4xf32>
    %38 = vector.broadcast %34 : vector<16x16x1xf32> to vector<16x16x4xf32>
    %39 = vector.broadcast %37 : vector<1x1x4xf32> to vector<16x16x4xf32>
    %40 = arith.mulf %38, %39 : vector<16x16x4xf32>
    %41 = arith.addf %32, %40 : vector<16x16x4xf32>
    %42 = vector.extract_strided_slice %1 {offsets = [1, 1], sizes = [16, 16], strides = [1, 1]} : vector<18x18xf32> to vector<16x16xf32>
    %43 = vector.shape_cast %42 : vector<16x16xf32> to vector<16x16x1xf32>
    %44 = vector.extract_strided_slice %4 {offsets = [4, 0], sizes = [1, 4], strides = [1, 1]} : vector<9x4xf32> to vector<1x4xf32>
    %45 = vector.shape_cast %44 : vector<1x4xf32> to vector<4xf32>
    %46 = vector.shape_cast %45 : vector<4xf32> to vector<1x1x4xf32>
    %47 = vector.broadcast %43 : vector<16x16x1xf32> to vector<16x16x4xf32>
    %48 = vector.broadcast %46 : vector<1x1x4xf32> to vector<16x16x4xf32>
    %49 = arith.mulf %47, %48 : vector<16x16x4xf32>
    %50 = arith.addf %41, %49 : vector<16x16x4xf32>
    %51 = vector.extract_strided_slice %1 {offsets = [1, 2], sizes = [16, 16], strides = [1, 1]} : vector<18x18xf32> to vector<16x16xf32>
    %52 = vector.shape_cast %51 : vector<16x16xf32> to vector<16x16x1xf32>
    %53 = vector.extract_strided_slice %4 {offsets = [5, 0], sizes = [1, 4], strides = [1, 1]} : vector<9x4xf32> to vector<1x4xf32>
    %54 = vector.shape_cast %53 : vector<1x4xf32> to vector<4xf32>
    %55 = vector.shape_cast %54 : vector<4xf32> to vector<1x1x4xf32>
    %56 = vector.broadcast %52 : vector<16x16x1xf32> to vector<16x16x4xf32>
    %57 = vector.broadcast %55 : vector<1x1x4xf32> to vector<16x16x4xf32>
    %58 = arith.mulf %56, %57 : vector<16x16x4xf32>
    %59 = arith.addf %50, %58 : vector<16x16x4xf32>
    %60 = vector.extract_strided_slice %1 {offsets = [2, 0], sizes = [16, 16], strides = [1, 1]} : vector<18x18xf32> to vector<16x16xf32>
    %61 = vector.shape_cast %60 : vector<16x16xf32> to vector<16x16x1xf32>
    %62 = vector.extract_strided_slice %4 {offsets = [6, 0], sizes = [1, 4], strides = [1, 1]} : vector<9x4xf32> to vector<1x4xf32>
    %63 = vector.shape_cast %62 : vector<1x4xf32> to vector<4xf32>
    %64 = vector.shape_cast %63 : vector<4xf32> to vector<1x1x4xf32>
    %65 = vector.broadcast %61 : vector<16x16x1xf32> to vector<16x16x4xf32>
    %66 = vector.broadcast %64 : vector<1x1x4xf32> to vector<16x16x4xf32>
    %67 = arith.mulf %65, %66 : vector<16x16x4xf32>
    %68 = arith.addf %59, %67 : vector<16x16x4xf32>
    %69 = vector.extract_strided_slice %1 {offsets = [2, 1], sizes = [16, 16], strides = [1, 1]} : vector<18x18xf32> to vector<16x16xf32>
    %70 = vector.shape_cast %69 : vector<16x16xf32> to vector<16x16x1xf32>
    %71 = vector.extract_strided_slice %4 {offsets = [7, 0], sizes = [1, 4], strides = [1, 1]} : vector<9x4xf32> to vector<1x4xf32>
    %72 = vector.shape_cast %71 : vector<1x4xf32> to vector<4xf32>
    %73 = vector.shape_cast %72 : vector<4xf32> to vector<1x1x4xf32>
    %74 = vector.broadcast %70 : vector<16x16x1xf32> to vector<16x16x4xf32>
    %75 = vector.broadcast %73 : vector<1x1x4xf32> to vector<16x16x4xf32>
    %76 = arith.mulf %74, %75 : vector<16x16x4xf32>
    %77 = arith.addf %68, %76 : vector<16x16x4xf32>
    %78 = vector.extract_strided_slice %1 {offsets = [2, 2], sizes = [16, 16], strides = [1, 1]} : vector<18x18xf32> to vector<16x16xf32>
    %79 = vector.shape_cast %78 : vector<16x16xf32> to vector<16x16x1xf32>
    %80 = vector.extract_strided_slice %4 {offsets = [8, 0], sizes = [1, 4], strides = [1, 1]} : vector<9x4xf32> to vector<1x4xf32>
    %81 = vector.shape_cast %80 : vector<1x4xf32> to vector<4xf32>
    %82 = vector.shape_cast %81 : vector<4xf32> to vector<1x1x4xf32>
    %83 = vector.broadcast %79 : vector<16x16x1xf32> to vector<16x16x4xf32>
    %84 = vector.broadcast %82 : vector<1x1x4xf32> to vector<16x16x4xf32>
    %85 = arith.mulf %83, %84 : vector<16x16x4xf32>
    %86 = arith.addf %77, %85 : vector<16x16x4xf32>
    %c0_6 = arith.constant 0 : index
    %c0_7 = arith.constant 0 : index
    %c0_8 = arith.constant 0 : index
    %87 = vector.load %arg4[%c0_6, %c0_7, %c0_8] : memref<1x1x4xf32, #tpu.memory_space<vmem>>, vector<1x1x4xf32>
    %88 = vector.shape_cast %87 : vector<1x1x4xf32> to vector<1x4xf32>
    %89 = vector.shape_cast %88 : vector<1x4xf32> to vector<1x1x4xf32>
    %90 = vector.broadcast %89 : vector<1x1x4xf32> to vector<16x16x4xf32>
    %91 = arith.addf %86, %90 : vector<16x16x4xf32>
    %92 = arith.truncf %91 : vector<16x16x4xf32> to vector<16x16x4xbf16>
    %c0_9 = arith.constant 0 : index
    %c0_10 = arith.constant 0 : index
    %c0_11 = arith.constant 0 : index
    %c0_12 = arith.constant 0 : index
    %c0_13 = arith.constant 0 : index
    %93 = vector.load %arg5[%c0_9, %c0_10, %c0_11, %c0_12, %c0_13] : memref<1x1x16x16x4xbf16, #tpu.memory_space<vmem>>, vector<1x1x16x16x4xbf16>
    %94 = vector.shape_cast %93 : vector<1x1x16x16x4xbf16> to vector<16x16x4xbf16>
    %95 = vector.shape_cast %92 : vector<16x16x4xbf16> to vector<1x1x16x16x4xbf16>
    tpu.vector_store %arg5[%c0_9, %c0_10, %c0_11, %c0_12, %c0_13], %95 {strides = array<i32>} : memref<1x1x16x16x4xbf16, #tpu.memory_space<vmem>>, vector<1x1x16x16x4xbf16>,
    return
  }
  func.func @transform_0(%arg0: i32, %arg1: i32) -> (i32, i32, i32, i32) {
    %c0_i32 = arith.constant 0 : i32
    %c0_i32_0 = arith.constant 0 : i32
    %c0_i32_1 = arith.constant 0 : i32
    return %arg1, %arg0, %c0_i32, %c0_i32_0 : i32, i32, i32, i32
  }
  func.func @transform_1(%arg0: i32, %arg1: i32) -> (i32, i32, i32) {
    %c0_i32 = arith.constant 0 : i32
    %c0_i32_0 = arith.constant 0 : i32
    %c0_i32_1 = arith.constant 0 : i32
    return %arg0, %c0_i32, %c0_i32_0 : i32, i32, i32
  }
  func.func @transform_2(%arg0: i32, %arg1: i32) -> (i32, i32, i32) {
    %c0_i32 = arith.constant 0 : i32
    %c0_i32_0 = arith.constant 0 : i32
    %c0_i32_1 = arith.constant 0 : i32
    return %arg0, %c0_i32, %c0_i32_0 : i32, i32, i32
  }
  func.func @transform_3(%arg0: i32, %arg1: i32) -> (i32, i32, i32, i32, i32) {
    %c0_i32 = arith.constant 0 : i32
    %c0_i32_0 = arith.constant 0 : i32
    %c0_i32_1 = arith.constant 0 : i32
    %c0_i32_2 = arith.constant 0 : i32
    return %arg1, %arg0, %c0_i32, %c0_i32_0, %c0_i32_1 : i32, i32, i32, i32, i32
  }
}

module attributes {stable_mosaic.version = 11 : i64} {
  func.func @_fused_block_kernel(%arg0: i32, %arg1: memref<4x8x64xbf16, #tpu.memory_space<vmem>>, %arg2: memref<1x64xf32, #tpu.memory_space<vmem>>, %arg3: memref<1x64xf32, #tpu.memory_space<vmem>>, %arg4: memref<64x192xbf16, #tpu.memory_space<vmem>>, %arg5: memref<1x192xf32, #tpu.memory_space<vmem>>, %arg6: memref<64x64xbf16, #tpu.memory_space<vmem>>, %arg7: memref<1x64xf32, #tpu.memory_space<vmem>>, %arg8: memref<1x64xf32, #tpu.memory_space<vmem>>, %arg9: memref<1x64xf32, #tpu.memory_space<vmem>>, %arg10: memref<64x256xbf16, #tpu.memory_space<vmem>>, %arg11: memref<1x256xf32, #tpu.memory_space<vmem>>, %arg12: memref<256x64xbf16, #tpu.memory_space<vmem>>, %arg13: memref<1x64xf32, #tpu.memory_space<vmem>>, %arg14: memref<4x8x64xbf16, #tpu.memory_space<vmem>>) attributes {dimension_semantics = [#tpu.dimension_semantics<parallel>], iteration_bounds = array<i64: 2>, scalar_prefetch = 0 : i64, scratch_operands = 0 : i64, tpu.core_type = #tpu.core_type<tc>, window_params = [{transform_indices = @transform_0, window_bounds = array<i64: 4, 8, 64>}, {pipeline_mode = #tpu.pipeline_mode<synchronous>, transform_indices = @transform_1, window_bounds = array<i64: 1, 64>}, {pipeline_mode = #tpu.pipeline_mode<synchronous>, transform_indices = @transform_2, window_bounds = array<i64: 1, 64>}, {pipeline_mode = #tpu.pipeline_mode<synchronous>, transform_indices = @transform_3, window_bounds = array<i64: 64, 192>}, {pipeline_mode = #tpu.pipeline_mode<synchronous>, transform_indices = @transform_4, window_bounds = array<i64: 1, 192>}, {pipeline_mode = #tpu.pipeline_mode<synchronous>, transform_indices = @transform_5, window_bounds = array<i64: 64, 64>}, {pipeline_mode = #tpu.pipeline_mode<synchronous>, transform_indices = @transform_6, window_bounds = array<i64: 1, 64>}, {pipeline_mode = #tpu.pipeline_mode<synchronous>, transform_indices = @transform_7, window_bounds = array<i64: 1, 64>}, {pipeline_mode = #tpu.pipeline_mode<synchronous>, transform_indices = @transform_8, window_bounds = array<i64: 1, 64>}, {pipeline_mode = #tpu.pipeline_mode<synchronous>, transform_indices = @transform_9, window_bounds = array<i64: 64, 256>}, {pipeline_mode = #tpu.pipeline_mode<synchronous>, transform_indices = @transform_10, window_bounds = array<i64: 1, 256>}, {pipeline_mode = #tpu.pipeline_mode<synchronous>, transform_indices = @transform_11, window_bounds = array<i64: 256, 64>}, {pipeline_mode = #tpu.pipeline_mode<synchronous>, transform_indices = @transform_12, window_bounds = array<i64: 1, 64>}, {transform_indices = @transform_13, window_bounds = array<i64: 4, 8, 64>}]} {
    %c0 = arith.constant 0 : index
    %c0_0 = arith.constant 0 : index
    %c0_1 = arith.constant 0 : index
    %0 = vector.load %arg1[%c0, %c0_0, %c0_1] : memref<4x8x64xbf16, #tpu.memory_space<vmem>>, vector<4x8x64xbf16>
    %1 = arith.extf %0 : vector<4x8x64xbf16> to vector<4x8x64xf32>
    %2 = vector.shape_cast %1 : vector<4x8x64xf32> to vector<32x64xf32>
    %c0_2 = arith.constant 0 : index
    %c0_3 = arith.constant 0 : index
    %3 = vector.load %arg2[%c0_2, %c0_3] : memref<1x64xf32, #tpu.memory_space<vmem>>, vector<1x64xf32>
    %c0_4 = arith.constant 0 : index
    %c0_5 = arith.constant 0 : index
    %4 = vector.load %arg3[%c0_4, %c0_5] : memref<1x64xf32, #tpu.memory_space<vmem>>, vector<1x64xf32>
    %cst = arith.constant dense<0.000000e+00> : vector<32xf32>
    %5 = vector.multi_reduction <add>, %2, %cst [1] : vector<32x64xf32> to vector<32xf32>
    %6 = vector.shape_cast %5 : vector<32xf32> to vector<32x1xf32>
    %cst_6 = arith.constant 6.400000e+01 : f32
    %7 = vector.broadcast %cst_6 : f32 to vector<32x1xf32>
    %8 = arith.divf %6, %7 : vector<32x1xf32>
    %9 = vector.broadcast %8 : vector<32x1xf32> to vector<32x64xf32>
    %10 = arith.subf %2, %9 : vector<32x64xf32>
    %11 = arith.mulf %10, %10 : vector<32x64xf32>
    %cst_7 = arith.constant dense<0.000000e+00> : vector<32xf32>
    %12 = vector.multi_reduction <add>, %11, %cst_7 [1] : vector<32x64xf32> to vector<32xf32>
    %13 = vector.shape_cast %12 : vector<32xf32> to vector<32x1xf32>
    %cst_8 = arith.constant 6.400000e+01 : f32
    %14 = vector.broadcast %cst_8 : f32 to vector<32x1xf32>
    %15 = arith.divf %13, %14 : vector<32x1xf32>
    %16 = vector.broadcast %8 : vector<32x1xf32> to vector<32x64xf32>
    %17 = arith.subf %2, %16 : vector<32x64xf32>
    %cst_9 = arith.constant 9.99999974E-6 : f32
    %18 = vector.broadcast %cst_9 : f32 to vector<32x1xf32>
    %19 = arith.addf %15, %18 : vector<32x1xf32>
    %20 = math.rsqrt %19 : vector<32x1xf32>
    %21 = vector.broadcast %20 : vector<32x1xf32> to vector<32x64xf32>
    %22 = arith.mulf %17, %21 : vector<32x64xf32>
    %23 = vector.broadcast %3 : vector<1x64xf32> to vector<32x64xf32>
    %24 = arith.mulf %22, %23 : vector<32x64xf32>
    %25 = vector.broadcast %4 : vector<1x64xf32> to vector<32x64xf32>
    %26 = arith.addf %24, %25 : vector<32x64xf32>
    %27 = arith.truncf %26 : vector<32x64xf32> to vector<32x64xbf16>
    %c0_10 = arith.constant 0 : index
    %c0_11 = arith.constant 0 : index
    %28 = vector.load %arg4[%c0_10, %c0_11] : memref<64x192xbf16, #tpu.memory_space<vmem>>, vector<64x192xbf16>
    %cst_12 = arith.constant dense<0.000000e+00> : vector<32x192xf32>
    %29 = tpu.matmul %27, %28, %cst_12 {dimension_numbers = #tpu.dot_dimension_numbers<[1], [0], [0], [1], [0, 0, 1, 1], [], []>} : vector<32x64xbf16>, vector<64x192xbf16>, vector<32x192xf32> -> vector<32x192xf32>
    %c0_13 = arith.constant 0 : index
    %c0_14 = arith.constant 0 : index
    %30 = vector.load %arg5[%c0_13, %c0_14] : memref<1x192xf32, #tpu.memory_space<vmem>>, vector<1x192xf32>
    %31 = vector.broadcast %30 : vector<1x192xf32> to vector<32x192xf32>
    %32 = arith.addf %29, %31 : vector<32x192xf32>
    %33 = vector.shape_cast %32 : vector<32x192xf32> to vector<4x8x192xf32>
    %c0_15 = arith.constant 0 : index
    %c0_16 = arith.constant 0 : index
    %34 = vector.load %arg6[%c0_15, %c0_16] : memref<64x64xbf16, #tpu.memory_space<vmem>>, vector<64x64xbf16>
    %c0_17 = arith.constant 0 : index
    %c0_18 = arith.constant 0 : index
    %35 = vector.load %arg7[%c0_17, %c0_18] : memref<1x64xf32, #tpu.memory_space<vmem>>, vector<1x64xf32>
    %36 = vector.broadcast %35 : vector<1x64xf32> to vector<32x64xf32>
    %37 = arith.addf %2, %36 : vector<32x64xf32>
    %38 = vector.extract_strided_slice %33 {offsets = [0, 0, 0], sizes = [4, 8, 32], strides = [1, 1, 1]} : vector<4x8x192xf32> to vector<4x8x32xf32>
    %cst_19 = arith.constant 0.176776692 : f32
    %39 = vector.broadcast %cst_19 : f32 to vector<4x8x32xf32>
    %40 = arith.mulf %38, %39 : vector<4x8x32xf32>
    %41 = vector.extract_strided_slice %33 {offsets = [0, 0, 64], sizes = [4, 8, 32], strides = [1, 1, 1]} : vector<4x8x192xf32> to vector<4x8x32xf32>
    %42 = vector.extract_strided_slice %33 {offsets = [0, 0, 128], sizes = [4, 8, 32], strides = [1, 1, 1]} : vector<4x8x192xf32> to vector<4x8x32xf32>
    "tpu.trace_start"() <{level = 10 : i32, message = "wtd,wsd->wts"}> : () -> ()
    %cst_20 = arith.constant dense<0.000000e+00> : vector<4x8x8xf32>
    %43 = tpu.matmul %40, %41, %cst_20 {dimension_numbers = #tpu.dot_dimension_numbers<[2], [2], [1], [1], [0, 0, 0, 1, 1, 1], [0], [0]>} : vector<4x8x32xf32>, vector<4x8x32xf32>, vector<4x8x8xf32> -> vector<4x8x8xf32>
    "tpu.trace_stop"() : () -> ()
    %cst_21 = arith.constant dense<0xFF800000> : vector<4x8xf32>
    %44 = vector.multi_reduction <maximumf>, %43, %cst_21 [2] : vector<4x8x8xf32> to vector<4x8xf32>
    %45 = vector.shape_cast %44 : vector<4x8xf32> to vector<4x8x1xf32>
    %46 = vector.broadcast %45 : vector<4x8x1xf32> to vector<4x8x8xf32>
    %47 = arith.subf %43, %46 : vector<4x8x8xf32>
    %48 = math.exp %47 : vector<4x8x8xf32>
    %cst_22 = arith.constant dense<0.000000e+00> : vector<4x8xf32>
    %49 = vector.multi_reduction <add>, %48, %cst_22 [2] : vector<4x8x8xf32> to vector<4x8xf32>
    %50 = vector.shape_cast %49 : vector<4x8xf32> to vector<4x8x1xf32>
    %51 = tpu.reciprocal %50 {approx = true} : vector<4x8x1xf32> -> vector<4x8x1xf32>
    %52 = vector.broadcast %51 : vector<4x8x1xf32> to vector<4x8x8xf32>
    %53 = arith.mulf %48, %52 : vector<4x8x8xf32>
    "tpu.trace_start"() <{level = 10 : i32, message = "wts,wsd->wtd"}> : () -> ()
    %cst_23 = arith.constant dense<0.000000e+00> : vector<4x8x32xf32>
    %54 = tpu.matmul %53, %42, %cst_23 {dimension_numbers = #tpu.dot_dimension_numbers<[2], [1], [1], [2], [0, 0, 0, 1, 1, 2], [0], [0]>} : vector<4x8x8xf32>, vector<4x8x32xf32>, vector<4x8x32xf32> -> vector<4x8x32xf32>
    "tpu.trace_stop"() : () -> ()
    %55 = vector.shape_cast %54 : vector<4x8x32xf32> to vector<32x32xf32>
    %56 = arith.truncf %55 : vector<32x32xf32> to vector<32x32xbf16>
    %57 = vector.extract_strided_slice %34 {offsets = [0, 0], sizes = [32, 64], strides = [1, 1]} : vector<64x64xbf16> to vector<32x64xbf16>
    %cst_24 = arith.constant dense<0.000000e+00> : vector<32x64xf32>
    %58 = tpu.matmul %56, %57, %cst_24 {dimension_numbers = #tpu.dot_dimension_numbers<[1], [0], [0], [1], [0, 0, 1, 1], [], []>} : vector<32x32xbf16>, vector<32x64xbf16>, vector<32x64xf32> -> vector<32x64xf32>
    %59 = arith.addf %37, %58 : vector<32x64xf32>
    %60 = vector.extract_strided_slice %33 {offsets = [0, 0, 32], sizes = [4, 8, 32], strides = [1, 1, 1]} : vector<4x8x192xf32> to vector<4x8x32xf32>
    %cst_25 = arith.constant 0.176776692 : f32
    %61 = vector.broadcast %cst_25 : f32 to vector<4x8x32xf32>
    %62 = arith.mulf %60, %61 : vector<4x8x32xf32>
    %63 = vector.extract_strided_slice %33 {offsets = [0, 0, 96], sizes = [4, 8, 32], strides = [1, 1, 1]} : vector<4x8x192xf32> to vector<4x8x32xf32>
    %64 = vector.extract_strided_slice %33 {offsets = [0, 0, 160], sizes = [4, 8, 32], strides = [1, 1, 1]} : vector<4x8x192xf32> to vector<4x8x32xf32>
    "tpu.trace_start"() <{level = 10 : i32, message = "wtd,wsd->wts"}> : () -> ()
    %cst_26 = arith.constant dense<0.000000e+00> : vector<4x8x8xf32>
    %65 = tpu.matmul %62, %63, %cst_26 {dimension_numbers = #tpu.dot_dimension_numbers<[2], [2], [1], [1], [0, 0, 0, 1, 1, 1], [0], [0]>} : vector<4x8x32xf32>, vector<4x8x32xf32>, vector<4x8x8xf32> -> vector<4x8x8xf32>
    "tpu.trace_stop"() : () -> ()
    %cst_27 = arith.constant dense<0xFF800000> : vector<4x8xf32>
    %66 = vector.multi_reduction <maximumf>, %65, %cst_27 [2] : vector<4x8x8xf32> to vector<4x8xf32>
    %67 = vector.shape_cast %66 : vector<4x8xf32> to vector<4x8x1xf32>
    %68 = vector.broadcast %67 : vector<4x8x1xf32> to vector<4x8x8xf32>
    %69 = arith.subf %65, %68 : vector<4x8x8xf32>
    %70 = math.exp %69 : vector<4x8x8xf32>
    %cst_28 = arith.constant dense<0.000000e+00> : vector<4x8xf32>
    %71 = vector.multi_reduction <add>, %70, %cst_28 [2] : vector<4x8x8xf32> to vector<4x8xf32>
    %72 = vector.shape_cast %71 : vector<4x8xf32> to vector<4x8x1xf32>
    %73 = tpu.reciprocal %72 {approx = true} : vector<4x8x1xf32> -> vector<4x8x1xf32>
    %74 = vector.broadcast %73 : vector<4x8x1xf32> to vector<4x8x8xf32>
    %75 = arith.mulf %70, %74 : vector<4x8x8xf32>
    "tpu.trace_start"() <{level = 10 : i32, message = "wts,wsd->wtd"}> : () -> ()
    %cst_29 = arith.constant dense<0.000000e+00> : vector<4x8x32xf32>
    %76 = tpu.matmul %75, %64, %cst_29 {dimension_numbers = #tpu.dot_dimension_numbers<[2], [1], [1], [2], [0, 0, 0, 1, 1, 2], [0], [0]>} : vector<4x8x8xf32>, vector<4x8x32xf32>, vector<4x8x32xf32> -> vector<4x8x32xf32>
    "tpu.trace_stop"() : () -> ()
    %77 = vector.shape_cast %76 : vector<4x8x32xf32> to vector<32x32xf32>
    %78 = arith.truncf %77 : vector<32x32xf32> to vector<32x32xbf16>
    %79 = vector.extract_strided_slice %34 {offsets = [32, 0], sizes = [32, 64], strides = [1, 1]} : vector<64x64xbf16> to vector<32x64xbf16>
    %cst_30 = arith.constant dense<0.000000e+00> : vector<32x64xf32>
    %80 = tpu.matmul %78, %79, %cst_30 {dimension_numbers = #tpu.dot_dimension_numbers<[1], [0], [0], [1], [0, 0, 1, 1], [], []>} : vector<32x32xbf16>, vector<32x64xbf16>, vector<32x64xf32> -> vector<32x64xf32>
    %81 = arith.addf %59, %80 : vector<32x64xf32>
    %c0_31 = arith.constant 0 : index
    %c0_32 = arith.constant 0 : index
    %82 = vector.load %arg8[%c0_31, %c0_32] : memref<1x64xf32, #tpu.memory_space<vmem>>, vector<1x64xf32>
    %c0_33 = arith.constant 0 : index
    %c0_34 = arith.constant 0 : index
    %83 = vector.load %arg9[%c0_33, %c0_34] : memref<1x64xf32, #tpu.memory_space<vmem>>, vector<1x64xf32>
    %cst_35 = arith.constant dense<0.000000e+00> : vector<32xf32>
    %84 = vector.multi_reduction <add>, %81, %cst_35 [1] : vector<32x64xf32> to vector<32xf32>
    %85 = vector.shape_cast %84 : vector<32xf32> to vector<32x1xf32>
    %cst_36 = arith.constant 6.400000e+01 : f32
    %86 = vector.broadcast %cst_36 : f32 to vector<32x1xf32>
    %87 = arith.divf %85, %86 : vector<32x1xf32>
    %88 = vector.broadcast %87 : vector<32x1xf32> to vector<32x64xf32>
    %89 = arith.subf %81, %88 : vector<32x64xf32>
    %90 = arith.mulf %89, %89 : vector<32x64xf32>
    %cst_37 = arith.constant dense<0.000000e+00> : vector<32xf32>
    %91 = vector.multi_reduction <add>, %90, %cst_37 [1] : vector<32x64xf32> to vector<32xf32>
    %92 = vector.shape_cast %91 : vector<32xf32> to vector<32x1xf32>
    %cst_38 = arith.constant 6.400000e+01 : f32
    %93 = vector.broadcast %cst_38 : f32 to vector<32x1xf32>
    %94 = arith.divf %92, %93 : vector<32x1xf32>
    %95 = vector.broadcast %87 : vector<32x1xf32> to vector<32x64xf32>
    %96 = arith.subf %81, %95 : vector<32x64xf32>
    %cst_39 = arith.constant 9.99999974E-6 : f32
    %97 = vector.broadcast %cst_39 : f32 to vector<32x1xf32>
    %98 = arith.addf %94, %97 : vector<32x1xf32>
    %99 = math.rsqrt %98 : vector<32x1xf32>
    %100 = vector.broadcast %99 : vector<32x1xf32> to vector<32x64xf32>
    %101 = arith.mulf %96, %100 : vector<32x64xf32>
    %102 = vector.broadcast %82 : vector<1x64xf32> to vector<32x64xf32>
    %103 = arith.mulf %101, %102 : vector<32x64xf32>
    %104 = vector.broadcast %83 : vector<1x64xf32> to vector<32x64xf32>
    %105 = arith.addf %103, %104 : vector<32x64xf32>
    %106 = arith.truncf %105 : vector<32x64xf32> to vector<32x64xbf16>
    %c0_40 = arith.constant 0 : index
    %c0_41 = arith.constant 0 : index
    %107 = vector.load %arg10[%c0_40, %c0_41] : memref<64x256xbf16, #tpu.memory_space<vmem>>, vector<64x256xbf16>
    %cst_42 = arith.constant dense<0.000000e+00> : vector<32x256xf32>
    %108 = tpu.matmul %106, %107, %cst_42 {dimension_numbers = #tpu.dot_dimension_numbers<[1], [0], [0], [1], [0, 0, 1, 1], [], []>} : vector<32x64xbf16>, vector<64x256xbf16>, vector<32x256xf32> -> vector<32x256xf32>
    %c0_43 = arith.constant 0 : index
    %c0_44 = arith.constant 0 : index
    %109 = vector.load %arg11[%c0_43, %c0_44] : memref<1x256xf32, #tpu.memory_space<vmem>>, vector<1x256xf32>
    %110 = vector.broadcast %109 : vector<1x256xf32> to vector<32x256xf32>
    %111 = arith.addf %108, %110 : vector<32x256xf32>
    %112 = arith.mulf %111, %111 : vector<32x256xf32>
    %113 = arith.mulf %111, %112 : vector<32x256xf32>
    %cst_45 = arith.constant 4.471500e-02 : f32
    %114 = vector.broadcast %cst_45 : f32 to vector<32x256xf32>
    %115 = arith.mulf %114, %113 : vector<32x256xf32>
    %116 = arith.addf %111, %115 : vector<32x256xf32>
    %cst_46 = arith.constant 0.797884583 : f32
    %117 = vector.broadcast %cst_46 : f32 to vector<32x256xf32>
    %118 = arith.mulf %117, %116 : vector<32x256xf32>
    %119 = math.tanh %118 : vector<32x256xf32>
    %cst_47 = arith.constant 1.000000e+00 : f32
    %120 = vector.broadcast %cst_47 : f32 to vector<32x256xf32>
    %121 = arith.addf %120, %119 : vector<32x256xf32>
    %cst_48 = arith.constant 5.000000e-01 : f32
    %122 = vector.broadcast %cst_48 : f32 to vector<32x256xf32>
    %123 = arith.mulf %122, %121 : vector<32x256xf32>
    %124 = arith.mulf %111, %123 : vector<32x256xf32>
    %125 = arith.truncf %124 : vector<32x256xf32> to vector<32x256xbf16>
    %c0_49 = arith.constant 0 : index
    %c0_50 = arith.constant 0 : index
    %126 = vector.load %arg12[%c0_49, %c0_50] : memref<256x64xbf16, #tpu.memory_space<vmem>>, vector<256x64xbf16>
    %cst_51 = arith.constant dense<0.000000e+00> : vector<32x64xf32>
    %127 = tpu.matmul %125, %126, %cst_51 {dimension_numbers = #tpu.dot_dimension_numbers<[1], [0], [0], [1], [0, 0, 1, 1], [], []>} : vector<32x256xbf16>, vector<256x64xbf16>, vector<32x64xf32> -> vector<32x64xf32>
    %c0_52 = arith.constant 0 : index
    %c0_53 = arith.constant 0 : index
    %128 = vector.load %arg13[%c0_52, %c0_53] : memref<1x64xf32, #tpu.memory_space<vmem>>, vector<1x64xf32>
    %129 = vector.broadcast %128 : vector<1x64xf32> to vector<32x64xf32>
    %130 = arith.addf %127, %129 : vector<32x64xf32>
    %131 = arith.addf %130, %81 : vector<32x64xf32>
    %132 = vector.shape_cast %131 : vector<32x64xf32> to vector<4x8x64xf32>
    %133 = arith.truncf %132 : vector<4x8x64xf32> to vector<4x8x64xbf16>
    %c0_54 = arith.constant 0 : index
    %c0_55 = arith.constant 0 : index
    %c0_56 = arith.constant 0 : index
    %134 = vector.load %arg14[%c0_54, %c0_55, %c0_56] : memref<4x8x64xbf16, #tpu.memory_space<vmem>>, vector<4x8x64xbf16>
    tpu.vector_store %arg14[%c0_54, %c0_55, %c0_56], %133 {strides = array<i32>} : memref<4x8x64xbf16, #tpu.memory_space<vmem>>, vector<4x8x64xbf16>,
    return
  }
  func.func @transform_0(%arg0: i32) -> (i32, i32, i32) {
    %c0_i32 = arith.constant 0 : i32
    %c0_i32_0 = arith.constant 0 : i32
    %c0_i32_1 = arith.constant 0 : i32
    return %arg0, %c0_i32, %c0_i32_0 : i32, i32, i32
  }
  func.func @transform_1(%arg0: i32) -> (i32, i32) {
    %c0_i32 = arith.constant 0 : i32
    %c0_i32_0 = arith.constant 0 : i32
    %c0_i32_1 = arith.constant 0 : i32
    return %c0_i32, %c0_i32_0 : i32, i32
  }
  func.func @transform_2(%arg0: i32) -> (i32, i32) {
    %c0_i32 = arith.constant 0 : i32
    %c0_i32_0 = arith.constant 0 : i32
    %c0_i32_1 = arith.constant 0 : i32
    return %c0_i32, %c0_i32_0 : i32, i32
  }
  func.func @transform_3(%arg0: i32) -> (i32, i32) {
    %c0_i32 = arith.constant 0 : i32
    %c0_i32_0 = arith.constant 0 : i32
    %c0_i32_1 = arith.constant 0 : i32
    return %c0_i32, %c0_i32_0 : i32, i32
  }
  func.func @transform_4(%arg0: i32) -> (i32, i32) {
    %c0_i32 = arith.constant 0 : i32
    %c0_i32_0 = arith.constant 0 : i32
    %c0_i32_1 = arith.constant 0 : i32
    return %c0_i32, %c0_i32_0 : i32, i32
  }
  func.func @transform_5(%arg0: i32) -> (i32, i32) {
    %c0_i32 = arith.constant 0 : i32
    %c0_i32_0 = arith.constant 0 : i32
    %c0_i32_1 = arith.constant 0 : i32
    return %c0_i32, %c0_i32_0 : i32, i32
  }
  func.func @transform_6(%arg0: i32) -> (i32, i32) {
    %c0_i32 = arith.constant 0 : i32
    %c0_i32_0 = arith.constant 0 : i32
    %c0_i32_1 = arith.constant 0 : i32
    return %c0_i32, %c0_i32_0 : i32, i32
  }
  func.func @transform_7(%arg0: i32) -> (i32, i32) {
    %c0_i32 = arith.constant 0 : i32
    %c0_i32_0 = arith.constant 0 : i32
    %c0_i32_1 = arith.constant 0 : i32
    return %c0_i32, %c0_i32_0 : i32, i32
  }
  func.func @transform_8(%arg0: i32) -> (i32, i32) {
    %c0_i32 = arith.constant 0 : i32
    %c0_i32_0 = arith.constant 0 : i32
    %c0_i32_1 = arith.constant 0 : i32
    return %c0_i32, %c0_i32_0 : i32, i32
  }
  func.func @transform_9(%arg0: i32) -> (i32, i32) {
    %c0_i32 = arith.constant 0 : i32
    %c0_i32_0 = arith.constant 0 : i32
    %c0_i32_1 = arith.constant 0 : i32
    return %c0_i32, %c0_i32_0 : i32, i32
  }
  func.func @transform_10(%arg0: i32) -> (i32, i32) {
    %c0_i32 = arith.constant 0 : i32
    %c0_i32_0 = arith.constant 0 : i32
    %c0_i32_1 = arith.constant 0 : i32
    return %c0_i32, %c0_i32_0 : i32, i32
  }
  func.func @transform_11(%arg0: i32) -> (i32, i32) {
    %c0_i32 = arith.constant 0 : i32
    %c0_i32_0 = arith.constant 0 : i32
    %c0_i32_1 = arith.constant 0 : i32
    return %c0_i32, %c0_i32_0 : i32, i32
  }
  func.func @transform_12(%arg0: i32) -> (i32, i32) {
    %c0_i32 = arith.constant 0 : i32
    %c0_i32_0 = arith.constant 0 : i32
    %c0_i32_1 = arith.constant 0 : i32
    return %c0_i32, %c0_i32_0 : i32, i32
  }
  func.func @transform_13(%arg0: i32) -> (i32, i32, i32) {
    %c0_i32 = arith.constant 0 : i32
    %c0_i32_0 = arith.constant 0 : i32
    %c0_i32_1 = arith.constant 0 : i32
    return %arg0, %c0_i32, %c0_i32_0 : i32, i32, i32
  }
}

module attributes {stable_mosaic.version = 11 : i64} {
  func.func @_ln_linear_kernel(%arg0: i32, %arg1: memref<16x256xbf16, #tpu.memory_space<vmem>>, %arg2: memref<1x256xf32, #tpu.memory_space<vmem>>, %arg3: memref<1x256xf32, #tpu.memory_space<vmem>>, %arg4: memref<256x128xbf16, #tpu.memory_space<vmem>>, %arg5: memref<1x128xf32, #tpu.memory_space<vmem>>, %arg6: memref<16x128xbf16, #tpu.memory_space<vmem>>) attributes {dimension_semantics = [#tpu.dimension_semantics<parallel>], iteration_bounds = array<i64: 1>, scalar_prefetch = 0 : i64, scratch_operands = 0 : i64, tpu.core_type = #tpu.core_type<tc>, window_params = [{transform_indices = @transform_0, window_bounds = array<i64: 16, 256>}, {pipeline_mode = #tpu.pipeline_mode<synchronous>, transform_indices = @transform_1, window_bounds = array<i64: 1, 256>}, {pipeline_mode = #tpu.pipeline_mode<synchronous>, transform_indices = @transform_2, window_bounds = array<i64: 1, 256>}, {pipeline_mode = #tpu.pipeline_mode<synchronous>, transform_indices = @transform_3, window_bounds = array<i64: 256, 128>}, {pipeline_mode = #tpu.pipeline_mode<synchronous>, transform_indices = @transform_4, window_bounds = array<i64: 1, 128>}, {transform_indices = @transform_5, window_bounds = array<i64: 16, 128>}]} {
    %c0 = arith.constant 0 : index
    %c0_0 = arith.constant 0 : index
    %0 = vector.load %arg1[%c0, %c0_0] : memref<16x256xbf16, #tpu.memory_space<vmem>>, vector<16x256xbf16>
    %1 = arith.extf %0 : vector<16x256xbf16> to vector<16x256xf32>
    %c0_1 = arith.constant 0 : index
    %c0_2 = arith.constant 0 : index
    %2 = vector.load %arg2[%c0_1, %c0_2] : memref<1x256xf32, #tpu.memory_space<vmem>>, vector<1x256xf32>
    %c0_3 = arith.constant 0 : index
    %c0_4 = arith.constant 0 : index
    %3 = vector.load %arg3[%c0_3, %c0_4] : memref<1x256xf32, #tpu.memory_space<vmem>>, vector<1x256xf32>
    %cst = arith.constant dense<0.000000e+00> : vector<16xf32>
    %4 = vector.multi_reduction <add>, %1, %cst [1] : vector<16x256xf32> to vector<16xf32>
    %5 = vector.shape_cast %4 : vector<16xf32> to vector<16x1xf32>
    %cst_5 = arith.constant 2.560000e+02 : f32
    %6 = vector.broadcast %cst_5 : f32 to vector<16x1xf32>
    %7 = arith.divf %5, %6 : vector<16x1xf32>
    %8 = vector.broadcast %7 : vector<16x1xf32> to vector<16x256xf32>
    %9 = arith.subf %1, %8 : vector<16x256xf32>
    %10 = arith.mulf %9, %9 : vector<16x256xf32>
    %cst_6 = arith.constant dense<0.000000e+00> : vector<16xf32>
    %11 = vector.multi_reduction <add>, %10, %cst_6 [1] : vector<16x256xf32> to vector<16xf32>
    %12 = vector.shape_cast %11 : vector<16xf32> to vector<16x1xf32>
    %cst_7 = arith.constant 2.560000e+02 : f32
    %13 = vector.broadcast %cst_7 : f32 to vector<16x1xf32>
    %14 = arith.divf %12, %13 : vector<16x1xf32>
    %15 = vector.broadcast %7 : vector<16x1xf32> to vector<16x256xf32>
    %16 = arith.subf %1, %15 : vector<16x256xf32>
    %cst_8 = arith.constant 9.99999974E-6 : f32
    %17 = vector.broadcast %cst_8 : f32 to vector<16x1xf32>
    %18 = arith.addf %14, %17 : vector<16x1xf32>
    %19 = math.rsqrt %18 : vector<16x1xf32>
    %20 = vector.broadcast %19 : vector<16x1xf32> to vector<16x256xf32>
    %21 = arith.mulf %16, %20 : vector<16x256xf32>
    %22 = vector.broadcast %2 : vector<1x256xf32> to vector<16x256xf32>
    %23 = arith.mulf %21, %22 : vector<16x256xf32>
    %24 = vector.broadcast %3 : vector<1x256xf32> to vector<16x256xf32>
    %25 = arith.addf %23, %24 : vector<16x256xf32>
    %26 = arith.truncf %25 : vector<16x256xf32> to vector<16x256xbf16>
    %c0_9 = arith.constant 0 : index
    %c0_10 = arith.constant 0 : index
    %27 = vector.load %arg4[%c0_9, %c0_10] : memref<256x128xbf16, #tpu.memory_space<vmem>>, vector<256x128xbf16>
    %cst_11 = arith.constant dense<0.000000e+00> : vector<16x128xf32>
    %28 = tpu.matmul %26, %27, %cst_11 {dimension_numbers = #tpu.dot_dimension_numbers<[1], [0], [0], [1], [0, 0, 1, 1], [], []>} : vector<16x256xbf16>, vector<256x128xbf16>, vector<16x128xf32> -> vector<16x128xf32>
    %c0_12 = arith.constant 0 : index
    %c0_13 = arith.constant 0 : index
    %29 = vector.load %arg5[%c0_12, %c0_13] : memref<1x128xf32, #tpu.memory_space<vmem>>, vector<1x128xf32>
    %30 = vector.broadcast %29 : vector<1x128xf32> to vector<16x128xf32>
    %31 = arith.addf %28, %30 : vector<16x128xf32>
    %32 = arith.truncf %31 : vector<16x128xf32> to vector<16x128xbf16>
    %c0_14 = arith.constant 0 : index
    %c0_15 = arith.constant 0 : index
    %33 = vector.load %arg6[%c0_14, %c0_15] : memref<16x128xbf16, #tpu.memory_space<vmem>>, vector<16x128xbf16>
    tpu.vector_store %arg6[%c0_14, %c0_15], %32 {strides = array<i32>} : memref<16x128xbf16, #tpu.memory_space<vmem>>, vector<16x128xbf16>,
    return
  }
  func.func @transform_0(%arg0: i32) -> (i32, i32) {
    %c0_i32 = arith.constant 0 : i32
    %c0_i32_0 = arith.constant 0 : i32
    return %arg0, %c0_i32 : i32, i32
  }
  func.func @transform_1(%arg0: i32) -> (i32, i32) {
    %c0_i32 = arith.constant 0 : i32
    %c0_i32_0 = arith.constant 0 : i32
    %c0_i32_1 = arith.constant 0 : i32
    return %c0_i32, %c0_i32_0 : i32, i32
  }
  func.func @transform_2(%arg0: i32) -> (i32, i32) {
    %c0_i32 = arith.constant 0 : i32
    %c0_i32_0 = arith.constant 0 : i32
    %c0_i32_1 = arith.constant 0 : i32
    return %c0_i32, %c0_i32_0 : i32, i32
  }
  func.func @transform_3(%arg0: i32) -> (i32, i32) {
    %c0_i32 = arith.constant 0 : i32
    %c0_i32_0 = arith.constant 0 : i32
    %c0_i32_1 = arith.constant 0 : i32
    return %c0_i32, %c0_i32_0 : i32, i32
  }
  func.func @transform_4(%arg0: i32) -> (i32, i32) {
    %c0_i32 = arith.constant 0 : i32
    %c0_i32_0 = arith.constant 0 : i32
    %c0_i32_1 = arith.constant 0 : i32
    return %c0_i32, %c0_i32_0 : i32, i32
  }
  func.func @transform_5(%arg0: i32) -> (i32, i32) {
    %c0_i32 = arith.constant 0 : i32
    %c0_i32_0 = arith.constant 0 : i32
    return %arg0, %c0_i32 : i32, i32
  }
}

module attributes {stable_mosaic.version = 11 : i64} {
  func.func @_fused_block_kernel(%arg0: i32, %arg1: memref<1x8x128xbf16, #tpu.memory_space<vmem>>, %arg2: memref<1x128xf32, #tpu.memory_space<vmem>>, %arg3: memref<1x128xf32, #tpu.memory_space<vmem>>, %arg4: memref<128x384xbf16, #tpu.memory_space<vmem>>, %arg5: memref<1x384xf32, #tpu.memory_space<vmem>>, %arg6: memref<128x128xbf16, #tpu.memory_space<vmem>>, %arg7: memref<1x128xf32, #tpu.memory_space<vmem>>, %arg8: memref<1x128xf32, #tpu.memory_space<vmem>>, %arg9: memref<1x128xf32, #tpu.memory_space<vmem>>, %arg10: memref<128x512xbf16, #tpu.memory_space<vmem>>, %arg11: memref<1x512xf32, #tpu.memory_space<vmem>>, %arg12: memref<512x128xbf16, #tpu.memory_space<vmem>>, %arg13: memref<1x128xf32, #tpu.memory_space<vmem>>, %arg14: memref<1x8x128xbf16, #tpu.memory_space<vmem>>) attributes {dimension_semantics = [#tpu.dimension_semantics<parallel>], iteration_bounds = array<i64: 2>, scalar_prefetch = 0 : i64, scratch_operands = 0 : i64, tpu.core_type = #tpu.core_type<tc>, window_params = [{transform_indices = @transform_0, window_bounds = array<i64: 1, 8, 128>}, {pipeline_mode = #tpu.pipeline_mode<synchronous>, transform_indices = @transform_1, window_bounds = array<i64: 1, 128>}, {pipeline_mode = #tpu.pipeline_mode<synchronous>, transform_indices = @transform_2, window_bounds = array<i64: 1, 128>}, {pipeline_mode = #tpu.pipeline_mode<synchronous>, transform_indices = @transform_3, window_bounds = array<i64: 128, 384>}, {pipeline_mode = #tpu.pipeline_mode<synchronous>, transform_indices = @transform_4, window_bounds = array<i64: 1, 384>}, {pipeline_mode = #tpu.pipeline_mode<synchronous>, transform_indices = @transform_5, window_bounds = array<i64: 128, 128>}, {pipeline_mode = #tpu.pipeline_mode<synchronous>, transform_indices = @transform_6, window_bounds = array<i64: 1, 128>}, {pipeline_mode = #tpu.pipeline_mode<synchronous>, transform_indices = @transform_7, window_bounds = array<i64: 1, 128>}, {pipeline_mode = #tpu.pipeline_mode<synchronous>, transform_indices = @transform_8, window_bounds = array<i64: 1, 128>}, {pipeline_mode = #tpu.pipeline_mode<synchronous>, transform_indices = @transform_9, window_bounds = array<i64: 128, 512>}, {pipeline_mode = #tpu.pipeline_mode<synchronous>, transform_indices = @transform_10, window_bounds = array<i64: 1, 512>}, {pipeline_mode = #tpu.pipeline_mode<synchronous>, transform_indices = @transform_11, window_bounds = array<i64: 512, 128>}, {pipeline_mode = #tpu.pipeline_mode<synchronous>, transform_indices = @transform_12, window_bounds = array<i64: 1, 128>}, {transform_indices = @transform_13, window_bounds = array<i64: 1, 8, 128>}]} {
    %c0 = arith.constant 0 : index
    %c0_0 = arith.constant 0 : index
    %c0_1 = arith.constant 0 : index
    %0 = vector.load %arg1[%c0, %c0_0, %c0_1] : memref<1x8x128xbf16, #tpu.memory_space<vmem>>, vector<1x8x128xbf16>
    %1 = arith.extf %0 : vector<1x8x128xbf16> to vector<1x8x128xf32>
    %2 = vector.shape_cast %1 : vector<1x8x128xf32> to vector<8x128xf32>
    %c0_2 = arith.constant 0 : index
    %c0_3 = arith.constant 0 : index
    %3 = vector.load %arg2[%c0_2, %c0_3] : memref<1x128xf32, #tpu.memory_space<vmem>>, vector<1x128xf32>
    %c0_4 = arith.constant 0 : index
    %c0_5 = arith.constant 0 : index
    %4 = vector.load %arg3[%c0_4, %c0_5] : memref<1x128xf32, #tpu.memory_space<vmem>>, vector<1x128xf32>
    %cst = arith.constant dense<0.000000e+00> : vector<8xf32>
    %5 = vector.multi_reduction <add>, %2, %cst [1] : vector<8x128xf32> to vector<8xf32>
    %6 = vector.shape_cast %5 : vector<8xf32> to vector<8x1xf32>
    %cst_6 = arith.constant 1.280000e+02 : f32
    %7 = vector.broadcast %cst_6 : f32 to vector<8x1xf32>
    %8 = arith.divf %6, %7 : vector<8x1xf32>
    %9 = vector.broadcast %8 : vector<8x1xf32> to vector<8x128xf32>
    %10 = arith.subf %2, %9 : vector<8x128xf32>
    %11 = arith.mulf %10, %10 : vector<8x128xf32>
    %cst_7 = arith.constant dense<0.000000e+00> : vector<8xf32>
    %12 = vector.multi_reduction <add>, %11, %cst_7 [1] : vector<8x128xf32> to vector<8xf32>
    %13 = vector.shape_cast %12 : vector<8xf32> to vector<8x1xf32>
    %cst_8 = arith.constant 1.280000e+02 : f32
    %14 = vector.broadcast %cst_8 : f32 to vector<8x1xf32>
    %15 = arith.divf %13, %14 : vector<8x1xf32>
    %16 = vector.broadcast %8 : vector<8x1xf32> to vector<8x128xf32>
    %17 = arith.subf %2, %16 : vector<8x128xf32>
    %cst_9 = arith.constant 9.99999974E-6 : f32
    %18 = vector.broadcast %cst_9 : f32 to vector<8x1xf32>
    %19 = arith.addf %15, %18 : vector<8x1xf32>
    %20 = math.rsqrt %19 : vector<8x1xf32>
    %21 = vector.broadcast %20 : vector<8x1xf32> to vector<8x128xf32>
    %22 = arith.mulf %17, %21 : vector<8x128xf32>
    %23 = vector.broadcast %3 : vector<1x128xf32> to vector<8x128xf32>
    %24 = arith.mulf %22, %23 : vector<8x128xf32>
    %25 = vector.broadcast %4 : vector<1x128xf32> to vector<8x128xf32>
    %26 = arith.addf %24, %25 : vector<8x128xf32>
    %27 = arith.truncf %26 : vector<8x128xf32> to vector<8x128xbf16>
    %c0_10 = arith.constant 0 : index
    %c0_11 = arith.constant 0 : index
    %28 = vector.load %arg4[%c0_10, %c0_11] : memref<128x384xbf16, #tpu.memory_space<vmem>>, vector<128x384xbf16>
    %cst_12 = arith.constant dense<0.000000e+00> : vector<8x384xf32>
    %29 = tpu.matmul %27, %28, %cst_12 {dimension_numbers = #tpu.dot_dimension_numbers<[1], [0], [0], [1], [0, 0, 1, 1], [], []>} : vector<8x128xbf16>, vector<128x384xbf16>, vector<8x384xf32> -> vector<8x384xf32>
    %c0_13 = arith.constant 0 : index
    %c0_14 = arith.constant 0 : index
    %30 = vector.load %arg5[%c0_13, %c0_14] : memref<1x384xf32, #tpu.memory_space<vmem>>, vector<1x384xf32>
    %31 = vector.broadcast %30 : vector<1x384xf32> to vector<8x384xf32>
    %32 = arith.addf %29, %31 : vector<8x384xf32>
    %33 = vector.shape_cast %32 : vector<8x384xf32> to vector<1x8x384xf32>
    %c0_15 = arith.constant 0 : index
    %c0_16 = arith.constant 0 : index
    %34 = vector.load %arg6[%c0_15, %c0_16] : memref<128x128xbf16, #tpu.memory_space<vmem>>, vector<128x128xbf16>
    %c0_17 = arith.constant 0 : index
    %c0_18 = arith.constant 0 : index
    %35 = vector.load %arg7[%c0_17, %c0_18] : memref<1x128xf32, #tpu.memory_space<vmem>>, vector<1x128xf32>
    %36 = vector.broadcast %35 : vector<1x128xf32> to vector<8x128xf32>
    %37 = arith.addf %2, %36 : vector<8x128xf32>
    %38 = vector.extract_strided_slice %33 {offsets = [0, 0, 0], sizes = [1, 8, 64], strides = [1, 1, 1]} : vector<1x8x384xf32> to vector<1x8x64xf32>
    %cst_19 = arith.constant 1.250000e-01 : f32
    %39 = vector.broadcast %cst_19 : f32 to vector<1x8x64xf32>
    %40 = arith.mulf %38, %39 : vector<1x8x64xf32>
    %41 = vector.extract_strided_slice %33 {offsets = [0, 0, 128], sizes = [1, 8, 64], strides = [1, 1, 1]} : vector<1x8x384xf32> to vector<1x8x64xf32>
    %42 = vector.extract_strided_slice %33 {offsets = [0, 0, 256], sizes = [1, 8, 64], strides = [1, 1, 1]} : vector<1x8x384xf32> to vector<1x8x64xf32>
    "tpu.trace_start"() <{level = 10 : i32, message = "wtd,wsd->wts"}> : () -> ()
    %cst_20 = arith.constant dense<0.000000e+00> : vector<1x8x8xf32>
    %43 = tpu.matmul %40, %41, %cst_20 {dimension_numbers = #tpu.dot_dimension_numbers<[2], [2], [1], [1], [0, 0, 0, 1, 1, 1], [0], [0]>} : vector<1x8x64xf32>, vector<1x8x64xf32>, vector<1x8x8xf32> -> vector<1x8x8xf32>
    "tpu.trace_stop"() : () -> ()
    %cst_21 = arith.constant dense<0xFF800000> : vector<1x8xf32>
    %44 = vector.multi_reduction <maximumf>, %43, %cst_21 [2] : vector<1x8x8xf32> to vector<1x8xf32>
    %45 = vector.shape_cast %44 : vector<1x8xf32> to vector<1x8x1xf32>
    %46 = vector.broadcast %45 : vector<1x8x1xf32> to vector<1x8x8xf32>
    %47 = arith.subf %43, %46 : vector<1x8x8xf32>
    %48 = math.exp %47 : vector<1x8x8xf32>
    %cst_22 = arith.constant dense<0.000000e+00> : vector<1x8xf32>
    %49 = vector.multi_reduction <add>, %48, %cst_22 [2] : vector<1x8x8xf32> to vector<1x8xf32>
    %50 = vector.shape_cast %49 : vector<1x8xf32> to vector<1x8x1xf32>
    %51 = tpu.reciprocal %50 {approx = true} : vector<1x8x1xf32> -> vector<1x8x1xf32>
    %52 = vector.broadcast %51 : vector<1x8x1xf32> to vector<1x8x8xf32>
    %53 = arith.mulf %48, %52 : vector<1x8x8xf32>
    "tpu.trace_start"() <{level = 10 : i32, message = "wts,wsd->wtd"}> : () -> ()
    %cst_23 = arith.constant dense<0.000000e+00> : vector<1x8x64xf32>
    %54 = tpu.matmul %53, %42, %cst_23 {dimension_numbers = #tpu.dot_dimension_numbers<[2], [1], [1], [2], [0, 0, 0, 1, 1, 2], [0], [0]>} : vector<1x8x8xf32>, vector<1x8x64xf32>, vector<1x8x64xf32> -> vector<1x8x64xf32>
    "tpu.trace_stop"() : () -> ()
    %55 = vector.shape_cast %54 : vector<1x8x64xf32> to vector<8x64xf32>
    %56 = arith.truncf %55 : vector<8x64xf32> to vector<8x64xbf16>
    %57 = vector.extract_strided_slice %34 {offsets = [0, 0], sizes = [64, 128], strides = [1, 1]} : vector<128x128xbf16> to vector<64x128xbf16>
    %cst_24 = arith.constant dense<0.000000e+00> : vector<8x128xf32>
    %58 = tpu.matmul %56, %57, %cst_24 {dimension_numbers = #tpu.dot_dimension_numbers<[1], [0], [0], [1], [0, 0, 1, 1], [], []>} : vector<8x64xbf16>, vector<64x128xbf16>, vector<8x128xf32> -> vector<8x128xf32>
    %59 = arith.addf %37, %58 : vector<8x128xf32>
    %60 = vector.extract_strided_slice %33 {offsets = [0, 0, 64], sizes = [1, 8, 64], strides = [1, 1, 1]} : vector<1x8x384xf32> to vector<1x8x64xf32>
    %cst_25 = arith.constant 1.250000e-01 : f32
    %61 = vector.broadcast %cst_25 : f32 to vector<1x8x64xf32>
    %62 = arith.mulf %60, %61 : vector<1x8x64xf32>
    %63 = vector.extract_strided_slice %33 {offsets = [0, 0, 192], sizes = [1, 8, 64], strides = [1, 1, 1]} : vector<1x8x384xf32> to vector<1x8x64xf32>
    %64 = vector.extract_strided_slice %33 {offsets = [0, 0, 320], sizes = [1, 8, 64], strides = [1, 1, 1]} : vector<1x8x384xf32> to vector<1x8x64xf32>
    "tpu.trace_start"() <{level = 10 : i32, message = "wtd,wsd->wts"}> : () -> ()
    %cst_26 = arith.constant dense<0.000000e+00> : vector<1x8x8xf32>
    %65 = tpu.matmul %62, %63, %cst_26 {dimension_numbers = #tpu.dot_dimension_numbers<[2], [2], [1], [1], [0, 0, 0, 1, 1, 1], [0], [0]>} : vector<1x8x64xf32>, vector<1x8x64xf32>, vector<1x8x8xf32> -> vector<1x8x8xf32>
    "tpu.trace_stop"() : () -> ()
    %cst_27 = arith.constant dense<0xFF800000> : vector<1x8xf32>
    %66 = vector.multi_reduction <maximumf>, %65, %cst_27 [2] : vector<1x8x8xf32> to vector<1x8xf32>
    %67 = vector.shape_cast %66 : vector<1x8xf32> to vector<1x8x1xf32>
    %68 = vector.broadcast %67 : vector<1x8x1xf32> to vector<1x8x8xf32>
    %69 = arith.subf %65, %68 : vector<1x8x8xf32>
    %70 = math.exp %69 : vector<1x8x8xf32>
    %cst_28 = arith.constant dense<0.000000e+00> : vector<1x8xf32>
    %71 = vector.multi_reduction <add>, %70, %cst_28 [2] : vector<1x8x8xf32> to vector<1x8xf32>
    %72 = vector.shape_cast %71 : vector<1x8xf32> to vector<1x8x1xf32>
    %73 = tpu.reciprocal %72 {approx = true} : vector<1x8x1xf32> -> vector<1x8x1xf32>
    %74 = vector.broadcast %73 : vector<1x8x1xf32> to vector<1x8x8xf32>
    %75 = arith.mulf %70, %74 : vector<1x8x8xf32>
    "tpu.trace_start"() <{level = 10 : i32, message = "wts,wsd->wtd"}> : () -> ()
    %cst_29 = arith.constant dense<0.000000e+00> : vector<1x8x64xf32>
    %76 = tpu.matmul %75, %64, %cst_29 {dimension_numbers = #tpu.dot_dimension_numbers<[2], [1], [1], [2], [0, 0, 0, 1, 1, 2], [0], [0]>} : vector<1x8x8xf32>, vector<1x8x64xf32>, vector<1x8x64xf32> -> vector<1x8x64xf32>
    "tpu.trace_stop"() : () -> ()
    %77 = vector.shape_cast %76 : vector<1x8x64xf32> to vector<8x64xf32>
    %78 = arith.truncf %77 : vector<8x64xf32> to vector<8x64xbf16>
    %79 = vector.extract_strided_slice %34 {offsets = [64, 0], sizes = [64, 128], strides = [1, 1]} : vector<128x128xbf16> to vector<64x128xbf16>
    %cst_30 = arith.constant dense<0.000000e+00> : vector<8x128xf32>
    %80 = tpu.matmul %78, %79, %cst_30 {dimension_numbers = #tpu.dot_dimension_numbers<[1], [0], [0], [1], [0, 0, 1, 1], [], []>} : vector<8x64xbf16>, vector<64x128xbf16>, vector<8x128xf32> -> vector<8x128xf32>
    %81 = arith.addf %59, %80 : vector<8x128xf32>
    %c0_31 = arith.constant 0 : index
    %c0_32 = arith.constant 0 : index
    %82 = vector.load %arg8[%c0_31, %c0_32] : memref<1x128xf32, #tpu.memory_space<vmem>>, vector<1x128xf32>
    %c0_33 = arith.constant 0 : index
    %c0_34 = arith.constant 0 : index
    %83 = vector.load %arg9[%c0_33, %c0_34] : memref<1x128xf32, #tpu.memory_space<vmem>>, vector<1x128xf32>
    %cst_35 = arith.constant dense<0.000000e+00> : vector<8xf32>
    %84 = vector.multi_reduction <add>, %81, %cst_35 [1] : vector<8x128xf32> to vector<8xf32>
    %85 = vector.shape_cast %84 : vector<8xf32> to vector<8x1xf32>
    %cst_36 = arith.constant 1.280000e+02 : f32
    %86 = vector.broadcast %cst_36 : f32 to vector<8x1xf32>
    %87 = arith.divf %85, %86 : vector<8x1xf32>
    %88 = vector.broadcast %87 : vector<8x1xf32> to vector<8x128xf32>
    %89 = arith.subf %81, %88 : vector<8x128xf32>
    %90 = arith.mulf %89, %89 : vector<8x128xf32>
    %cst_37 = arith.constant dense<0.000000e+00> : vector<8xf32>
    %91 = vector.multi_reduction <add>, %90, %cst_37 [1] : vector<8x128xf32> to vector<8xf32>
    %92 = vector.shape_cast %91 : vector<8xf32> to vector<8x1xf32>
    %cst_38 = arith.constant 1.280000e+02 : f32
    %93 = vector.broadcast %cst_38 : f32 to vector<8x1xf32>
    %94 = arith.divf %92, %93 : vector<8x1xf32>
    %95 = vector.broadcast %87 : vector<8x1xf32> to vector<8x128xf32>
    %96 = arith.subf %81, %95 : vector<8x128xf32>
    %cst_39 = arith.constant 9.99999974E-6 : f32
    %97 = vector.broadcast %cst_39 : f32 to vector<8x1xf32>
    %98 = arith.addf %94, %97 : vector<8x1xf32>
    %99 = math.rsqrt %98 : vector<8x1xf32>
    %100 = vector.broadcast %99 : vector<8x1xf32> to vector<8x128xf32>
    %101 = arith.mulf %96, %100 : vector<8x128xf32>
    %102 = vector.broadcast %82 : vector<1x128xf32> to vector<8x128xf32>
    %103 = arith.mulf %101, %102 : vector<8x128xf32>
    %104 = vector.broadcast %83 : vector<1x128xf32> to vector<8x128xf32>
    %105 = arith.addf %103, %104 : vector<8x128xf32>
    %106 = arith.truncf %105 : vector<8x128xf32> to vector<8x128xbf16>
    %c0_40 = arith.constant 0 : index
    %c0_41 = arith.constant 0 : index
    %107 = vector.load %arg10[%c0_40, %c0_41] : memref<128x512xbf16, #tpu.memory_space<vmem>>, vector<128x512xbf16>
    %cst_42 = arith.constant dense<0.000000e+00> : vector<8x512xf32>
    %108 = tpu.matmul %106, %107, %cst_42 {dimension_numbers = #tpu.dot_dimension_numbers<[1], [0], [0], [1], [0, 0, 1, 1], [], []>} : vector<8x128xbf16>, vector<128x512xbf16>, vector<8x512xf32> -> vector<8x512xf32>
    %c0_43 = arith.constant 0 : index
    %c0_44 = arith.constant 0 : index
    %109 = vector.load %arg11[%c0_43, %c0_44] : memref<1x512xf32, #tpu.memory_space<vmem>>, vector<1x512xf32>
    %110 = vector.broadcast %109 : vector<1x512xf32> to vector<8x512xf32>
    %111 = arith.addf %108, %110 : vector<8x512xf32>
    %112 = arith.mulf %111, %111 : vector<8x512xf32>
    %113 = arith.mulf %111, %112 : vector<8x512xf32>
    %cst_45 = arith.constant 4.471500e-02 : f32
    %114 = vector.broadcast %cst_45 : f32 to vector<8x512xf32>
    %115 = arith.mulf %114, %113 : vector<8x512xf32>
    %116 = arith.addf %111, %115 : vector<8x512xf32>
    %cst_46 = arith.constant 0.797884583 : f32
    %117 = vector.broadcast %cst_46 : f32 to vector<8x512xf32>
    %118 = arith.mulf %117, %116 : vector<8x512xf32>
    %119 = math.tanh %118 : vector<8x512xf32>
    %cst_47 = arith.constant 1.000000e+00 : f32
    %120 = vector.broadcast %cst_47 : f32 to vector<8x512xf32>
    %121 = arith.addf %120, %119 : vector<8x512xf32>
    %cst_48 = arith.constant 5.000000e-01 : f32
    %122 = vector.broadcast %cst_48 : f32 to vector<8x512xf32>
    %123 = arith.mulf %122, %121 : vector<8x512xf32>
    %124 = arith.mulf %111, %123 : vector<8x512xf32>
    %125 = arith.truncf %124 : vector<8x512xf32> to vector<8x512xbf16>
    %c0_49 = arith.constant 0 : index
    %c0_50 = arith.constant 0 : index
    %126 = vector.load %arg12[%c0_49, %c0_50] : memref<512x128xbf16, #tpu.memory_space<vmem>>, vector<512x128xbf16>
    %cst_51 = arith.constant dense<0.000000e+00> : vector<8x128xf32>
    %127 = tpu.matmul %125, %126, %cst_51 {dimension_numbers = #tpu.dot_dimension_numbers<[1], [0], [0], [1], [0, 0, 1, 1], [], []>} : vector<8x512xbf16>, vector<512x128xbf16>, vector<8x128xf32> -> vector<8x128xf32>
    %c0_52 = arith.constant 0 : index
    %c0_53 = arith.constant 0 : index
    %128 = vector.load %arg13[%c0_52, %c0_53] : memref<1x128xf32, #tpu.memory_space<vmem>>, vector<1x128xf32>
    %129 = vector.broadcast %128 : vector<1x128xf32> to vector<8x128xf32>
    %130 = arith.addf %127, %129 : vector<8x128xf32>
    %131 = arith.addf %130, %81 : vector<8x128xf32>
    %132 = vector.shape_cast %131 : vector<8x128xf32> to vector<1x8x128xf32>
    %133 = arith.truncf %132 : vector<1x8x128xf32> to vector<1x8x128xbf16>
    %c0_54 = arith.constant 0 : index
    %c0_55 = arith.constant 0 : index
    %c0_56 = arith.constant 0 : index
    %134 = vector.load %arg14[%c0_54, %c0_55, %c0_56] : memref<1x8x128xbf16, #tpu.memory_space<vmem>>, vector<1x8x128xbf16>
    tpu.vector_store %arg14[%c0_54, %c0_55, %c0_56], %133 {strides = array<i32>} : memref<1x8x128xbf16, #tpu.memory_space<vmem>>, vector<1x8x128xbf16>,
    return
  }
  func.func @transform_0(%arg0: i32) -> (i32, i32, i32) {
    %c0_i32 = arith.constant 0 : i32
    %c0_i32_0 = arith.constant 0 : i32
    %c0_i32_1 = arith.constant 0 : i32
    return %arg0, %c0_i32, %c0_i32_0 : i32, i32, i32
  }
  func.func @transform_1(%arg0: i32) -> (i32, i32) {
    %c0_i32 = arith.constant 0 : i32
    %c0_i32_0 = arith.constant 0 : i32
    %c0_i32_1 = arith.constant 0 : i32
    return %c0_i32, %c0_i32_0 : i32, i32
  }
  func.func @transform_2(%arg0: i32) -> (i32, i32) {
    %c0_i32 = arith.constant 0 : i32
    %c0_i32_0 = arith.constant 0 : i32
    %c0_i32_1 = arith.constant 0 : i32
    return %c0_i32, %c0_i32_0 : i32, i32
  }
  func.func @transform_3(%arg0: i32) -> (i32, i32) {
    %c0_i32 = arith.constant 0 : i32
    %c0_i32_0 = arith.constant 0 : i32
    %c0_i32_1 = arith.constant 0 : i32
    return %c0_i32, %c0_i32_0 : i32, i32
  }
  func.func @transform_4(%arg0: i32) -> (i32, i32) {
    %c0_i32 = arith.constant 0 : i32
    %c0_i32_0 = arith.constant 0 : i32
    %c0_i32_1 = arith.constant 0 : i32
    return %c0_i32, %c0_i32_0 : i32, i32
  }
  func.func @transform_5(%arg0: i32) -> (i32, i32) {
    %c0_i32 = arith.constant 0 : i32
    %c0_i32_0 = arith.constant 0 : i32
    %c0_i32_1 = arith.constant 0 : i32
    return %c0_i32, %c0_i32_0 : i32, i32
  }
  func.func @transform_6(%arg0: i32) -> (i32, i32) {
    %c0_i32 = arith.constant 0 : i32
    %c0_i32_0 = arith.constant 0 : i32
    %c0_i32_1 = arith.constant 0 : i32
    return %c0_i32, %c0_i32_0 : i32, i32
  }
  func.func @transform_7(%arg0: i32) -> (i32, i32) {
    %c0_i32 = arith.constant 0 : i32
    %c0_i32_0 = arith.constant 0 : i32
    %c0_i32_1 = arith.constant 0 : i32
    return %c0_i32, %c0_i32_0 : i32, i32
  }
  func.func @transform_8(%arg0: i32) -> (i32, i32) {
    %c0_i32 = arith.constant 0 : i32
    %c0_i32_0 = arith.constant 0 : i32
    %c0_i32_1 = arith.constant 0 : i32
    return %c0_i32, %c0_i32_0 : i32, i32
  }
  func.func @transform_9(%arg0: i32) -> (i32, i32) {
    %c0_i32 = arith.constant 0 : i32
    %c0_i32_0 = arith.constant 0 : i32
    %c0_i32_1 = arith.constant 0 : i32
    return %c0_i32, %c0_i32_0 : i32, i32
  }
  func.func @transform_10(%arg0: i32) -> (i32, i32) {
    %c0_i32 = arith.constant 0 : i32
    %c0_i32_0 = arith.constant 0 : i32
    %c0_i32_1 = arith.constant 0 : i32
    return %c0_i32, %c0_i32_0 : i32, i32
  }
  func.func @transform_11(%arg0: i32) -> (i32, i32) {
    %c0_i32 = arith.constant 0 : i32
    %c0_i32_0 = arith.constant 0 : i32
    %c0_i32_1 = arith.constant 0 : i32
    return %c0_i32, %c0_i32_0 : i32, i32
  }
  func.func @transform_12(%arg0: i32) -> (i32, i32) {
    %c0_i32 = arith.constant 0 : i32
    %c0_i32_0 = arith.constant 0 : i32
    %c0_i32_1 = arith.constant 0 : i32
    return %c0_i32, %c0_i32_0 : i32, i32
  }
  func.func @transform_13(%arg0: i32) -> (i32, i32, i32) {
    %c0_i32 = arith.constant 0 : i32
    %c0_i32_0 = arith.constant 0 : i32
    %c0_i32_1 = arith.constant 0 : i32
    return %arg0, %c0_i32, %c0_i32_0 : i32, i32, i32
  }
}

module attributes {stable_mosaic.version = 11 : i64} {
  func.func @_linear_kernel(%arg0: i32, %arg1: memref<16x128xbf16, #tpu.memory_space<vmem>>, %arg2: memref<128x128xbf16, #tpu.memory_space<vmem>>, %arg3: memref<1x128xf32, #tpu.memory_space<vmem>>, %arg4: memref<16x128xf32, #tpu.memory_space<vmem>>) attributes {dimension_semantics = [#tpu.dimension_semantics<parallel>], iteration_bounds = array<i64: 1>, scalar_prefetch = 0 : i64, scratch_operands = 0 : i64, tpu.core_type = #tpu.core_type<tc>, window_params = [{transform_indices = @transform_0, window_bounds = array<i64: 16, 128>}, {pipeline_mode = #tpu.pipeline_mode<synchronous>, transform_indices = @transform_1, window_bounds = array<i64: 128, 128>}, {pipeline_mode = #tpu.pipeline_mode<synchronous>, transform_indices = @transform_2, window_bounds = array<i64: 1, 128>}, {transform_indices = @transform_3, window_bounds = array<i64: 16, 128>}]} {
    %c0 = arith.constant 0 : index
    %c0_0 = arith.constant 0 : index
    %0 = vector.load %arg1[%c0, %c0_0] : memref<16x128xbf16, #tpu.memory_space<vmem>>, vector<16x128xbf16>
    %c0_1 = arith.constant 0 : index
    %c0_2 = arith.constant 0 : index
    %1 = vector.load %arg2[%c0_1, %c0_2] : memref<128x128xbf16, #tpu.memory_space<vmem>>, vector<128x128xbf16>
    %cst = arith.constant dense<0.000000e+00> : vector<16x128xf32>
    %2 = tpu.matmul %0, %1, %cst {dimension_numbers = #tpu.dot_dimension_numbers<[1], [0], [0], [1], [0, 0, 1, 1], [], []>} : vector<16x128xbf16>, vector<128x128xbf16>, vector<16x128xf32> -> vector<16x128xf32>
    %c0_3 = arith.constant 0 : index
    %c0_4 = arith.constant 0 : index
    %3 = vector.load %arg3[%c0_3, %c0_4] : memref<1x128xf32, #tpu.memory_space<vmem>>, vector<1x128xf32>
    %4 = vector.broadcast %3 : vector<1x128xf32> to vector<16x128xf32>
    %5 = arith.addf %2, %4 : vector<16x128xf32>
    %c0_5 = arith.constant 0 : index
    %c0_6 = arith.constant 0 : index
    %6 = vector.load %arg4[%c0_5, %c0_6] : memref<16x128xf32, #tpu.memory_space<vmem>>, vector<16x128xf32>
    tpu.vector_store %arg4[%c0_5, %c0_6], %5 {strides = array<i32>} : memref<16x128xf32, #tpu.memory_space<vmem>>, vector<16x128xf32>,
    return
  }
  func.func @transform_0(%arg0: i32) -> (i32, i32) {
    %c0_i32 = arith.constant 0 : i32
    %c0_i32_0 = arith.constant 0 : i32
    return %arg0, %c0_i32 : i32, i32
  }
  func.func @transform_1(%arg0: i32) -> (i32, i32) {
    %c0_i32 = arith.constant 0 : i32
    %c0_i32_0 = arith.constant 0 : i32
    %c0_i32_1 = arith.constant 0 : i32
    return %c0_i32, %c0_i32_0 : i32, i32
  }
  func.func @transform_2(%arg0: i32) -> (i32, i32) {
    %c0_i32 = arith.constant 0 : i32
    %c0_i32_0 = arith.constant 0 : i32
    %c0_i32_1 = arith.constant 0 : i32
    return %c0_i32, %c0_i32_0 : i32, i32
  }
  func.func @transform_3(%arg0: i32) -> (i32, i32) {
    %c0_i32 = arith.constant 0 : i32
    %c0_i32_0 = arith.constant 0 : i32
    return %arg0, %c0_i32 : i32, i32
  }
}

</mosaic_0001>

<llo_original>
// kernel: _lambda_.5
$region0: #{_lambda_.5}
  #allocation0 [shape = 'u32[]', space=smem, size = 0x4, offset = 0x4, fixed_abs, tag = 'smem constant byte address 0x4 - core index']
  #allocation1 [shape = 'u32[72,128]{1,0:T(1,128)}', space=vmem, size = 0x9000, scoped, tag = 'internal scratch']
  %s0 = inlined_call_operand.vmem [shape: f32[2,2,18,18], index: 0, kind: input, shape index: {}]
  %s1 = inlined_call_operand.vmem [shape: bf16[2,9,4], index: 1, kind: input, shape index: {}]
  %s2 = inlined_call_operand.vmem [shape: f32[2,1,4], index: 2, kind: input, shape index: {}]
  %s3 = inlined_call_operand.vmem [shape: bf16[2,2,16,16,4], index: 3, kind: output, shape index: {}]
  %s4 = sld [smem:[#allocation0]]
  $region45: #{_lambda_.5} parent=0
    _
  %s6 = ssub.s32 1, %s4
  %s7 = scalar_select 0, %s6, %s4
  loop: start=0, step=1, limit=6
  $region2: #{_lambda_.5} parent=0 // loop_pre_header
    _
  $region3: #{_lambda_.5} parent=0 // loop_header
    %s9 = sphi 0, %s13
    %p10 = scmp.ge.s32.totalorder %s9, 6
    %s16 = sphi 0, %s28
    %s17 = sphi 0, %s24
    %s18 = sphi 0, %s16
    %s19 = sphi 0, %s17
    %s20 = sphi 0, %s18
    %s21 = sphi 0, %s19
    %s33 = sphi 0, %s35
    %s36 = sphi 0, %s33
    %s37 = sphi 0, %s36
    %s53 = sphi 0, %s37
    %s59 = sphi 0, %s61
    %s62 = sphi 0, %s59
    %s63 = sphi 0, %s62
    %s79 = sphi 0, %s63
    %s85 = sphi 0, %s87
    %s88 = sphi 0, %s85
    %s89 = sphi 0, %s88
    %s105 = sphi 0, %s89
    %s113 = sphi 0, %s115
    %s116 = sphi 0, %s113
    %s117 = sphi 0, %s116
    %s133 = sphi 0, %s117
  $region4: #{_lambda_.5} parent=0 // loop_header_branch
    %12 = sbr.rel (%p10) target = $region8
  $region5: #{_lambda_.5} parent=0 // loop_body
    %s14 = ssub.s32 %s9, 1
    %s15 = ssub.s32 %s9, 2
    %s22 = sadd.s32 1, %s17
    %p23 = scmp.ge.s32.totalorder %s22, 2
    %s24 = scalar_select %p23, 0, %s22
    %s25 = sadd.s32 1, %s16
    %s26 = scalar_select %p23, %s25, %s16
    %p27 = scmp.ge.s32.totalorder %s26, 2
    %s28 = scalar_select %p27, 0, %s26
    %s29 = ssub.s32 %s17, %s24
    %s30 = ssub.s32 %s16, %s28
    %s31 = sor.u32 %s29, %s30
    %p32 = scmp.eq.s32.totalorder %s31, 0
    %s34 = sadd.s32 %s33, 1
    %s35 = scalar_select %p32, %s33, %s34
    %p38 = pneg %p32
    %p39 = scmp.eq.s32.totalorder %s9, 3
    %p40 = por %p38, %p39
    %p41 = scmp.ne.s32.totalorder %s33, %s36
    %p42 = scmp.eq.s32.totalorder %s9, 0
    %p43 = por %p41, %p42
    %p44 = scmp.ne.s32.totalorder %s33, %s36
    %p45 = scmp.eq.s32.totalorder %s14, 3
    %p46 = por %p44, %p45
    %p47 = scmp.ne.s32.totalorder %s36, %s37
    %p48 = scmp.eq.s32.totalorder %s14, 0
    %p49 = por %p47, %p48
    %p50 = scmp.ne.s32.totalorder %s36, %s37
    %p51 = scmp.eq.s32.totalorder %s15, 3
    %p52 = por %p50, %p51
    %p54 = scmp.ne.s32.totalorder %s37, %s53
    %p55 = scmp.eq.s32.totalorder %s15, 0
    %p56 = por %p54, %p55
    %s57 = ssub.s32 %s16, %s28
    %p58 = scmp.eq.s32.totalorder %s57, 0
    %s60 = sadd.s32 %s59, 1
    %s61 = scalar_select %p58, %s59, %s60
    %p64 = pneg %p58
    %p65 = scmp.eq.s32.totalorder %s9, 3
    %p66 = por %p64, %p65
    %p67 = scmp.ne.s32.totalorder %s59, %s62
    %p68 = scmp.eq.s32.totalorder %s9, 0
    %p69 = por %p67, %p68
    %p70 = scmp.ne.s32.totalorder %s59, %s62
    %p71 = scmp.eq.s32.totalorder %s14, 3
    %p72 = por %p70, %p71
    %p73 = scmp.ne.s32.totalorder %s62, %s63
    %p74 = scmp.eq.s32.totalorder %s14, 0
    %p75 = por %p73, %p74
    %p76 = scmp.ne.s32.totalorder %s62, %s63
    %p77 = scmp.eq.s32.totalorder %s15, 3
    %p78 = por %p76, %p77
    %p80 = scmp.ne.s32.totalorder %s63, %s79
    %p81 = scmp.eq.s32.totalorder %s15, 0
    %p82 = por %p80, %p81
    %s83 = ssub.s32 %s16, %s28
    %p84 = scmp.eq.s32.totalorder %s83, 0
    %s86 = sadd.s32 %s85, 1
    %s87 = scalar_select %p84, %s85, %s86
    %p90 = pneg %p84
    %p91 = scmp.eq.s32.totalorder %s9, 3
    %p92 = por %p90, %p91
    %p93 = scmp.ne.s32.totalorder %s85, %s88
    %p94 = scmp.eq.s32.totalorder %s9, 0
    %p95 = por %p93, %p94
    %p96 = scmp.ne.s32.totalorder %s85, %s88
    %p97 = scmp.eq.s32.totalorder %s14, 3
    %p98 = por %p96, %p97
    %p99 = scmp.ne.s32.totalorder %s88, %s89
    %p100 = scmp.eq.s32.totalorder %s14, 0
    %p101 = por %p99, %p100
    %p102 = scmp.ne.s32.totalorder %s88, %s89
    %p103 = scmp.eq.s32.totalorder %s15, 3
    %p104 = por %p102, %p103
    %p106 = scmp.ne.s32.totalorder %s89, %s105
    %p107 = scmp.eq.s32.totalorder %s15, 0
    %p108 = por %p106, %p107
    %s109 = ssub.s32 %s17, %s24
    %s110 = ssub.s32 %s16, %s28
    %s111 = sor.u32 %s109, %s110
    %p112 = scmp.eq.s32.totalorder %s111, 0
    %s114 = sadd.s32 %s113, 1
    %s115 = scalar_select %p112, %s113, %s114
    %p118 = pneg %p112
    %p119 = scmp.eq.s32.totalorder %s9, 3
    %p120 = por %p118, %p119
    %p121 = scmp.ne.s32.totalorder %s113, %s116
    %p122 = scmp.eq.s32.totalorder %s9, 0
    %p123 = por %p121, %p122
    %p124 = scmp.ne.s32.totalorder %s113, %s116
    %p125 = scmp.eq.s32.totalorder %s14, 3
    %p126 = por %p124, %p125
    %p127 = scmp.ne.s32.totalorder %s116, %s117
    %p128 = scmp.eq.s32.totalorder %s14, 0
    %p129 = por %p127, %p128
    %p130 = scmp.ne.s32.totalorder %s116, %s117
    %p131 = scmp.eq.s32.totalorder %s15, 3
    %p132 = por %p130, %p131
    %p134 = scmp.ne.s32.totalorder %s117, %s133
    %p135 = scmp.eq.s32.totalorder %s15, 0
    %p136 = por %p134, %p135
    %p137 = scmp.le.s32.totalorder 1, %s9
    %p138 = scmp.lt.s32.totalorder %s9, 5
    %p139 = pnand %p137, %p138
    %p140 = pneg %p139
    // Predicated region
    $region9: #{_lambda_.5} parent=5 // pred_check
      _
    $region10: #{_lambda_.5} parent=5 // pred_check_branch
      %142 = sbr.rel (%p139) target = $region12
    $region11: #{_lambda_.5} parent=5 // pred_region
      %s143 = ssub.s32 %s9, 1
    $region12: #{_lambda_.5} parent=5 // pred_fallthru
      _
    %p144 = scmp.lt.s32.totalorder %s9, 4
    // Predicated region
    $region13: #{_lambda_.5} parent=5 // pred_check
      %p145 = pneg %p144
    $region14: #{_lambda_.5} parent=5 // pred_check_branch
      %147 = sbr.rel (%p145) target = $region16
    $region15: #{_lambda_.5} parent=5 // pred_region
      // Predicated region
      $region17: #{_lambda_.5} parent=15 // pred_check
        %p148 = pneg %p43
      $region18: #{_lambda_.5} parent=15 // pred_check_branch
        %150 = sbr.rel (%p148) target = $region20
      $region19: #{_lambda_.5} parent=15 // pred_region
        %p151 = scmp.lt.s32.totalorder %s17, 1
        %s152 = scalar_select %p151, %s17, 1
        %p153 = scmp.lt.s32.totalorder %s16, 1
        %s154 = scalar_select %p153, %s16, 1
        %s155 = smul.addr %s154, 3
        %s156 = smul.addr %s152, 6
        %s157 = sadd.s32 %s155, %s156
        %s158 = smul.addr %s157, 8
        %s159 = scalar_lea.vmem %s0, %s158
      $region20: #{_lambda_.5} parent=15 // pred_fallthru
        _
      // Predicated region
      $region21: #{_lambda_.5} parent=15 // pred_check
        %p160 = pneg %p69
      $region22: #{_lambda_.5} parent=15 // pred_check_branch
        %162 = sbr.rel (%p160) target = $region24
      $region23: #{_lambda_.5} parent=15 // pred_region
        %p163 = scmp.lt.s32.totalorder %s16, 1
        %s164 = scalar_select %p163, %s16, 1
        %s165 = smul.addr %s164, 2
        %s166 = smul.addr %s165, 4
        %s167 = scalar_lea.vmem %s1, %s166
      $region24: #{_lambda_.5} parent=15 // pred_fallthru
        _
      // Predicated region
      $region25: #{_lambda_.5} parent=15 // pred_check
        %p168 = pneg %p95
      $region26: #{_lambda_.5} parent=15 // pred_check_branch
        %170 = sbr.rel (%p168) target = $region28
      $region27: #{_lambda_.5} parent=15 // pred_region
        %p171 = scmp.lt.s32.totalorder %s16, 1
        %s172 = scalar_select %p171, %s16, 1
        %s173 = scalar_lea.vmem %s2, %s172
      $region28: #{_lambda_.5} parent=15 // pred_fallthru
        _
    $region16: #{_lambda_.5} parent=5 // pred_fallthru
      _
    %p174 = scmp.le.s32.totalorder 1, %s9
    %p175 = scmp.lt.s32.totalorder %s9, 5
    %p176 = pnand %p174, %p175
    %p177 = pneg %p176
    // Predicated region
    $region29: #{_lambda_.5} parent=5 // pred_check
      _
    $region30: #{_lambda_.5} parent=5 // pred_check_branch
      %179 = sbr.rel (%p176) target = $region32
    $region31: #{_lambda_.5} parent=5 // pred_region
      %s180 = ssub.s32 %s9, 1
      %p181 = scmp.lt.s32.totalorder %s19, 1
      %s182 = scalar_select %p181, %s19, 1
      %p183 = scmp.lt.s32.totalorder %s18, 1
      %s184 = scalar_select %p183, %s18, 1
      %s185 = smul.addr %s184, 3
      %s186 = smul.addr %s182, 6
      %s187 = sadd.s32 %s185, %s186
      %s188 = smul.addr %s187, 8
      %s189 = scalar_lea.vmem %s0, %s188
      %p190 = pneg %p49
      %p191 = pneg %p46
      %p192 = scmp.lt.s32.totalorder %s18, 1
      %s193 = scalar_select %p192, %s18, 1
      %s194 = smul.addr %s193, 2
      %s195 = smul.addr %s194, 4
      %s196 = scalar_lea.vmem %s1, %s195
      %p197 = pneg %p75
      %p198 = pneg %p72
      %p199 = scmp.lt.s32.totalorder %s18, 1
      %s200 = scalar_select %p199, %s18, 1
      %s201 = scalar_lea.vmem %s2, %s200
      %p202 = pneg %p101
      %p203 = pneg %p98
      %p204 = pneg %p129
      %p205 = pneg %p126
      %p206 = scmp.lt.s32.totalorder %s19, 1
      %s207 = scalar_select %p206, %s19, 1
      %p208 = scmp.lt.s32.totalorder %s18, 1
      %s209 = scalar_select %p208, %s18, 1
      %s210 = smul.addr %s209, 32
      %s211 = smul.addr %s207, 64
      %s212 = sadd.s32 %s210, %s211
      %s213 = smul.addr %s212, 4
      %s214 = scalar_lea.vmem %s3, %s213
      %p215 = scmp.lt.s32.totalorder %s19, 1
      %s216 = scalar_select %p215, %s19, 1
      %p217 = scmp.lt.s32.totalorder %s18, 1
      %s218 = scalar_select %p217, %s18, 1
      %s219 = smul.addr %s218, 3
      %s220 = smul.addr %s216, 6
      %s221 = sadd.s32 %s219, %s220
      %s222 = smul.addr %s221, 8
      %s223 = scalar_lea.vmem %s0, %s222
      %p224 = scmp.lt.s32.totalorder %s18, 1
      %s225 = scalar_select %p224, %s18, 1
      %s226 = smul.addr %s225, 2
      %s227 = smul.addr %s226, 4
      %s228 = scalar_lea.vmem %s1, %s227
      %p229 = scmp.lt.s32.totalorder %s18, 1
      %s230 = scalar_select %p229, %s18, 1
      %s231 = scalar_lea.vmem %s2, %s230
      %p232 = scmp.lt.s32.totalorder %s19, 1
      %s233 = scalar_select %p232, %s19, 1
      %p234 = scmp.lt.s32.totalorder %s18, 1
      %s235 = scalar_select %p234, %s18, 1
      %s236 = smul.addr %s235, 32
      %s237 = smul.addr %s233, 64
      %s238 = sadd.s32 %s236, %s237
      %s239 = smul.addr %s238, 4
      %s240 = scalar_lea.vmem %s3, %s239
      %v241 = vld [vmem:[%s223] sm:$0xff]
      %v242 = vld [vmem:[%s223 + $0x8] sm:$0xff]
      %v243 = vld [vmem:[%s223 + $0x10] sm:$0x3]
      %v244 = vld [vmem:[%s228] sm:$0xf]
      %v245 = vld [vmem:[%s228 + $0x4] sm:$0x1]
      %v246 = vunpack.c.l.bf16 %v244
      %v247 = vunpack.c.l.bf16 %v245
      %v248 = vperm.slane %v241, 0
      %v249 = vlaneseq
      %v250 = vshrl.u32 %v249, 7
      %252 = vset.pattern.permute.xlu0 %v250
      %253 = vperm.xlu0 %252, %v248
      %v254 = vpop.permute.xlu0 %253
      %v255 = vlaneseq
      %v256 = vshrl.u32 %v255, 7
      %v257 = vadd.s32 %v256, 8
      %258 = vset.pattern.permute.xlu0 %v257
      %259 = vperm.xlu0 %258, %v248
      %v260 = vpop.permute.xlu0 %259
      %v261 = vperm.slane %v241, 1
      %v262 = vlaneseq
      %v263 = vshrl.u32 %v262, 7
      %265 = vset.pattern.permute.xlu0 %v263
      %266 = vperm.xlu0 %265, %v261
      %v267 = vpop.permute.xlu0 %266
      %v268 = vlaneseq
      %v269 = vshrl.u32 %v268, 7
      %v270 = vadd.s32 %v269, 8
      %271 = vset.pattern.permute.xlu0 %v270
      %272 = vperm.xlu0 %271, %v261
      %v273 = vpop.permute.xlu0 %272
      %v274 = vperm.slane %v241, 2
      %v275 = vlaneseq
      %v276 = vshrl.u32 %v275, 7
      %278 = vset.pattern.permute.xlu0 %v276
      %279 = vperm.xlu0 %278, %v274
      %v280 = vpop.permute.xlu0 %279
      %v281 = vlaneseq
      %v282 = vshrl.u32 %v281, 7
      %v283 = vadd.s32 %v282, 8
      %284 = vset.pattern.permute.xlu0 %v283
      %285 = vperm.xlu0 %284, %v274
      %v286 = vpop.permute.xlu0 %285
      %v287 = vperm.slane %v241, 3
      %v288 = vlaneseq
      %v289 = vshrl.u32 %v288, 7
      %291 = vset.pattern.permute.xlu0 %v289
      %292 = vperm.xlu0 %291, %v287
      %v293 = vpop.permute.xlu0 %292
      %v294 = vlaneseq
      %v295 = vshrl.u32 %v294, 7
      %v296 = vadd.s32 %v295, 8
      %297 = vset.pattern.permute.xlu0 %v296
      %298 = vperm.xlu0 %297, %v287
      %v299 = vpop.permute.xlu0 %298
      %v300 = vperm.slane %v241, 4
      %v301 = vlaneseq
      %v302 = vshrl.u32 %v301, 7
      %304 = vset.pattern.permute.xlu0 %v302
      %305 = vperm.xlu0 %304, %v300
      %v306 = vpop.permute.xlu0 %305
      %v307 = vlaneseq
      %v308 = vshrl.u32 %v307, 7
      %v309 = vadd.s32 %v308, 8
      %310 = vset.pattern.permute.xlu0 %v309
      %311 = vperm.xlu0 %310, %v300
      %v312 = vpop.permute.xlu0 %311
      %v313 = vperm.slane %v241, 5
      %v314 = vlaneseq
      %v315 = vshrl.u32 %v314, 7
      %317 = vset.pattern.permute.xlu0 %v315
      %318 = vperm.xlu0 %317, %v313
      %v319 = vpop.permute.xlu0 %318
      %v320 = vlaneseq
      %v321 = vshrl.u32 %v320, 7
      %v322 = vadd.s32 %v321, 8
      %323 = vset.pattern.permute.xlu0 %v322
      %324 = vperm.xlu0 %323, %v313
      %v325 = vpop.permute.xlu0 %324
      %v326 = vperm.slane %v241, 6
      %v327 = vlaneseq
      %v328 = vshrl.u32 %v327, 7
      %330 = vset.pattern.permute.xlu0 %v328
      %331 = vperm.xlu0 %330, %v326
      %v332 = vpop.permute.xlu0 %331
      %v333 = vlaneseq
      %v334 = vshrl.u32 %v333, 7
      %v335 = vadd.s32 %v334, 8
      %336 = vset.pattern.permute.xlu0 %v335
      %337 = vperm.xlu0 %336, %v326
      %v338 = vpop.permute.xlu0 %337
      %v339 = vperm.slane %v241, 7
      %v340 = vlaneseq
      %v341 = vshrl.u32 %v340, 7
      %343 = vset.pattern.permute.xlu0 %v341
      %344 = vperm.xlu0 %343, %v339
      %v345 = vpop.permute.xlu0 %344
      %v346 = vlaneseq
      %v347 = vshrl.u32 %v346, 7
      %v348 = vadd.s32 %v347, 8
      %349 = vset.pattern.permute.xlu0 %v348
      %350 = vperm.xlu0 %349, %v339
      %v351 = vpop.permute.xlu0 %350
      %v352 = vperm.slane %v242, 0
      %v353 = vlaneseq
      %v354 = vshrl.u32 %v353, 7
      %356 = vset.pattern.permute.xlu0 %v354
      %357 = vperm.xlu0 %356, %v352
      %v358 = vpop.permute.xlu0 %357
      %v359 = vlaneseq
      %v360 = vshrl.u32 %v359, 7
      %v361 = vadd.s32 %v360, 8
      %362 = vset.pattern.permute.xlu0 %v361
      %363 = vperm.xlu0 %362, %v352
      %v364 = vpop.permute.xlu0 %363
      %v365 = vperm.slane %v242, 1
      %v366 = vlaneseq
      %v367 = vshrl.u32 %v366, 7
      %369 = vset.pattern.permute.xlu0 %v367
      %370 = vperm.xlu0 %369, %v365
      %v371 = vpop.permute.xlu0 %370
      %v372 = vlaneseq
      %v373 = vshrl.u32 %v372, 7
      %v374 = vadd.s32 %v373, 8
      %375 = vset.pattern.permute.xlu0 %v374
      %376 = vperm.xlu0 %375, %v365
      %v377 = vpop.permute.xlu0 %376
      %v378 = vperm.slane %v242, 2
      %v379 = vlaneseq
      %v380 = vshrl.u32 %v379, 7
      %382 = vset.pattern.permute.xlu0 %v380
      %383 = vperm.xlu0 %382, %v378
      %v384 = vpop.permute.xlu0 %383
      %v385 = vlaneseq
      %v386 = vshrl.u32 %v385, 7
      %v387 = vadd.s32 %v386, 8
      %388 = vset.pattern.permute.xlu0 %v387
      %389 = vperm.xlu0 %388, %v378
      %v390 = vpop.permute.xlu0 %389
      %v391 = vperm.slane %v242, 3
      %v392 = vlaneseq
      %v393 = vshrl.u32 %v392, 7
      %395 = vset.pattern.permute.xlu0 %v393
      %396 = vperm.xlu0 %395, %v391
      %v397 = vpop.permute.xlu0 %396
      %v398 = vlaneseq
      %v399 = vshrl.u32 %v398, 7
      %v400 = vadd.s32 %v399, 8
      %401 = vset.pattern.permute.xlu0 %v400
      %402 = vperm.xlu0 %401, %v391
      %v403 = vpop.permute.xlu0 %402
      %v404 = vperm.slane %v242, 4
      %v405 = vlaneseq
      %v406 = vshrl.u32 %v405, 7
      %408 = vset.pattern.permute.xlu0 %v406
      %409 = vperm.xlu0 %408, %v404
      %v410 = vpop.permute.xlu0 %409
      %v411 = vlaneseq
      %v412 = vshrl.u32 %v411, 7
      %v413 = vadd.s32 %v412, 8
      %414 = vset.pattern.permute.xlu0 %v413
      %415 = vperm.xlu0 %414, %v404
      %v416 = vpop.permute.xlu0 %415
      %v417 = vperm.slane %v242, 5
      %v418 = vlaneseq
      %v419 = vshrl.u32 %v418, 7
      %421 = vset.pattern.permute.xlu0 %v419
      %422 = vperm.xlu0 %421, %v417
      %v423 = vpop.permute.xlu0 %422
      %v424 = vlaneseq
      %v425 = vshrl.u32 %v424, 7
      %v426 = vadd.s32 %v425, 8
      %427 = vset.pattern.permute.xlu0 %v426
      %428 = vperm.xlu0 %427, %v417
      %v429 = vpop.permute.xlu0 %428
      %v430 = vperm.slane %v242, 6
      %v431 = vlaneseq
      %v432 = vshrl.u32 %v431, 7
      %434 = vset.pattern.permute.xlu0 %v432
      %435 = vperm.xlu0 %434, %v430
      %v436 = vpop.permute.xlu0 %435
      %v437 = vlaneseq
      %v438 = vshrl.u32 %v437, 7
      %v439 = vadd.s32 %v438, 8
      %440 = vset.pattern.permute.xlu0 %v439
      %441 = vperm.xlu0 %440, %v430
      %v442 = vpop.permute.xlu0 %441
      %v443 = vperm.slane %v242, 7
      %v444 = vlaneseq
      %v445 = vshrl.u32 %v444, 7
      %447 = vset.pattern.permute.xlu0 %v445
      %448 = vperm.xlu0 %447, %v443
      %v449 = vpop.permute.xlu0 %448
      %v450 = vlaneseq
      %v451 = vshrl.u32 %v450, 7
      %v452 = vadd.s32 %v451, 8
      %453 = vset.pattern.permute.xlu0 %v452
      %454 = vperm.xlu0 %453, %v443
      %v455 = vpop.permute.xlu0 %454
      %v456 = vperm.slane %v246, 0
      %v457 = vmul.f32 %v254, %v456
      %v458 = vmul.f32 %v260, %v456
      %v459 = vmul.f32 %v267, %v456
      %v460 = vmul.f32 %v273, %v456
      %v461 = vmul.f32 %v280, %v456
      %v462 = vmul.f32 %v286, %v456
      %v463 = vmul.f32 %v293, %v456
      %v464 = vmul.f32 %v299, %v456
      %v465 = vmul.f32 %v306, %v456
      %v466 = vmul.f32 %v312, %v456
      %v467 = vmul.f32 %v319, %v456
      %v468 = vmul.f32 %v325, %v456
      %v469 = vmul.f32 %v332, %v456
      %v470 = vmul.f32 %v338, %v456
      %v471 = vmul.f32 %v345, %v456
      %v472 = vmul.f32 %v351, %v456
      %v473 = vmul.f32 %v358, %v456
      %v474 = vmul.f32 %v364, %v456
      %v475 = vmul.f32 %v371, %v456
      %v476 = vmul.f32 %v377, %v456
      %v477 = vmul.f32 %v384, %v456
      %v478 = vmul.f32 %v390, %v456
      %v479 = vmul.f32 %v397, %v456
      %v480 = vmul.f32 %v403, %v456
      %v481 = vmul.f32 %v410, %v456
      %v482 = vmul.f32 %v416, %v456
      %v483 = vmul.f32 %v423, %v456
      %v484 = vmul.f32 %v429, %v456
      %v485 = vmul.f32 %v436, %v456
      %v486 = vmul.f32 %v442, %v456
      %v487 = vmul.f32 %v449, %v456
      %v488 = vmul.f32 %v455, %v456
      %v489 = vadd.f32 %v457, 0.0
      %v490 = vadd.f32 %v458, 0.0
      %v491 = vadd.f32 %v459, 0.0
      %v492 = vadd.f32 %v460, 0.0
      %v493 = vadd.f32 %v461, 0.0
      %v494 = vadd.f32 %v462, 0.0
      %v495 = vadd.f32 %v463, 0.0
      %v496 = vadd.f32 %v464, 0.0
      %v497 = vadd.f32 %v465, 0.0
      %v498 = vadd.f32 %v466, 0.0
      %v499 = vadd.f32 %v467, 0.0
      %v500 = vadd.f32 %v468, 0.0
      %v501 = vadd.f32 %v469, 0.0
      %v502 = vadd.f32 %v470, 0.0
      %v503 = vadd.f32 %v471, 0.0
      %v504 = vadd.f32 %v472, 0.0
      %v505 = vadd.f32 %v473, 0.0
      %v506 = vadd.f32 %v474, 0.0
      %v507 = vadd.f32 %v475, 0.0
      %v508 = vadd.f32 %v476, 0.0
      %v509 = vadd.f32 %v477, 0.0
      %v510 = vadd.f32 %v478, 0.0
      %v511 = vadd.f32 %v479, 0.0
      %v512 = vadd.f32 %v480, 0.0
      %v513 = vadd.f32 %v481, 0.0
      %v514 = vadd.f32 %v482, 0.0
      %v515 = vadd.f32 %v483, 0.0
      %v516 = vadd.f32 %v484, 0.0
      %v517 = vadd.f32 %v485, 0.0
      %v518 = vadd.f32 %v486, 0.0
      %v519 = vadd.f32 %v487, 0.0
      %v520 = vadd.f32 %v488, 0.0
      %v521 = vlaneseq
      %v522 = vshrl.u32 %v521, 7
      %v523 = vadd.s32 %v522, 1
      %524 = vset.pattern.permute.xlu0 %v523
      %525 = vperm.xlu0 %524, %v248
      %v526 = vpop.permute.xlu0 %525
      %v527 = vlaneseq
      %v528 = vshrl.u32 %v527, 7
      %v529 = vadd.s32 %v528, 9
      %530 = vset.pattern.permute.xlu0 %v529
      %531 = vperm.xlu0 %530, %v248
      %v532 = vpop.permute.xlu0 %531
      %v533 = vlaneseq
      %v534 = vshrl.u32 %v533, 7
      %v535 = vadd.s32 %v534, 1
      %536 = vset.pattern.permute.xlu0 %v535
      %537 = vperm.xlu0 %536, %v261
      %v538 = vpop.permute.xlu0 %537
      %v539 = vlaneseq
      %v540 = vshrl.u32 %v539, 7
      %v541 = vadd.s32 %v540, 9
      %542 = vset.pattern.permute.xlu0 %v541
      %543 = vperm.xlu0 %542, %v261
      %v544 = vpop.permute.xlu0 %543
      %v545 = vlaneseq
      %v546 = vshrl.u32 %v545, 7
      %v547 = vadd.s32 %v546, 1
      %548 = vset.pattern.permute.xlu0 %v547
      %549 = vperm.xlu0 %548, %v274
      %v550 = vpop.permute.xlu0 %549
      %v551 = vlaneseq
      %v552 = vshrl.u32 %v551, 7
      %v553 = vadd.s32 %v552, 9
      %554 = vset.pattern.permute.xlu0 %v553
      %555 = vperm.xlu0 %554, %v274
      %v556 = vpop.permute.xlu0 %555
      %v557 = vlaneseq
      %v558 = vshrl.u32 %v557, 7
      %v559 = vadd.s32 %v558, 1
      %560 = vset.pattern.permute.xlu0 %v559
      %561 = vperm.xlu0 %560, %v287
      %v562 = vpop.permute.xlu0 %561
      %v563 = vlaneseq
      %v564 = vshrl.u32 %v563, 7
      %v565 = vadd.s32 %v564, 9
      %566 = vset.pattern.permute.xlu0 %v565
      %567 = vperm.xlu0 %566, %v287
      %v568 = vpop.permute.xlu0 %567
      %v569 = vlaneseq
      %v570 = vshrl.u32 %v569, 7
      %v571 = vadd.s32 %v570, 1
      %572 = vset.pattern.permute.xlu0 %v571
      %573 = vperm.xlu0 %572, %v300
      %v574 = vpop.permute.xlu0 %573
      %v575 = vlaneseq
      %v576 = vshrl.u32 %v575, 7
      %v577 = vadd.s32 %v576, 9
      %578 = vset.pattern.permute.xlu0 %v577
      %579 = vperm.xlu0 %578, %v300
      %v580 = vpop.permute.xlu0 %579
      %v581 = vlaneseq
      %v582 = vshrl.u32 %v581, 7
      %v583 = vadd.s32 %v582, 1
      %584 = vset.pattern.permute.xlu0 %v583
      %585 = vperm.xlu0 %584, %v313
      %v586 = vpop.permute.xlu0 %585
      %v587 = vlaneseq
      %v588 = vshrl.u32 %v587, 7
      %v589 = vadd.s32 %v588, 9
      %590 = vset.pattern.permute.xlu0 %v589
      %591 = vperm.xlu0 %590, %v313
      %v592 = vpop.permute.xlu0 %591
      %v593 = vlaneseq
      %v594 = vshrl.u32 %v593, 7
      %v595 = vadd.s32 %v594, 1
      %596 = vset.pattern.permute.xlu0 %v595
      %597 = vperm.xlu0 %596, %v326
      %v598 = vpop.permute.xlu0 %597
      %v599 = vlaneseq
      %v600 = vshrl.u32 %v599, 7
      %v601 = vadd.s32 %v600, 9
      %602 = vset.pattern.permute.xlu0 %v601
      %603 = vperm.xlu0 %602, %v326
      %v604 = vpop.permute.xlu0 %603
      %v605 = vlaneseq
      %v606 = vshrl.u32 %v605, 7
      %v607 = vadd.s32 %v606, 1
      %608 = vset.pattern.permute.xlu0 %v607
      %609 = vperm.xlu0 %608, %v339
      %v610 = vpop.permute.xlu0 %609
      %v611 = vlaneseq
      %v612 = vshrl.u32 %v611, 7
      %v613 = vadd.s32 %v612, 9
      %614 = vset.pattern.permute.xlu0 %v613
      %615 = vperm.xlu0 %614, %v339
      %v616 = vpop.permute.xlu0 %615
      %v617 = vlaneseq
      %v618 = vshrl.u32 %v617, 7
      %v619 = vadd.s32 %v618, 1
      %620 = vset.pattern.permute.xlu0 %v619
      %621 = vperm.xlu0 %620, %v352
      %v622 = vpop.permute.xlu0 %621
      %v623 = vlaneseq
      %v624 = vshrl.u32 %v623, 7
      %v625 = vadd.s32 %v624, 9
      %626 = vset.pattern.permute.xlu0 %v625
      %627 = vperm.xlu0 %626, %v352
      %v628 = vpop.permute.xlu0 %627
      %v629 = vlaneseq
      %v630 = vshrl.u32 %v629, 7
      %v631 = vadd.s32 %v630, 1
      %632 = vset.pattern.permute.xlu0 %v631
      %633 = vperm.xlu0 %632, %v365
      %v634 = vpop.permute.xlu0 %633
      %v635 = vlaneseq
      %v636 = vshrl.u32 %v635, 7
      %v637 = vadd.s32 %v636, 9
      %638 = vset.pattern.permute.xlu0 %v637
      %639 = vperm.xlu0 %638, %v365
      %v640 = vpop.permute.xlu0 %639
      %v641 = vlaneseq
      %v642 = vshrl.u32 %v641, 7
      %v643 = vadd.s32 %v642, 1
      %644 = vset.pattern.permute.xlu0 %v643
      %645 = vperm.xlu0 %644, %v378
      %v646 = vpop.permute.xlu0 %645
      %v647 = vlaneseq
      %v648 = vshrl.u32 %v647, 7
      %v649 = vadd.s32 %v648, 9
      %650 = vset.pattern.permute.xlu0 %v649
      %651 = vperm.xlu0 %650, %v378
      %v652 = vpop.permute.xlu0 %651
      %v653 = vlaneseq
      %v654 = vshrl.u32 %v653, 7
      %v655 = vadd.s32 %v654, 1
      %656 = vset.pattern.permute.xlu0 %v655
      %657 = vperm.xlu0 %656, %v391
      %v658 = vpop.permute.xlu0 %657
      %v659 = vlaneseq
      %v660 = vshrl.u32 %v659, 7
      %v661 = vadd.s32 %v660, 9
      %662 = vset.pattern.permute.xlu0 %v661
      %663 = vperm.xlu0 %662, %v391
      %v664 = vpop.permute.xlu0 %663
      %v665 = vlaneseq
      %v666 = vshrl.u32 %v665, 7
      %v667 = vadd.s32 %v666, 1
      %668 = vset.pattern.permute.xlu0 %v667
      %669 = vperm.xlu0 %668, %v404
      %v670 = vpop.permute.xlu0 %669
      %v671 = vlaneseq
      %v672 = vshrl.u32 %v671, 7
      %v673 = vadd.s32 %v672, 9
      %674 = vset.pattern.permute.xlu0 %v673
      %675 = vperm.xlu0 %674, %v404
      %v676 = vpop.permute.xlu0 %675
      %v677 = vlaneseq
      %v678 = vshrl.u32 %v677, 7
      %v679 = vadd.s32 %v678, 1
      %680 = vset.pattern.permute.xlu0 %v679
      %681 = vperm.xlu0 %680, %v417
      %v682 = vpop.permute.xlu0 %681
      %v683 = vlaneseq
      %v684 = vshrl.u32 %v683, 7
      %v685 = vadd.s32 %v684, 9
      %686 = vset.pattern.permute.xlu0 %v685
      %687 = vperm.xlu0 %686, %v417
      %v688 = vpop.permute.xlu0 %687
      %v689 = vlaneseq
      %v690 = vshrl.u32 %v689, 7
      %v691 = vadd.s32 %v690, 1
      %692 = vset.pattern.permute.xlu0 %v691
      %693 = vperm.xlu0 %692, %v430
      %v694 = vpop.permute.xlu0 %693
      %v695 = vlaneseq
      %v696 = vshrl.u32 %v695, 7
      %v697 = vadd.s32 %v696, 9
      %698 = vset.pattern.permute.xlu0 %v697
      %699 = vperm.xlu0 %698, %v430
      %v700 = vpop.permute.xlu0 %699
      %v701 = vlaneseq
      %v702 = vshrl.u32 %v701, 7
      %v703 = vadd.s32 %v702, 1
      %704 = vset.pattern.permute.xlu0 %v703
      %705 = vperm.xlu0 %704, %v443
      %v706 = vpop.permute.xlu0 %705
      %v707 = vlaneseq
      %v708 = vshrl.u32 %v707, 7
      %v709 = vadd.s32 %v708, 9
      %710 = vset.pattern.permute.xlu0 %v709
      %711 = vperm.xlu0 %710, %v443
      %v712 = vpop.permute.xlu0 %711
      %v713 = vperm.slane %v246, 1
      %v714 = vmul.f32 %v526, %v713
      %v715 = vmul.f32 %v532, %v713
      %v716 = vmul.f32 %v538, %v713
      %v717 = vmul.f32 %v544, %v713
      %v718 = vmul.f32 %v550, %v713
      %v719 = vmul.f32 %v556, %v713
      %v720 = vmul.f32 %v562, %v713
      %v721 = vmul.f32 %v568, %v713
      %v722 = vmul.f32 %v574, %v713
      %v723 = vmul.f32 %v580, %v713
      %v724 = vmul.f32 %v586, %v713
      %v725 = vmul.f32 %v592, %v713
      %v726 = vmul.f32 %v598, %v713
      %v727 = vmul.f32 %v604, %v713
      %v728 = vmul.f32 %v610, %v713
      %v729 = vmul.f32 %v616, %v713
      %v730 = vmul.f32 %v622, %v713
      %v731 = vmul.f32 %v628, %v713
      %v732 = vmul.f32 %v634, %v713
      %v733 = vmul.f32 %v640, %v713
      %v734 = vmul.f32 %v646, %v713
      %v735 = vmul.f32 %v652, %v713
      %v736 = vmul.f32 %v658, %v713
      %v737 = vmul.f32 %v664, %v713
      %v738 = vmul.f32 %v670, %v713
      %v739 = vmul.f32 %v676, %v713
      %v740 = vmul.f32 %v682, %v713
      %v741 = vmul.f32 %v688, %v713
      %v742 = vmul.f32 %v694, %v713
      %v743 = vmul.f32 %v700, %v713
      %v744 = vmul.f32 %v706, %v713
      %v745 = vmul.f32 %v712, %v713
      %v746 = vadd.f32 %v489, %v714
      %v747 = vadd.f32 %v490, %v715
      %v748 = vadd.f32 %v491, %v716
      %v749 = vadd.f32 %v492, %v717
      %v750 = vadd.f32 %v493, %v718
      %v751 = vadd.f32 %v494, %v719
      %v752 = vadd.f32 %v495, %v720
      %v753 = vadd.f32 %v496, %v721
      %v754 = vadd.f32 %v497, %v722
      %v755 = vadd.f32 %v498, %v723
      %v756 = vadd.f32 %v499, %v724
      %v757 = vadd.f32 %v500, %v725
      %v758 = vadd.f32 %v501, %v726
      %v759 = vadd.f32 %v502, %v727
      %v760 = vadd.f32 %v503, %v728
      %v761 = vadd.f32 %v504, %v729
      %v762 = vadd.f32 %v505, %v730
      %v763 = vadd.f32 %v506, %v731
      %v764 = vadd.f32 %v507, %v732
      %v765 = vadd.f32 %v508, %v733
      %v766 = vadd.f32 %v509, %v734
      %v767 = vadd.f32 %v510, %v735
      %v768 = vadd.f32 %v511, %v736
      %v769 = vadd.f32 %v512, %v737
      %v770 = vadd.f32 %v513, %v738
      %v771 = vadd.f32 %v514, %v739
      %v772 = vadd.f32 %v515, %v740
      %v773 = vadd.f32 %v516, %v741
      %v774 = vadd.f32 %v517, %v742
      %v775 = vadd.f32 %v518, %v743
      %v776 = vadd.f32 %v519, %v744
      %v777 = vadd.f32 %v520, %v745
      %v778 = vlaneseq
      %v779 = vshrl.u32 %v778, 7
      %v780 = vadd.s32 %v779, 2
      %781 = vset.pattern.permute.xlu0 %v780
      %782 = vperm.xlu0 %781, %v248
      %v783 = vpop.permute.xlu0 %782
      %v784 = vlaneseq
      %v785 = vshrl.u32 %v784, 7
      %v786 = vadd.s32 %v785, 10
      %787 = vset.pattern.permute.xlu0 %v786
      %788 = vperm.xlu0 %787, %v248
      %v789 = vpop.permute.xlu0 %788
      %v790 = vlaneseq
      %v791 = vshrl.u32 %v790, 7
      %v792 = vadd.s32 %v791, 2
      %793 = vset.pattern.permute.xlu0 %v792
      %794 = vperm.xlu0 %793, %v261
      %v795 = vpop.permute.xlu0 %794
      %v796 = vlaneseq
      %v797 = vshrl.u32 %v796, 7
      %v798 = vadd.s32 %v797, 10
      %799 = vset.pattern.permute.xlu0 %v798
      %800 = vperm.xlu0 %799, %v261
      %v801 = vpop.permute.xlu0 %800
      %v802 = vlaneseq
      %v803 = vshrl.u32 %v802, 7
      %v804 = vadd.s32 %v803, 2
      %805 = vset.pattern.permute.xlu0 %v804
      %806 = vperm.xlu0 %805, %v274
      %v807 = vpop.permute.xlu0 %806
      %v808 = vlaneseq
      %v809 = vshrl.u32 %v808, 7
      %v810 = vadd.s32 %v809, 10
      %811 = vset.pattern.permute.xlu0 %v810
      %812 = vperm.xlu0 %811, %v274
      %v813 = vpop.permute.xlu0 %812
      %v814 = vlaneseq
      %v815 = vshrl.u32 %v814, 7
      %v816 = vadd.s32 %v815, 2
      %817 = vset.pattern.permute.xlu0 %v816
      %818 = vperm.xlu0 %817, %v287
      %v819 = vpop.permute.xlu0 %818
      %v820 = vlaneseq
      %v821 = vshrl.u32 %v820, 7
      %v822 = vadd.s32 %v821, 10
      %823 = vset.pattern.permute.xlu0 %v822
      %824 = vperm.xlu0 %823, %v287
      %v825 = vpop.permute.xlu0 %824
      %v826 = vlaneseq
      %v827 = vshrl.u32 %v826, 7
      %v828 = vadd.s32 %v827, 2
      %829 = vset.pattern.permute.xlu0 %v828
      %830 = vperm.xlu0 %829, %v300
      %v831 = vpop.permute.xlu0 %830
      %v832 = vlaneseq
      %v833 = vshrl.u32 %v832, 7
      %v834 = vadd.s32 %v833, 10
      %835 = vset.pattern.permute.xlu0 %v834
      %836 = vperm.xlu0 %835, %v300
      %v837 = vpop.permute.xlu0 %836
      %v838 = vlaneseq
      %v839 = vshrl.u32 %v838, 7
      %v840 = vadd.s32 %v839, 2
      %841 = vset.pattern.permute.xlu0 %v840
      %842 = vperm.xlu0 %841, %v313
      %v843 = vpop.permute.xlu0 %842
      %v844 = vlaneseq
      %v845 = vshrl.u32 %v844, 7
      %v846 = vadd.s32 %v845, 10
      %847 = vset.pattern.permute.xlu0 %v846
      %848 = vperm.xlu0 %847, %v313
      %v849 = vpop.permute.xlu0 %848
      %v850 = vlaneseq
      %v851 = vshrl.u32 %v850, 7
      %v852 = vadd.s32 %v851, 2
      %853 = vset.pattern.permute.xlu0 %v852
      %854 = vperm.xlu0 %853, %v326
      %v855 = vpop.permute.xlu0 %854
      %v856 = vlaneseq
      %v857 = vshrl.u32 %v856, 7
      %v858 = vadd.s32 %v857, 10
      %859 = vset.pattern.permute.xlu0 %v858
      %860 = vperm.xlu0 %859, %v326
      %v861 = vpop.permute.xlu0 %860
      %v862 = vlaneseq
      %v863 = vshrl.u32 %v862, 7
      %v864 = vadd.s32 %v863, 2
      %865 = vset.pattern.permute.xlu0 %v864
      %866 = vperm.xlu0 %865, %v339
      %v867 = vpop.permute.xlu0 %866
      %v868 = vlaneseq
      %v869 = vshrl.u32 %v868, 7
      %v870 = vadd.s32 %v869, 10
      %871 = vset.pattern.permute.xlu0 %v870
      %872 = vperm.xlu0 %871, %v339
      %v873 = vpop.permute.xlu0 %872
      %v874 = vlaneseq
      %v875 = vshrl.u32 %v874, 7
      %v876 = vadd.s32 %v875, 2
      %877 = vset.pattern.permute.xlu0 %v876
      %878 = vperm.xlu0 %877, %v352
      %v879 = vpop.permute.xlu0 %878
      %v880 = vlaneseq
      %v881 = vshrl.u32 %v880, 7
      %v882 = vadd.s32 %v881, 10
      %883 = vset.pattern.permute.xlu0 %v882
      %884 = vperm.xlu0 %883, %v352
      %v885 = vpop.permute.xlu0 %884
      %v886 = vlaneseq
      %v887 = vshrl.u32 %v886, 7
      %v888 = vadd.s32 %v887, 2
      %889 = vset.pattern.permute.xlu0 %v888
      %890 = vperm.xlu0 %889, %v365
      %v891 = vpop.permute.xlu0 %890
      %v892 = vlaneseq
      %v893 = vshrl.u32 %v892, 7
      %v894 = vadd.s32 %v893, 10
      %895 = vset.pattern.permute.xlu0 %v894
      %896 = vperm.xlu0 %895, %v365
      %v897 = vpop.permute.xlu0 %896
      %v898 = vlaneseq
      %v899 = vshrl.u32 %v898, 7
      %v900 = vadd.s32 %v899, 2
      %901 = vset.pattern.permute.xlu0 %v900
      %902 = vperm.xlu0 %901, %v378
      %v903 = vpop.permute.xlu0 %902
      %v904 = vlaneseq
      %v905 = vshrl.u32 %v904, 7
      %v906 = vadd.s32 %v905, 10
      %907 = vset.pattern.permute.xlu0 %v906
      %908 = vperm.xlu0 %907, %v378
      %v909 = vpop.permute.xlu0 %908
      %v910 = vlaneseq
      %v911 = vshrl.u32 %v910, 7
      %v912 = vadd.s32 %v911, 2
      %913 = vset.pattern.permute.xlu0 %v912
      %914 = vperm.xlu0 %913, %v391
      %v915 = vpop.permute.xlu0 %914
      %v916 = vlaneseq
      %v917 = vshrl.u32 %v916, 7
      %v918 = vadd.s32 %v917, 10
      %919 = vset.pattern.permute.xlu0 %v918
      %920 = vperm.xlu0 %919, %v391
      %v921 = vpop.permute.xlu0 %920
      %v922 = vlaneseq
      %v923 = vshrl.u32 %v922, 7
      %v924 = vadd.s32 %v923, 2
      %925 = vset.pattern.permute.xlu0 %v924
      %926 = vperm.xlu0 %925, %v404
      %v927 = vpop.permute.xlu0 %926
      %v928 = vlaneseq
      %v929 = vshrl.u32 %v928, 7
      %v930 = vadd.s32 %v929, 10
      %931 = vset.pattern.permute.xlu0 %v930
      %932 = vperm.xlu0 %931, %v404
      %v933 = vpop.permute.xlu0 %932
      %v934 = vlaneseq
      %v935 = vshrl.u32 %v934, 7
      %v936 = vadd.s32 %v935, 2
      %937 = vset.pattern.permute.xlu0 %v936
      %938 = vperm.xlu0 %937, %v417
      %v939 = vpop.permute.xlu0 %938
      %v940 = vlaneseq
      %v941 = vshrl.u32 %v940, 7
      %v942 = vadd.s32 %v941, 10
      %943 = vset.pattern.permute.xlu0 %v942
      %944 = vperm.xlu0 %943, %v417
      %v945 = vpop.permute.xlu0 %944
      %v946 = vlaneseq
      %v947 = vshrl.u32 %v946, 7
      %v948 = vadd.s32 %v947, 2
      %949 = vset.pattern.permute.xlu0 %v948
      %950 = vperm.xlu0 %949, %v430
      %v951 = vpop.permute.xlu0 %950
      %v952 = vlaneseq
      %v953 = vshrl.u32 %v952, 7
      %v954 = vadd.s32 %v953, 10
      %955 = vset.pattern.permute.xlu0 %v954
      %956 = vperm.xlu0 %955, %v430
      %v957 = vpop.permute.xlu0 %956
      %v958 = vlaneseq
      %v959 = vshrl.u32 %v958, 7
      %v960 = vadd.s32 %v959, 2
      %961 = vset.pattern.permute.xlu0 %v960
      %962 = vperm.xlu0 %961, %v443
      %v963 = vpop.permute.xlu0 %962
      %v964 = vlaneseq
      %v965 = vshrl.u32 %v964, 7
      %v966 = vadd.s32 %v965, 10
      %967 = vset.pattern.permute.xlu0 %v966
      %968 = vperm.xlu0 %967, %v443
      %v969 = vpop.permute.xlu0 %968
      %v970 = vperm.slane %v246, 2
      %v971 = vmul.f32 %v783, %v970
      %v972 = vmul.f32 %v789, %v970
      %v973 = vmul.f32 %v795, %v970
      %v974 = vmul.f32 %v801, %v970
      %v975 = vmul.f32 %v807, %v970
      %v976 = vmul.f32 %v813, %v970
      %v977 = vmul.f32 %v819, %v970
      %v978 = vmul.f32 %v825, %v970
      %v979 = vmul.f32 %v831, %v970
      %v980 = vmul.f32 %v837, %v970
      %v981 = vmul.f32 %v843, %v970
      %v982 = vmul.f32 %v849, %v970
      %v983 = vmul.f32 %v855, %v970
      %v984 = vmul.f32 %v861, %v970
      %v985 = vmul.f32 %v867, %v970
      %v986 = vmul.f32 %v873, %v970
      %v987 = vmul.f32 %v879, %v970
      %v988 = vmul.f32 %v885, %v970
      %v989 = vmul.f32 %v891, %v970
      %v990 = vmul.f32 %v897, %v970
      %v991 = vmul.f32 %v903, %v970
      %v992 = vmul.f32 %v909, %v970
      %v993 = vmul.f32 %v915, %v970
      %v994 = vmul.f32 %v921, %v970
      %v995 = vmul.f32 %v927, %v970
      %v996 = vmul.f32 %v933, %v970
      %v997 = vmul.f32 %v939, %v970
      %v998 = vmul.f32 %v945, %v970
      %v999 = vmul.f32 %v951, %v970
      %v1000 = vmul.f32 %v957, %v970
      %v1001 = vmul.f32 %v963, %v970
      %v1002 = vmul.f32 %v969, %v970
      %v1003 = vadd.f32 %v746, %v971
      %v1004 = vadd.f32 %v747, %v972
      %v1005 = vadd.f32 %v748, %v973
      %v1006 = vadd.f32 %v749, %v974
      %v1007 = vadd.f32 %v750, %v975
      %v1008 = vadd.f32 %v751, %v976
      %v1009 = vadd.f32 %v752, %v977
      %v1010 = vadd.f32 %v753, %v978
      %v1011 = vadd.f32 %v754, %v979
      %v1012 = vadd.f32 %v755, %v980
      %v1013 = vadd.f32 %v756, %v981
      %v1014 = vadd.f32 %v757, %v982
      %v1015 = vadd.f32 %v758, %v983
      %v1016 = vadd.f32 %v759, %v984
      %v1017 = vadd.f32 %v760, %v985
      %v1018 = vadd.f32 %v761, %v986
      %v1019 = vadd.f32 %v762, %v987
      %v1020 = vadd.f32 %v763, %v988
      %v1021 = vadd.f32 %v764, %v989
      %v1022 = vadd.f32 %v765, %v990
      %v1023 = vadd.f32 %v766, %v991
      %v1024 = vadd.f32 %v767, %v992
      %v1025 = vadd.f32 %v768, %v993
      %v1026 = vadd.f32 %v769, %v994
      %v1027 = vadd.f32 %v770, %v995
      %v1028 = vadd.f32 %v771, %v996
      %v1029 = vadd.f32 %v772, %v997
      %v1030 = vadd.f32 %v773, %v998
      %v1031 = vadd.f32 %v774, %v999
      %v1032 = vadd.f32 %v775, %v1000
      %v1033 = vadd.f32 %v776, %v1001
      %v1034 = vadd.f32 %v777, %v1002
      %v1035 = vperm.slane %v243, 0
      %v1036 = vlaneseq
      %v1037 = vshrl.u32 %v1036, 7
      %1039 = vset.pattern.permute.xlu0 %v1037
      %1040 = vperm.xlu0 %1039, %v1035
      %v1041 = vpop.permute.xlu0 %1040
      %v1042 = vlaneseq
      %v1043 = vshrl.u32 %v1042, 7
      %v1044 = vadd.s32 %v1043, 8
      %1045 = vset.pattern.permute.xlu0 %v1044
      %1046 = vperm.xlu0 %1045, %v1035
      %v1047 = vpop.permute.xlu0 %1046
      %v1048 = vperm.slane %v246, 3
      %v1049 = vmul.f32 %v267, %v1048
      %v1050 = vmul.f32 %v273, %v1048
      %v1051 = vmul.f32 %v280, %v1048
      %v1052 = vmul.f32 %v286, %v1048
      %v1053 = vmul.f32 %v293, %v1048
      %v1054 = vmul.f32 %v299, %v1048
      %v1055 = vmul.f32 %v306, %v1048
      %v1056 = vmul.f32 %v312, %v1048
      %v1057 = vmul.f32 %v319, %v1048
      %v1058 = vmul.f32 %v325, %v1048
      %v1059 = vmul.f32 %v332, %v1048
      %v1060 = vmul.f32 %v338, %v1048
      %v1061 = vmul.f32 %v345, %v1048
      %v1062 = vmul.f32 %v351, %v1048
      %v1063 = vmul.f32 %v358, %v1048
      %v1064 = vmul.f32 %v364, %v1048
      %v1065 = vmul.f32 %v371, %v1048
      %v1066 = vmul.f32 %v377, %v1048
      %v1067 = vmul.f32 %v384, %v1048
      %v1068 = vmul.f32 %v390, %v1048
      %v1069 = vmul.f32 %v397, %v1048
      %v1070 = vmul.f32 %v403, %v1048
      %v1071 = vmul.f32 %v410, %v1048
      %v1072 = vmul.f32 %v416, %v1048
      %v1073 = vmul.f32 %v423, %v1048
      %v1074 = vmul.f32 %v429, %v1048
      %v1075 = vmul.f32 %v436, %v1048
      %v1076 = vmul.f32 %v442, %v1048
      %v1077 = vmul.f32 %v449, %v1048
      %v1078 = vmul.f32 %v455, %v1048
      %v1079 = vmul.f32 %v1041, %v1048
      %v1080 = vmul.f32 %v1047, %v1048
      %v1081 = vadd.f32 %v1003, %v1049
      %v1082 = vadd.f32 %v1004, %v1050
      %v1083 = vadd.f32 %v1005, %v1051
      %v1084 = vadd.f32 %v1006, %v1052
      %v1085 = vadd.f32 %v1007, %v1053
      %v1086 = vadd.f32 %v1008, %v1054
      %v1087 = vadd.f32 %v1009, %v1055
      %v1088 = vadd.f32 %v1010, %v1056
      %v1089 = vadd.f32 %v1011, %v1057
      %v1090 = vadd.f32 %v1012, %v1058
      %v1091 = vadd.f32 %v1013, %v1059
      %v1092 = vadd.f32 %v1014, %v1060
      %v1093 = vadd.f32 %v1015, %v1061
      %v1094 = vadd.f32 %v1016, %v1062
      %v1095 = vadd.f32 %v1017, %v1063
      %v1096 = vadd.f32 %v1018, %v1064
      %v1097 = vadd.f32 %v1019, %v1065
      %v1098 = vadd.f32 %v1020, %v1066
      %v1099 = vadd.f32 %v1021, %v1067
      %v1100 = vadd.f32 %v1022, %v1068
      %v1101 = vadd.f32 %v1023, %v1069
      %v1102 = vadd.f32 %v1024, %v1070
      %v1103 = vadd.f32 %v1025, %v1071
      %v1104 = vadd.f32 %v1026, %v1072
      %v1105 = vadd.f32 %v1027, %v1073
      %v1106 = vadd.f32 %v1028, %v1074
      %v1107 = vadd.f32 %v1029, %v1075
      %v1108 = vadd.f32 %v1030, %v1076
      %v1109 = vadd.f32 %v1031, %v1077
      %v1110 = vadd.f32 %v1032, %v1078
      %v1111 = vadd.f32 %v1033, %v1079
      %v1112 = vadd.f32 %v1034, %v1080
      %v1113 = vlaneseq
      %v1114 = vshrl.u32 %v1113, 7
      %v1115 = vadd.s32 %v1114, 1
      %1116 = vset.pattern.permute.xlu0 %v1115
      %1117 = vperm.xlu0 %1116, %v1035
      %v1118 = vpop.permute.xlu0 %1117
      %v1119 = vlaneseq
      %v1120 = vshrl.u32 %v1119, 7
      %v1121 = vadd.s32 %v1120, 9
      %1122 = vset.pattern.permute.xlu0 %v1121
      %1123 = vperm.xlu0 %1122, %v1035
      %v1124 = vpop.permute.xlu0 %1123
      %v1125 = vperm.slane %v246, 4
      %v1126 = vmul.f32 %v538, %v1125
      %v1127 = vmul.f32 %v544, %v1125
      %v1128 = vmul.f32 %v550, %v1125
      %v1129 = vmul.f32 %v556, %v1125
      %v1130 = vmul.f32 %v562, %v1125
      %v1131 = vmul.f32 %v568, %v1125
      %v1132 = vmul.f32 %v574, %v1125
      %v1133 = vmul.f32 %v580, %v1125
      %v1134 = vmul.f32 %v586, %v1125
      %v1135 = vmul.f32 %v592, %v1125
      %v1136 = vmul.f32 %v598, %v1125
      %v1137 = vmul.f32 %v604, %v1125
      %v1138 = vmul.f32 %v610, %v1125
      %v1139 = vmul.f32 %v616, %v1125
      %v1140 = vmul.f32 %v622, %v1125
      %v1141 = vmul.f32 %v628, %v1125
      %v1142 = vmul.f32 %v634, %v1125
      %v1143 = vmul.f32 %v640, %v1125
      %v1144 = vmul.f32 %v646, %v1125
      %v1145 = vmul.f32 %v652, %v1125
      %v1146 = vmul.f32 %v658, %v1125
      %v1147 = vmul.f32 %v664, %v1125
      %v1148 = vmul.f32 %v670, %v1125
      %v1149 = vmul.f32 %v676, %v1125
      %v1150 = vmul.f32 %v682, %v1125
      %v1151 = vmul.f32 %v688, %v1125
      %v1152 = vmul.f32 %v694, %v1125
      %v1153 = vmul.f32 %v700, %v1125
      %v1154 = vmul.f32 %v706, %v1125
      %v1155 = vmul.f32 %v712, %v1125
      %v1156 = vmul.f32 %v1118, %v1125
      %v1157 = vmul.f32 %v1124, %v1125
      %v1158 = vadd.f32 %v1081, %v1126
      %v1159 = vadd.f32 %v1082, %v1127
      %v1160 = vadd.f32 %v1083, %v1128
      %v1161 = vadd.f32 %v1084, %v1129
      %v1162 = vadd.f32 %v1085, %v1130
      %v1163 = vadd.f32 %v1086, %v1131
      %v1164 = vadd.f32 %v1087, %v1132
      %v1165 = vadd.f32 %v1088, %v1133
      %v1166 = vadd.f32 %v1089, %v1134
      %v1167 = vadd.f32 %v1090, %v1135
      %v1168 = vadd.f32 %v1091, %v1136
      %v1169 = vadd.f32 %v1092, %v1137
      %v1170 = vadd.f32 %v1093, %v1138
      %v1171 = vadd.f32 %v1094, %v1139
      %v1172 = vadd.f32 %v1095, %v1140
      %v1173 = vadd.f32 %v1096, %v1141
      %v1174 = vadd.f32 %v1097, %v1142
      %v1175 = vadd.f32 %v1098, %v1143
      %v1176 = vadd.f32 %v1099, %v1144
      %v1177 = vadd.f32 %v1100, %v1145
      %v1178 = vadd.f32 %v1101, %v1146
      %v1179 = vadd.f32 %v1102, %v1147
      %v1180 = vadd.f32 %v1103, %v1148
      %v1181 = vadd.f32 %v1104, %v1149
      %v1182 = vadd.f32 %v1105, %v1150
      %v1183 = vadd.f32 %v1106, %v1151
      %v1184 = vadd.f32 %v1107, %v1152
      %v1185 = vadd.f32 %v1108, %v1153
      %v1186 = vadd.f32 %v1109, %v1154
      %v1187 = vadd.f32 %v1110, %v1155
      %v1188 = vadd.f32 %v1111, %v1156
      %v1189 = vadd.f32 %v1112, %v1157
      %v1190 = vlaneseq
      %v1191 = vshrl.u32 %v1190, 7
      %v1192 = vadd.s32 %v1191, 2
      %1193 = vset.pattern.permute.xlu0 %v1192
      %1194 = vperm.xlu0 %1193, %v1035
      %v1195 = vpop.permute.xlu0 %1194
      %v1196 = vlaneseq
      %v1197 = vshrl.u32 %v1196, 7
      %v1198 = vadd.s32 %v1197, 10
      %1199 = vset.pattern.permute.xlu0 %v1198
      %1200 = vperm.xlu0 %1199, %v1035
      %v1201 = vpop.permute.xlu0 %1200
      %v1202 = vperm.slane %v246, 5
      %v1203 = vmul.f32 %v795, %v1202
      %v1204 = vmul.f32 %v801, %v1202
      %v1205 = vmul.f32 %v807, %v1202
      %v1206 = vmul.f32 %v813, %v1202
      %v1207 = vmul.f32 %v819, %v1202
      %v1208 = vmul.f32 %v825, %v1202
      %v1209 = vmul.f32 %v831, %v1202
      %v1210 = vmul.f32 %v837, %v1202
      %v1211 = vmul.f32 %v843, %v1202
      %v1212 = vmul.f32 %v849, %v1202
      %v1213 = vmul.f32 %v855, %v1202
      %v1214 = vmul.f32 %v861, %v1202
      %v1215 = vmul.f32 %v867, %v1202
      %v1216 = vmul.f32 %v873, %v1202
      %v1217 = vmul.f32 %v879, %v1202
      %v1218 = vmul.f32 %v885, %v1202
      %v1219 = vmul.f32 %v891, %v1202
      %v1220 = vmul.f32 %v897, %v1202
      %v1221 = vmul.f32 %v903, %v1202
      %v1222 = vmul.f32 %v909, %v1202
      %v1223 = vmul.f32 %v915, %v1202
      %v1224 = vmul.f32 %v921, %v1202
      %v1225 = vmul.f32 %v927, %v1202
      %v1226 = vmul.f32 %v933, %v1202
      %v1227 = vmul.f32 %v939, %v1202
      %v1228 = vmul.f32 %v945, %v1202
      %v1229 = vmul.f32 %v951, %v1202
      %v1230 = vmul.f32 %v957, %v1202
      %v1231 = vmul.f32 %v963, %v1202
      %v1232 = vmul.f32 %v969, %v1202
      %v1233 = vmul.f32 %v1195, %v1202
      %v1234 = vmul.f32 %v1201, %v1202
      %v1235 = vadd.f32 %v1158, %v1203
      %v1236 = vadd.f32 %v1159, %v1204
      %v1237 = vadd.f32 %v1160, %v1205
      %v1238 = vadd.f32 %v1161, %v1206
      %v1239 = vadd.f32 %v1162, %v1207
      %v1240 = vadd.f32 %v1163, %v1208
      %v1241 = vadd.f32 %v1164, %v1209
      %v1242 = vadd.f32 %v1165, %v1210
      %v1243 = vadd.f32 %v1166, %v1211
      %v1244 = vadd.f32 %v1167, %v1212
      %v1245 = vadd.f32 %v1168, %v1213
      %v1246 = vadd.f32 %v1169, %v1214
      %v1247 = vadd.f32 %v1170, %v1215
      %v1248 = vadd.f32 %v1171, %v1216
      %v1249 = vadd.f32 %v1172, %v1217
      %v1250 = vadd.f32 %v1173, %v1218
      %v1251 = vadd.f32 %v1174, %v1219
      %v1252 = vadd.f32 %v1175, %v1220
      %v1253 = vadd.f32 %v1176, %v1221
      %v1254 = vadd.f32 %v1177, %v1222
      %v1255 = vadd.f32 %v1178, %v1223
      %v1256 = vadd.f32 %v1179, %v1224
      %v1257 = vadd.f32 %v1180, %v1225
      %v1258 = vadd.f32 %v1181, %v1226
      %v1259 = vadd.f32 %v1182, %v1227
      %v1260 = vadd.f32 %v1183, %v1228
      %v1261 = vadd.f32 %v1184, %v1229
      %v1262 = vadd.f32 %v1185, %v1230
      %v1263 = vadd.f32 %v1186, %v1231
      %v1264 = vadd.f32 %v1187, %v1232
      %v1265 = vadd.f32 %v1188, %v1233
      %v1266 = vadd.f32 %v1189, %v1234
      %v1267 = vperm.slane %v243, 1
      %v1268 = vlaneseq
      %v1269 = vshrl.u32 %v1268, 7
      %1271 = vset.pattern.permute.xlu0 %v1269
      %1272 = vperm.xlu0 %1271, %v1267
      %v1273 = vpop.permute.xlu0 %1272
      %v1274 = vlaneseq
      %v1275 = vshrl.u32 %v1274, 7
      %v1276 = vadd.s32 %v1275, 8
      %1277 = vset.pattern.permute.xlu0 %v1276
      %1278 = vperm.xlu0 %1277, %v1267
      %v1279 = vpop.permute.xlu0 %1278
      %v1280 = vperm.slane %v246, 6
      %v1281 = vmul.f32 %v280, %v1280
      %v1282 = vmul.f32 %v286, %v1280
      %v1283 = vmul.f32 %v293, %v1280
      %v1284 = vmul.f32 %v299, %v1280
      %v1285 = vmul.f32 %v306, %v1280
      %v1286 = vmul.f32 %v312, %v1280
      %v1287 = vmul.f32 %v319, %v1280
      %v1288 = vmul.f32 %v325, %v1280
      %v1289 = vmul.f32 %v332, %v1280
      %v1290 = vmul.f32 %v338, %v1280
      %v1291 = vmul.f32 %v345, %v1280
      %v1292 = vmul.f32 %v351, %v1280
      %v1293 = vmul.f32 %v358, %v1280
      %v1294 = vmul.f32 %v364, %v1280
      %v1295 = vmul.f32 %v371, %v1280
      %v1296 = vmul.f32 %v377, %v1280
      %v1297 = vmul.f32 %v384, %v1280
      %v1298 = vmul.f32 %v390, %v1280
      %v1299 = vmul.f32 %v397, %v1280
      %v1300 = vmul.f32 %v403, %v1280
      %v1301 = vmul.f32 %v410, %v1280
      %v1302 = vmul.f32 %v416, %v1280
      %v1303 = vmul.f32 %v423, %v1280
      %v1304 = vmul.f32 %v429, %v1280
      %v1305 = vmul.f32 %v436, %v1280
      %v1306 = vmul.f32 %v442, %v1280
      %v1307 = vmul.f32 %v449, %v1280
      %v1308 = vmul.f32 %v455, %v1280
      %v1309 = vmul.f32 %v1041, %v1280
      %v1310 = vmul.f32 %v1047, %v1280
      %v1311 = vmul.f32 %v1273, %v1280
      %v1312 = vmul.f32 %v1279, %v1280
      %v1313 = vadd.f32 %v1235, %v1281
      %v1314 = vadd.f32 %v1236, %v1282
      %v1315 = vadd.f32 %v1237, %v1283
      %v1316 = vadd.f32 %v1238, %v1284
      %v1317 = vadd.f32 %v1239, %v1285
      %v1318 = vadd.f32 %v1240, %v1286
      %v1319 = vadd.f32 %v1241, %v1287
      %v1320 = vadd.f32 %v1242, %v1288
      %v1321 = vadd.f32 %v1243, %v1289
      %v1322 = vadd.f32 %v1244, %v1290
      %v1323 = vadd.f32 %v1245, %v1291
      %v1324 = vadd.f32 %v1246, %v1292
      %v1325 = vadd.f32 %v1247, %v1293
      %v1326 = vadd.f32 %v1248, %v1294
      %v1327 = vadd.f32 %v1249, %v1295
      %v1328 = vadd.f32 %v1250, %v1296
      %v1329 = vadd.f32 %v1251, %v1297
      %v1330 = vadd.f32 %v1252, %v1298
      %v1331 = vadd.f32 %v1253, %v1299
      %v1332 = vadd.f32 %v1254, %v1300
      %v1333 = vadd.f32 %v1255, %v1301
      %v1334 = vadd.f32 %v1256, %v1302
      %v1335 = vadd.f32 %v1257, %v1303
      %v1336 = vadd.f32 %v1258, %v1304
      %v1337 = vadd.f32 %v1259, %v1305
      %v1338 = vadd.f32 %v1260, %v1306
      %v1339 = vadd.f32 %v1261, %v1307
      %v1340 = vadd.f32 %v1262, %v1308
      %v1341 = vadd.f32 %v1263, %v1309
      %v1342 = vadd.f32 %v1264, %v1310
      %v1343 = vadd.f32 %v1265, %v1311
      %v1344 = vadd.f32 %v1266, %v1312
      %v1345 = vlaneseq
      %v1346 = vshrl.u32 %v1345, 7
      %v1347 = vadd.s32 %v1346, 1
      %1348 = vset.pattern.permute.xlu0 %v1347
      %1349 = vperm.xlu0 %1348, %v1267
      %v1350 = vpop.permute.xlu0 %1349
      %v1351 = vlaneseq
      %v1352 = vshrl.u32 %v1351, 7
      %v1353 = vadd.s32 %v1352, 9
      %1354 = vset.pattern.permute.xlu0 %v1353
      %1355 = vperm.xlu0 %1354, %v1267
      %v1356 = vpop.permute.xlu0 %1355
      %v1357 = vperm.slane %v246, 7
      %v1358 = vmul.f32 %v550, %v1357
      %v1359 = vmul.f32 %v556, %v1357
      %v1360 = vmul.f32 %v562, %v1357
      %v1361 = vmul.f32 %v568, %v1357
      %v1362 = vmul.f32 %v574, %v1357
      %v1363 = vmul.f32 %v580, %v1357
      %v1364 = vmul.f32 %v586, %v1357
      %v1365 = vmul.f32 %v592, %v1357
      %v1366 = vmul.f32 %v598, %v1357
      %v1367 = vmul.f32 %v604, %v1357
      %v1368 = vmul.f32 %v610, %v1357
      %v1369 = vmul.f32 %v616, %v1357
      %v1370 = vmul.f32 %v622, %v1357
      %v1371 = vmul.f32 %v628, %v1357
      %v1372 = vmul.f32 %v634, %v1357
      %v1373 = vmul.f32 %v640, %v1357
      %v1374 = vmul.f32 %v646, %v1357
      %v1375 = vmul.f32 %v652, %v1357
      %v1376 = vmul.f32 %v658, %v1357
      %v1377 = vmul.f32 %v664, %v1357
      %v1378 = vmul.f32 %v670, %v1357
      %v1379 = vmul.f32 %v676, %v1357
      %v1380 = vmul.f32 %v682, %v1357
      %v1381 = vmul.f32 %v688, %v1357
      %v1382 = vmul.f32 %v694, %v1357
      %v1383 = vmul.f32 %v700, %v1357
      %v1384 = vmul.f32 %v706, %v1357
      %v1385 = vmul.f32 %v712, %v1357
      %v1386 = vmul.f32 %v1118, %v1357
      %v1387 = vmul.f32 %v1124, %v1357
      %v1388 = vmul.f32 %v1350, %v1357
      %v1389 = vmul.f32 %v1356, %v1357
      %v1390 = vadd.f32 %v1313, %v1358
      %v1391 = vadd.f32 %v1314, %v1359
      %v1392 = vadd.f32 %v1315, %v1360
      %v1393 = vadd.f32 %v1316, %v1361
      %v1394 = vadd.f32 %v1317, %v1362
      %v1395 = vadd.f32 %v1318, %v1363
      %v1396 = vadd.f32 %v1319, %v1364
      %v1397 = vadd.f32 %v1320, %v1365
      %v1398 = vadd.f32 %v1321, %v1366
      %v1399 = vadd.f32 %v1322, %v1367
      %v1400 = vadd.f32 %v1323, %v1368
      %v1401 = vadd.f32 %v1324, %v1369
      %v1402 = vadd.f32 %v1325, %v1370
      %v1403 = vadd.f32 %v1326, %v1371
      %v1404 = vadd.f32 %v1327, %v1372
      %v1405 = vadd.f32 %v1328, %v1373
      %v1406 = vadd.f32 %v1329, %v1374
      %v1407 = vadd.f32 %v1330, %v1375
      %v1408 = vadd.f32 %v1331, %v1376
      %v1409 = vadd.f32 %v1332, %v1377
      %v1410 = vadd.f32 %v1333, %v1378
      %v1411 = vadd.f32 %v1334, %v1379
      %v1412 = vadd.f32 %v1335, %v1380
      %v1413 = vadd.f32 %v1336, %v1381
      %v1414 = vadd.f32 %v1337, %v1382
      %v1415 = vadd.f32 %v1338, %v1383
      %v1416 = vadd.f32 %v1339, %v1384
      %v1417 = vadd.f32 %v1340, %v1385
      %v1418 = vadd.f32 %v1341, %v1386
      %v1419 = vadd.f32 %v1342, %v1387
      %v1420 = vadd.f32 %v1343, %v1388
      %v1421 = vadd.f32 %v1344, %v1389
      %v1422 = vlaneseq
      %v1423 = vshrl.u32 %v1422, 7
      %v1424 = vadd.s32 %v1423, 2
      %1425 = vset.pattern.permute.xlu0 %v1424
      %1426 = vperm.xlu0 %1425, %v1267
      %v1427 = vpop.permute.xlu0 %1426
      %v1428 = vlaneseq
      %v1429 = vshrl.u32 %v1428, 7
      %v1430 = vadd.s32 %v1429, 10
      %1431 = vset.pattern.permute.xlu0 %v1430
      %1432 = vperm.xlu0 %1431, %v1267
      %v1433 = vpop.permute.xlu0 %1432
      %v1434 = vperm.slane %v247, 0
      %v1435 = vmul.f32 %v807, %v1434
      %v1436 = vmul.f32 %v813, %v1434
      %v1437 = vmul.f32 %v819, %v1434
      %v1438 = vmul.f32 %v825, %v1434
      %v1439 = vmul.f32 %v831, %v1434
      %v1440 = vmul.f32 %v837, %v1434
      %v1441 = vmul.f32 %v843, %v1434
      %v1442 = vmul.f32 %v849, %v1434
      %v1443 = vmul.f32 %v855, %v1434
      %v1444 = vmul.f32 %v861, %v1434
      %v1445 = vmul.f32 %v867, %v1434
      %v1446 = vmul.f32 %v873, %v1434
      %v1447 = vmul.f32 %v879, %v1434
      %v1448 = vmul.f32 %v885, %v1434
      %v1449 = vmul.f32 %v891, %v1434
      %v1450 = vmul.f32 %v897, %v1434
      %v1451 = vmul.f32 %v903, %v1434
      %v1452 = vmul.f32 %v909, %v1434
      %v1453 = vmul.f32 %v915, %v1434
      %v1454 = vmul.f32 %v921, %v1434
      %v1455 = vmul.f32 %v927, %v1434
      %v1456 = vmul.f32 %v933, %v1434
      %v1457 = vmul.f32 %v939, %v1434
      %v1458 = vmul.f32 %v945, %v1434
      %v1459 = vmul.f32 %v951, %v1434
      %v1460 = vmul.f32 %v957, %v1434
      %v1461 = vmul.f32 %v963, %v1434
      %v1462 = vmul.f32 %v969, %v1434
      %v1463 = vmul.f32 %v1195, %v1434
      %v1464 = vmul.f32 %v1201, %v1434
      %v1465 = vmul.f32 %v1427, %v1434
      %v1466 = vmul.f32 %v1433, %v1434
      %v1467 = vadd.f32 %v1390, %v1435
      %v1468 = vadd.f32 %v1391, %v1436
      %v1469 = vadd.f32 %v1392, %v1437
      %v1470 = vadd.f32 %v1393, %v1438
      %v1471 = vadd.f32 %v1394, %v1439
      %v1472 = vadd.f32 %v1395, %v1440
      %v1473 = vadd.f32 %v1396, %v1441
      %v1474 = vadd.f32 %v1397, %v1442
      %v1475 = vadd.f32 %v1398, %v1443
      %v1476 = vadd.f32 %v1399, %v1444
      %v1477 = vadd.f32 %v1400, %v1445
      %v1478 = vadd.f32 %v1401, %v1446
      %v1479 = vadd.f32 %v1402, %v1447
      %v1480 = vadd.f32 %v1403, %v1448
      %v1481 = vadd.f32 %v1404, %v1449
      %v1482 = vadd.f32 %v1405, %v1450
      %v1483 = vadd.f32 %v1406, %v1451
      %v1484 = vadd.f32 %v1407, %v1452
      %v1485 = vadd.f32 %v1408, %v1453
      %v1486 = vadd.f32 %v1409, %v1454
      %v1487 = vadd.f32 %v1410, %v1455
      %v1488 = vadd.f32 %v1411, %v1456
      %v1489 = vadd.f32 %v1412, %v1457
      %v1490 = vadd.f32 %v1413, %v1458
      %v1491 = vadd.f32 %v1414, %v1459
      %v1492 = vadd.f32 %v1415, %v1460
      %v1493 = vadd.f32 %v1416, %v1461
      %v1494 = vadd.f32 %v1417, %v1462
      %v1495 = vadd.f32 %v1418, %v1463
      %v1496 = vadd.f32 %v1419, %v1464
      %v1497 = vadd.f32 %v1420, %v1465
      %v1498 = vadd.f32 %v1421, %v1466
      %v1499 = vld [vmem:[%s231] sm:$0x1]
      %v1501 = vperm.slane %v1499, 0
      %v1503 = vadd.f32 %v1467, %v1501
      %v1504 = vadd.f32 %v1468, %v1501
      %v1505 = vadd.f32 %v1469, %v1501
      %v1506 = vadd.f32 %v1470, %v1501
      %v1507 = vadd.f32 %v1471, %v1501
      %v1508 = vadd.f32 %v1472, %v1501
      %v1509 = vadd.f32 %v1473, %v1501
      %v1510 = vadd.f32 %v1474, %v1501
      %v1511 = vadd.f32 %v1475, %v1501
      %v1512 = vadd.f32 %v1476, %v1501
      %v1513 = vadd.f32 %v1477, %v1501
      %v1514 = vadd.f32 %v1478, %v1501
      %v1515 = vadd.f32 %v1479, %v1501
      %v1516 = vadd.f32 %v1480, %v1501
      %v1517 = vadd.f32 %v1481, %v1501
      %v1518 = vadd.f32 %v1482, %v1501
      %v1519 = vadd.f32 %v1483, %v1501
      %v1520 = vadd.f32 %v1484, %v1501
      %v1521 = vadd.f32 %v1485, %v1501
      %v1522 = vadd.f32 %v1486, %v1501
      %v1523 = vadd.f32 %v1487, %v1501
      %v1524 = vadd.f32 %v1488, %v1501
      %v1525 = vadd.f32 %v1489, %v1501
      %v1526 = vadd.f32 %v1490, %v1501
      %v1527 = vadd.f32 %v1491, %v1501
      %v1528 = vadd.f32 %v1492, %v1501
      %v1529 = vadd.f32 %v1493, %v1501
      %v1530 = vadd.f32 %v1494, %v1501
      %v1531 = vadd.f32 %v1495, %v1501
      %v1532 = vadd.f32 %v1496, %v1501
      %v1533 = vadd.f32 %v1497, %v1501
      %v1534 = vadd.f32 %v1498, %v1501
      %v1535 = vpack.c.bf16 %v1503, %v1503
      %v1536 = vpack.c.bf16 %v1504, %v1504
      %v1537 = vpack.c.bf16 %v1505, %v1505
      %v1538 = vpack.c.bf16 %v1506, %v1506
      %v1539 = vpack.c.bf16 %v1507, %v1507
      %v1540 = vpack.c.bf16 %v1508, %v1508
      %v1541 = vpack.c.bf16 %v1509, %v1509
      %v1542 = vpack.c.bf16 %v1510, %v1510
      %v1543 = vpack.c.bf16 %v1511, %v1511
      %v1544 = vpack.c.bf16 %v1512, %v1512
      %v1545 = vpack.c.bf16 %v1513, %v1513
      %v1546 = vpack.c.bf16 %v1514, %v1514
      %v1547 = vpack.c.bf16 %v1515, %v1515
      %v1548 = vpack.c.bf16 %v1516, %v1516
      %v1549 = vpack.c.bf16 %v1517, %v1517
      %v1550 = vpack.c.bf16 %v1518, %v1518
      %v1551 = vpack.c.bf16 %v1519, %v1519
      %v1552 = vpack.c.bf16 %v1520, %v1520
      %v1553 = vpack.c.bf16 %v1521, %v1521
      %v1554 = vpack.c.bf16 %v1522, %v1522
      %v1555 = vpack.c.bf16 %v1523, %v1523
      %v1556 = vpack.c.bf16 %v1524, %v1524
      %v1557 = vpack.c.bf16 %v1525, %v1525
      %v1558 = vpack.c.bf16 %v1526, %v1526
      %v1559 = vpack.c.bf16 %v1527, %v1527
      %v1560 = vpack.c.bf16 %v1528, %v1528
      %v1561 = vpack.c.bf16 %v1529, %v1529
      %v1562 = vpack.c.bf16 %v1530, %v1530
      %v1563 = vpack.c.bf16 %v1531, %v1531
      %v1564 = vpack.c.bf16 %v1532, %v1532
      %v1565 = vpack.c.bf16 %v1533, %v1533
      %v1566 = vpack.c.bf16 %v1534, %v1534
      %vm1567 = vcmask 27648
      %1568 = vst.msk [vmem:[%s240] sm:$0xf] %vm1567, %v1535
      %1569 = vst.msk [vmem:[%s240 + $0x4] sm:$0xf] %vm1567, %v1536
      %1570 = vst.msk [vmem:[%s240 + $0x8] sm:$0xf] %vm1567, %v1537
      %1571 = vst.msk [vmem:[%s240 + $0xc] sm:$0xf] %vm1567, %v1538
      %1572 = vst.msk [vmem:[%s240 + $0x10] sm:$0xf] %vm1567, %v1539
      %1573 = vst.msk [vmem:[%s240 + $0x14] sm:$0xf] %vm1567, %v1540
      %1574 = vst.msk [vmem:[%s240 + $0x18] sm:$0xf] %vm1567, %v1541
      %1575 = vst.msk [vmem:[%s240 + $0x1c] sm:$0xf] %vm1567, %v1542
      %1576 = vst.msk [vmem:[%s240 + $0x20] sm:$0xf] %vm1567, %v1543
      %1577 = vst.msk [vmem:[%s240 + $0x24] sm:$0xf] %vm1567, %v1544
      %1578 = vst.msk [vmem:[%s240 + $0x28] sm:$0xf] %vm1567, %v1545
      %1579 = vst.msk [vmem:[%s240 + $0x2c] sm:$0xf] %vm1567, %v1546
      %1580 = vst.msk [vmem:[%s240 + $0x30] sm:$0xf] %vm1567, %v1547
      %1581 = vst.msk [vmem:[%s240 + $0x34] sm:$0xf] %vm1567, %v1548
      %1582 = vst.msk [vmem:[%s240 + $0x38] sm:$0xf] %vm1567, %v1549
      %1583 = vst.msk [vmem:[%s240 + $0x3c] sm:$0xf] %vm1567, %v1550
      %1584 = vst.msk [vmem:[%s240 + $0x40] sm:$0xf] %vm1567, %v1551
      %1585 = vst.msk [vmem:[%s240 + $0x44] sm:$0xf] %vm1567, %v1552
      %1586 = vst.msk [vmem:[%s240 + $0x48] sm:$0xf] %vm1567, %v1553
      %1587 = vst.msk [vmem:[%s240 + $0x4c] sm:$0xf] %vm1567, %v1554
      %1588 = vst.msk [vmem:[%s240 + $0x50] sm:$0xf] %vm1567, %v1555
      %1589 = vst.msk [vmem:[%s240 + $0x54] sm:$0xf] %vm1567, %v1556
      %1590 = vst.msk [vmem:[%s240 + $0x58] sm:$0xf] %vm1567, %v1557
      %1591 = vst.msk [vmem:[%s240 + $0x5c] sm:$0xf] %vm1567, %v1558
      %1592 = vst.msk [vmem:[%s240 + $0x60] sm:$0xf] %vm1567, %v1559
      %1593 = vst.msk [vmem:[%s240 + $0x64] sm:$0xf] %vm1567, %v1560
      %1594 = vst.msk [vmem:[%s240 + $0x68] sm:$0xf] %vm1567, %v1561
      %1595 = vst.msk [vmem:[%s240 + $0x6c] sm:$0xf] %vm1567, %v1562
      %1596 = vst.msk [vmem:[%s240 + $0x70] sm:$0xf] %vm1567, %v1563
      %1597 = vst.msk [vmem:[%s240 + $0x74] sm:$0xf] %vm1567, %v1564
      %1598 = vst.msk [vmem:[%s240 + $0x78] sm:$0xf] %vm1567, %v1565
      %1599 = vst.msk [vmem:[%s240 + $0x7c] sm:$0xf] %vm1567, %v1566
      %p1600 = scmp.lt.s32.totalorder %s19, 1
      %s1601 = scalar_select %p1600, %s19, 1
      %p1602 = scmp.lt.s32.totalorder %s18, 1
      %s1603 = scalar_select %p1602, %s18, 1
      %s1604 = smul.addr %s1603, 32
      %s1605 = smul.addr %s1601, 64
      %s1606 = sadd.s32 %s1604, %s1605
      %s1607 = smul.addr %s1606, 4
      %s1608 = scalar_lea.vmem %s3, %s1607
      // Predicated region
      $region33: #{_lambda_.5} parent=31 // pred_check
        %p1609 = pneg %p126
      $region34: #{_lambda_.5} parent=31 // pred_check_branch
        %1611 = sbr.rel (%p1609) target = $region36
      $region35: #{_lambda_.5} parent=31 // pred_region
        _
      $region36: #{_lambda_.5} parent=31 // pred_fallthru
        _
    $region32: #{_lambda_.5} parent=5 // pred_fallthru
      _
    %p1612 = scmp.le.s32.totalorder 2, %s9
    // Predicated region
    $region37: #{_lambda_.5} parent=5 // pred_check
      %p1613 = pneg %p1612
    $region38: #{_lambda_.5} parent=5 // pred_check_branch
      %1615 = sbr.rel (%p1613) target = $region40
    $region39: #{_lambda_.5} parent=5 // pred_region
      %s1616 = ssub.s32 %s9, 2
      // Predicated region
      $region41: #{_lambda_.5} parent=39 // pred_check
        %p1617 = pneg %p132
      $region42: #{_lambda_.5} parent=39 // pred_check_branch
        %1619 = sbr.rel (%p1617) target = $region44
      $region43: #{_lambda_.5} parent=39 // pred_region
        %p1620 = scmp.lt.s32.totalorder %s21, 1
        %s1621 = scalar_select %p1620, %s21, 1
        %p1622 = scmp.lt.s32.totalorder %s20, 1
        %s1623 = scalar_select %p1622, %s20, 1
        %s1624 = smul.addr %s1623, 32
        %s1625 = smul.addr %s1621, 64
        %s1626 = sadd.s32 %s1624, %s1625
        %s1627 = smul.addr %s1626, 4
        %s1628 = scalar_lea.vmem %s3, %s1627
      $region44: #{_lambda_.5} parent=39 // pred_fallthru
        _
    $region40: #{_lambda_.5} parent=5 // pred_fallthru
      _
  $region6: #{_lambda_.5} parent=0 // loop_footer
    %s13 = sadd.s32 1, %s9
  $region7: #{_lambda_.5} parent=0 // loop_footer_branch
    %8 = sbr.rel target = $region3
  $region8: #{_lambda_.5} parent=0 // loop_exit
    _

// kernel: _lambda_.7
$region0: #{_lambda_.7}
  #allocation0 [shape = 'u32[]', space=smem, size = 0x4, offset = 0x4, fixed_abs, tag = 'smem constant byte address 0x4 - core index']
  #allocation1 [shape = 'u32[72,128]{1,0:T(1,128)}', space=vmem, size = 0x9000, scoped, tag = 'internal scratch']
  %s0 = inlined_call_operand.vmem [shape: bf16[16,256], index: 0, kind: input, shape index: {}]
  %s1 = inlined_call_operand.vmem [shape: f32[1,256], index: 1, kind: input, shape index: {}]
  %s2 = inlined_call_operand.vmem [shape: f32[1,256], index: 2, kind: input, shape index: {}]
  %s3 = inlined_call_operand.vmem [shape: bf16[256,128], index: 3, kind: input, shape index: {}]
  %s4 = inlined_call_operand.vmem [shape: f32[1,128], index: 4, kind: input, shape index: {}]
  %s5 = inlined_call_operand.vmem [shape: bf16[16,128], index: 5, kind: output, shape index: {}]
  %s6 = sld [smem:[#allocation0]]
  $region30: #{_lambda_.7} parent=0
    _
  %s8 = ssub.s32 1, %s6
  %s9 = scalar_select 0, %s8, %s6
  // Predicated region
  $region2: #{_lambda_.7} parent=0 // pred_check
    _
  $region3: #{_lambda_.7} parent=0 // pred_check_branch
    %11 = sbr.rel (0) target = $region5
  $region4: #{_lambda_.7} parent=0 // pred_region
    _
  $region5: #{_lambda_.7} parent=0 // pred_fallthru
    _
  // Predicated region
  $region6: #{_lambda_.7} parent=0 // pred_check
    _
  $region7: #{_lambda_.7} parent=0 // pred_check_branch
    %13 = sbr.rel (0) target = $region9
  $region8: #{_lambda_.7} parent=0 // pred_region
    _
  $region9: #{_lambda_.7} parent=0 // pred_fallthru
    _
  // Predicated region
  $region10: #{_lambda_.7} parent=0 // pred_check
    _
  $region11: #{_lambda_.7} parent=0 // pred_check_branch
    %15 = sbr.rel (0) target = $region13
  $region12: #{_lambda_.7} parent=0 // pred_region
    _
  $region13: #{_lambda_.7} parent=0 // pred_fallthru
    _
  // Predicated region
  $region14: #{_lambda_.7} parent=0 // pred_check
    _
  $region15: #{_lambda_.7} parent=0 // pred_check_branch
    %17 = sbr.rel (0) target = $region17
  $region16: #{_lambda_.7} parent=0 // pred_region
    _
  $region17: #{_lambda_.7} parent=0 // pred_fallthru
    _
  // Predicated region
  $region18: #{_lambda_.7} parent=0 // pred_check
    _
  $region19: #{_lambda_.7} parent=0 // pred_check_branch
    %19 = sbr.rel (0) target = $region21
  $region20: #{_lambda_.7} parent=0 // pred_region
    _
  $region21: #{_lambda_.7} parent=0 // pred_fallthru
    _
  %v20 = vld [vmem:[%s0] sm:$0xff]
  %v21 = vld [vmem:[%s0 + $0x8] sm:$0xff]
  %v22 = vunpack.c.l.bf16 %v20
  %v23 = vunpack.c.h.bf16 %v20
  %v24 = vunpack.c.l.bf16 %v21
  %v25 = vunpack.c.h.bf16 %v21
  %v26 = vld [vmem:[%s1] sm:$0x3]
  %v27 = vld [vmem:[%s2] sm:$0x3]
  %v28 = vadd.f32 %v22, %v23
  %29 = vadd.xlane.f32.xlu0 %v28
  %v30 = vpop.xlane.xlu0 %29
  %v31 = vadd.f32 %v24, %v25
  %32 = vadd.xlane.f32.xlu0 %v31
  %v33 = vpop.xlane.xlu0 %32
  %v34 = vrcp.pop 256.0
  %v35 = vmul.f32 256.0, %v34
  %v36 = vsub.f32 1.0, %v35
  %v37 = vmul.f32 %v34, %v36
  %v38 = vadd.f32 %v34, %v37
  %vm39 = vweird.f32 %v34
  %v40 = vsel %vm39, %v34, %v38
  %v41 = vmul.f32 %v30, %v40
  %v42 = vmul.f32 %v33, %v40
  %v43 = vsub.f32 %v22, %v41
  %v44 = vsub.f32 %v23, %v41
  %v45 = vsub.f32 %v24, %v42
  %v46 = vsub.f32 %v25, %v42
  %v47 = vmul.f32 %v43, %v43
  %v48 = vmul.f32 %v44, %v44
  %v49 = vmul.f32 %v45, %v45
  %v50 = vmul.f32 %v46, %v46
  %v51 = vadd.f32 %v47, %v48
  %52 = vadd.xlane.f32.xlu0 %v51
  %v53 = vpop.xlane.xlu0 %52
  %v54 = vadd.f32 %v49, %v50
  %55 = vadd.xlane.f32.xlu0 %v54
  %v56 = vpop.xlane.xlu0 %55
  %v57 = vmul.f32 %v53, %v40
  %v58 = vmul.f32 %v56, %v40
  %v59 = vadd.f32 %v57, 1e-05
  %v60 = vadd.f32 %v58, 1e-05
  %v61 = vrsqrt.pop %v59
  %v62 = vmul.f32 %v61, %v59
  %v63 = vmul.f32 %v62, %v61
  %v64 = vmul.f32 0.5, %v63
  %v65 = vsub.f32 1.5, %v64
  %v66 = vmul.f32 %v61, %v65
  %vm67 = vweird.f32 %v59
  %vm68 = vweird.f32 %v61
  %vm69 = vmor %vm67, %vm68
  %v70 = vsel %vm69, %v61, %v66
  %v71 = vrsqrt.pop %v60
  %v72 = vmul.f32 %v71, %v60
  %v73 = vmul.f32 %v72, %v71
  %v74 = vmul.f32 0.5, %v73
  %v75 = vsub.f32 1.5, %v74
  %v76 = vmul.f32 %v71, %v75
  %vm77 = vweird.f32 %v60
  %vm78 = vweird.f32 %v71
  %vm79 = vmor %vm77, %vm78
  %v80 = vsel %vm79, %v71, %v76
  %v81 = vmul.f32 %v43, %v70
  %v82 = vmul.f32 %v44, %v70
  %v83 = vmul.f32 %v45, %v80
  %v84 = vmul.f32 %v46, %v80
  %v86 = vperm.slane %v26, 0
  %v87 = vperm.slane %v26, 1
  %v90 = vmul.f32 %v81, %v86
  %v91 = vmul.f32 %v82, %v87
  %v92 = vmul.f32 %v83, %v86
  %v93 = vmul.f32 %v84, %v87
  %v95 = vperm.slane %v27, 0
  %v96 = vperm.slane %v27, 1
  %v99 = vadd.f32 %v90, %v95
  %v100 = vadd.f32 %v91, %v96
  %v101 = vadd.f32 %v92, %v95
  %v102 = vadd.f32 %v93, %v96
  %v103 = vpack.c.bf16 %v101, %v99
  %v104 = vpack.c.bf16 %v102, %v100
  %v105 = vld [vmem:[%s3] sm:$0xf]
  %v106 = vld [vmem:[%s3 + $0x4] sm:$0xf]
  %v107 = vld [vmem:[%s3 + $0x8] sm:$0xf]
  %v108 = vld [vmem:[%s3 + $0xc] sm:$0xf]
  %v109 = vld [vmem:[%s3 + $0x10] sm:$0xf]
  %v110 = vld [vmem:[%s3 + $0x14] sm:$0xf]
  %v111 = vld [vmem:[%s3 + $0x18] sm:$0xf]
  %v112 = vld [vmem:[%s3 + $0x1c] sm:$0xf]
  %v113 = vld [vmem:[%s3 + $0x20] sm:$0xf]
  %v114 = vld [vmem:[%s3 + $0x24] sm:$0xf]
  %v115 = vld [vmem:[%s3 + $0x28] sm:$0xf]
  %v116 = vld [vmem:[%s3 + $0x2c] sm:$0xf]
  %v117 = vld [vmem:[%s3 + $0x30] sm:$0xf]
  %v118 = vld [vmem:[%s3 + $0x34] sm:$0xf]
  %v119 = vld [vmem:[%s3 + $0x38] sm:$0xf]
  %v120 = vld [vmem:[%s3 + $0x3c] sm:$0xf]
  %v121 = vld [vmem:[%s3 + $0x40] sm:$0xf]
  %v122 = vld [vmem:[%s3 + $0x44] sm:$0xf]
  %v123 = vld [vmem:[%s3 + $0x48] sm:$0xf]
  %v124 = vld [vmem:[%s3 + $0x4c] sm:$0xf]
  %v125 = vld [vmem:[%s3 + $0x50] sm:$0xf]
  %v126 = vld [vmem:[%s3 + $0x54] sm:$0xf]
  %v127 = vld [vmem:[%s3 + $0x58] sm:$0xf]
  %v128 = vld [vmem:[%s3 + $0x5c] sm:$0xf]
  %v129 = vld [vmem:[%s3 + $0x60] sm:$0xf]
  %v130 = vld [vmem:[%s3 + $0x64] sm:$0xf]
  %v131 = vld [vmem:[%s3 + $0x68] sm:$0xf]
  %v132 = vld [vmem:[%s3 + $0x6c] sm:$0xf]
  %v133 = vld [vmem:[%s3 + $0x70] sm:$0xf]
  %v134 = vld [vmem:[%s3 + $0x74] sm:$0xf]
  %v135 = vld [vmem:[%s3 + $0x78] sm:$0xf]
  %v136 = vld [vmem:[%s3 + $0x7c] sm:$0xf]
  %v137 = vld [vmem:[%s4] sm:$0x1]
  %v139 = vperm.slane %v137, 0
  %v173 = vunpack.c.l.b16 %v105
  %v174 = vunpack.c.l.b16 %v106
  %v175 = vunpack.c.l.b16 %v107
  %v176 = vunpack.c.l.b16 %v108
  %v177 = vunpack.c.l.b16 %v109
  %v178 = vunpack.c.l.b16 %v110
  %v179 = vunpack.c.l.b16 %v111
  %v180 = vunpack.c.l.b16 %v112
  %v181 = vunpack.c.l.b16 %v113
  %v182 = vunpack.c.l.b16 %v114
  %v183 = vunpack.c.l.b16 %v115
  %v184 = vunpack.c.l.b16 %v116
  %v185 = vunpack.c.l.b16 %v117
  %v186 = vunpack.c.l.b16 %v118
  %v187 = vunpack.c.l.b16 %v119
  %v188 = vunpack.c.l.b16 %v120
  %v189 = vunpack.c.l.b16 %v121
  %v190 = vunpack.c.l.b16 %v122
  %v191 = vunpack.c.l.b16 %v123
  %v192 = vunpack.c.l.b16 %v124
  %v193 = vunpack.c.l.b16 %v125
  %v194 = vunpack.c.l.b16 %v126
  %v195 = vunpack.c.l.b16 %v127
  %v196 = vunpack.c.l.b16 %v128
  %v197 = vunpack.c.l.b16 %v129
  %v198 = vunpack.c.l.b16 %v130
  %v199 = vunpack.c.l.b16 %v131
  %v200 = vunpack.c.l.b16 %v132
  %v201 = vunpack.c.l.b16 %v133
  %v202 = vunpack.c.l.b16 %v134
  %v203 = vunpack.c.l.b16 %v135
  %v204 = vunpack.c.l.b16 %v136
  %v205 = vpack.c.b16 %v174, %v173
  %v206 = vpack.c.b16 %v176, %v175
  %v207 = vpack.c.b16 %v178, %v177
  %v208 = vpack.c.b16 %v180, %v179
  %v209 = vpack.c.b16 %v182, %v181
  %v210 = vpack.c.b16 %v184, %v183
  %v211 = vpack.c.b16 %v186, %v185
  %v212 = vpack.c.b16 %v188, %v187
  %v213 = vpack.c.b16 %v190, %v189
  %v214 = vpack.c.b16 %v192, %v191
  %v215 = vpack.c.b16 %v194, %v193
  %v216 = vpack.c.b16 %v196, %v195
  %v217 = vpack.c.b16 %v198, %v197
  %v218 = vpack.c.b16 %v200, %v199
  %v219 = vpack.c.b16 %v202, %v201
  %v220 = vpack.c.b16 %v204, %v203
  %237 = vmatpush.bf16.msra.mxu0 %v212
  %238 = vmatpush.bf16.msra.mxu0 %v211
  %239 = vmatpush.bf16.msra.mxu0 %v210
  %240 = vmatpush.bf16.msra.mxu0 %v209
  %241 = vmatpush.bf16.msra.mxu0 %v208
  %242 = vmatpush.bf16.msra.mxu0 %v207
  %243 = vmatpush.bf16.msra.mxu0 %v206
  %244 = vmatpush.bf16.msra.mxu0 %v205
  %245 = vmatmul.bf16.gmra.mxu0 %v103
  %v246 = vpop.f32.mrf.mxu0
  %v247 = vadd.f32 %v139, %v246
  %v248 = vpop.f32.mrf.mxu0
  %v249 = vadd.f32 %v139, %v248
  %250 = vdwg.mxu0
  %251 = vmatpush.bf16.msra.mxu0 %v220
  %252 = vmatpush.bf16.msra.mxu0 %v219
  %253 = vmatpush.bf16.msra.mxu0 %v218
  %254 = vmatpush.bf16.msra.mxu0 %v217
  %255 = vmatpush.bf16.msra.mxu0 %v216
  %256 = vmatpush.bf16.msra.mxu0 %v215
  %257 = vmatpush.bf16.msra.mxu0 %v214
  %258 = vmatpush.bf16.msra.mxu0 %v213
  %259 = vmatmul.bf16.gmra.mxu0 %v104
  %v260 = vpop.f32.mrf.mxu0
  %v261 = vadd.f32 %v247, %v260
  %v262 = vpop.f32.mrf.mxu0
  %v263 = vadd.f32 %v249, %v262
  %264 = vdwg.mxu0
  %v265 = vpack.c.bf16 %v261, %v261
  %v266 = vpack.c.bf16 %v263, %v263
  %267 = vst [vmem:[%s5] sm:$0xf] %v265
  %268 = vst [vmem:[%s5 + $0x4] sm:$0xf] %v266
  // Predicated region
  $region22: #{_lambda_.7} parent=0 // pred_check
    _
  $region23: #{_lambda_.7} parent=0 // pred_check_branch
    %270 = sbr.rel (0) target = $region25
  $region24: #{_lambda_.7} parent=0 // pred_region
    _
  $region25: #{_lambda_.7} parent=0 // pred_fallthru
    _
  // Predicated region
  $region26: #{_lambda_.7} parent=0 // pred_check
    _
  $region27: #{_lambda_.7} parent=0 // pred_check_branch
    %272 = sbr.rel (0) target = $region29
  $region28: #{_lambda_.7} parent=0 // pred_region
    _
  $region29: #{_lambda_.7} parent=0 // pred_fallthru
    _

// kernel: _lambda_.6
$region0: #{_lambda_.6}
  #allocation0 [shape = 'u32[]', space=smem, size = 0x4, offset = 0x4, fixed_abs, tag = 'smem constant byte address 0x4 - core index']
  #allocation1 [shape = 'u32[72,128]{1,0:T(1,128)}', space=vmem, size = 0x9000, scoped, tag = 'internal scratch']
  %s0 = inlined_call_operand.vmem [shape: bf16[8,8,64], index: 0, kind: input, shape index: {}]
  %s1 = inlined_call_operand.vmem [shape: f32[1,64], index: 1, kind: input, shape index: {}, may-alias: {1,7}]
  %s2 = inlined_call_operand.vmem [shape: f32[1,64], index: 2, kind: input, shape index: {}, may-alias: {2,6,8,12}]
  %s3 = inlined_call_operand.vmem [shape: bf16[64,192], index: 3, kind: input, shape index: {}]
  %s4 = inlined_call_operand.vmem [shape: f32[1,192], index: 4, kind: input, shape index: {}]
  %s5 = inlined_call_operand.vmem [shape: bf16[64,64], index: 5, kind: input, shape index: {}]
  %s6 = inlined_call_operand.vmem [shape: f32[1,64], index: 6, kind: input, shape index: {}, may-alias: {2,6,8,12}]
  %s7 = inlined_call_operand.vmem [shape: f32[1,64], index: 7, kind: input, shape index: {}, may-alias: {1,7}]
  %s8 = inlined_call_operand.vmem [shape: f32[1,64], index: 8, kind: input, shape index: {}, may-alias: {2,6,8,12}]
  %s9 = inlined_call_operand.vmem [shape: bf16[64,256], index: 9, kind: input, shape index: {}]
  %s10 = inlined_call_operand.vmem [shape: f32[1,256], index: 10, kind: input, shape index: {}]
  %s11 = inlined_call_operand.vmem [shape: bf16[256,64], index: 11, kind: input, shape index: {}]
  %s12 = inlined_call_operand.vmem [shape: f32[1,64], index: 12, kind: input, shape index: {}, may-alias: {2,6,8,12}]
  %s13 = inlined_call_operand.vmem [shape: bf16[8,8,64], index: 13, kind: output, shape index: {}]
  %s14 = sld [smem:[#allocation0]]
  $region85: #{_lambda_.6} parent=0
    _
  %s16 = ssub.s32 1, %s14
  %s17 = scalar_select 0, %s16, %s14
  loop: start=0, step=1, limit=4
  $region2: #{_lambda_.6} parent=0 // loop_pre_header
    _
  $region3: #{_lambda_.6} parent=0 // loop_header
    %s19 = sphi 0, %s23
    %p20 = scmp.ge.s32.totalorder %s19, 4
    %s29 = sphi 0, %s31
    %s32 = sphi 0, %s29
    %s33 = sphi 0, %s32
    %s49 = sphi 0, %s33
    %s53 = sphi 0, %s53
    %s55 = sphi 0, %s53
    %s56 = sphi 0, %s55
    %s70 = sphi 0, %s56
    %s74 = sphi 0, %s74
    %s76 = sphi 0, %s74
    %s77 = sphi 0, %s76
    %s91 = sphi 0, %s77
    %s95 = sphi 0, %s95
    %s97 = sphi 0, %s95
    %s98 = sphi 0, %s97
    %s112 = sphi 0, %s98
    %s116 = sphi 0, %s116
    %s118 = sphi 0, %s116
    %s119 = sphi 0, %s118
    %s133 = sphi 0, %s119
    %s137 = sphi 0, %s137
    %s139 = sphi 0, %s137
    %s140 = sphi 0, %s139
    %s154 = sphi 0, %s140
    %s158 = sphi 0, %s158
    %s160 = sphi 0, %s158
    %s161 = sphi 0, %s160
    %s175 = sphi 0, %s161
    %s179 = sphi 0, %s179
    %s181 = sphi 0, %s179
    %s182 = sphi 0, %s181
    %s196 = sphi 0, %s182
    %s200 = sphi 0, %s200
    %s202 = sphi 0, %s200
    %s203 = sphi 0, %s202
    %s217 = sphi 0, %s203
    %s221 = sphi 0, %s221
    %s223 = sphi 0, %s221
    %s224 = sphi 0, %s223
    %s238 = sphi 0, %s224
    %s242 = sphi 0, %s242
    %s244 = sphi 0, %s242
    %s245 = sphi 0, %s244
    %s259 = sphi 0, %s245
    %s263 = sphi 0, %s263
    %s265 = sphi 0, %s263
    %s266 = sphi 0, %s265
    %s280 = sphi 0, %s266
    %s284 = sphi 0, %s284
    %s286 = sphi 0, %s284
    %s287 = sphi 0, %s286
    %s301 = sphi 0, %s287
    %s307 = sphi 0, %s309
    %s310 = sphi 0, %s307
    %s311 = sphi 0, %s310
    %s327 = sphi 0, %s311
  $region4: #{_lambda_.6} parent=0 // loop_header_branch
    %22 = sbr.rel (%p20) target = $region8
  $region5: #{_lambda_.6} parent=0 // loop_body
    %s24 = ssub.s32 %s19, 1
    %s25 = ssub.s32 %s19, 2
    %s26 = sadd.s32 %s19, 1
    %s27 = ssub.s32 %s19, %s26
    %p28 = scmp.eq.s32.totalorder %s27, 0
    %s30 = sadd.s32 %s29, 1
    %s31 = scalar_select %p28, %s29, %s30
    %p34 = pneg %p28
    %p35 = scmp.eq.s32.totalorder %s19, 1
    %p36 = por %p34, %p35
    %p37 = scmp.ne.s32.totalorder %s29, %s32
    %p38 = scmp.eq.s32.totalorder %s19, 0
    %p39 = por %p37, %p38
    %p40 = scmp.ne.s32.totalorder %s29, %s32
    %p41 = scmp.eq.s32.totalorder %s24, 1
    %p42 = por %p40, %p41
    %p43 = scmp.ne.s32.totalorder %s32, %s33
    %p44 = scmp.eq.s32.totalorder %s24, 0
    %p45 = por %p43, %p44
    %p46 = scmp.ne.s32.totalorder %s32, %s33
    %p47 = scmp.eq.s32.totalorder %s25, 1
    %p48 = por %p46, %p47
    %p50 = scmp.ne.s32.totalorder %s33, %s49
    %p51 = scmp.eq.s32.totalorder %s25, 0
    %p52 = por %p50, %p51
    %s54 = sadd.s32 %s53, 1
    %p57 = scmp.eq.s32.totalorder %s19, 1
    %p58 = scmp.ne.s32.totalorder %s53, %s55
    %p59 = scmp.eq.s32.totalorder %s19, 0
    %p60 = por %p58, %p59
    %p61 = scmp.ne.s32.totalorder %s53, %s55
    %p62 = scmp.eq.s32.totalorder %s24, 1
    %p63 = por %p61, %p62
    %p64 = scmp.ne.s32.totalorder %s55, %s56
    %p65 = scmp.eq.s32.totalorder %s24, 0
    %p66 = por %p64, %p65
    %p67 = scmp.ne.s32.totalorder %s55, %s56
    %p68 = scmp.eq.s32.totalorder %s25, 1
    %p69 = por %p67, %p68
    %p71 = scmp.ne.s32.totalorder %s56, %s70
    %p72 = scmp.eq.s32.totalorder %s25, 0
    %p73 = por %p71, %p72
    %s75 = sadd.s32 %s74, 1
    %p78 = scmp.eq.s32.totalorder %s19, 1
    %p79 = scmp.ne.s32.totalorder %s74, %s76
    %p80 = scmp.eq.s32.totalorder %s19, 0
    %p81 = por %p79, %p80
    %p82 = scmp.ne.s32.totalorder %s74, %s76
    %p83 = scmp.eq.s32.totalorder %s24, 1
    %p84 = por %p82, %p83
    %p85 = scmp.ne.s32.totalorder %s76, %s77
    %p86 = scmp.eq.s32.totalorder %s24, 0
    %p87 = por %p85, %p86
    %p88 = scmp.ne.s32.totalorder %s76, %s77
    %p89 = scmp.eq.s32.totalorder %s25, 1
    %p90 = por %p88, %p89
    %p92 = scmp.ne.s32.totalorder %s77, %s91
    %p93 = scmp.eq.s32.totalorder %s25, 0
    %p94 = por %p92, %p93
    %s96 = sadd.s32 %s95, 1
    %p99 = scmp.eq.s32.totalorder %s19, 1
    %p100 = scmp.ne.s32.totalorder %s95, %s97
    %p101 = scmp.eq.s32.totalorder %s19, 0
    %p102 = por %p100, %p101
    %p103 = scmp.ne.s32.totalorder %s95, %s97
    %p104 = scmp.eq.s32.totalorder %s24, 1
    %p105 = por %p103, %p104
    %p106 = scmp.ne.s32.totalorder %s97, %s98
    %p107 = scmp.eq.s32.totalorder %s24, 0
    %p108 = por %p106, %p107
    %p109 = scmp.ne.s32.totalorder %s97, %s98
    %p110 = scmp.eq.s32.totalorder %s25, 1
    %p111 = por %p109, %p110
    %p113 = scmp.ne.s32.totalorder %s98, %s112
    %p114 = scmp.eq.s32.totalorder %s25, 0
    %p115 = por %p113, %p114
    %s117 = sadd.s32 %s116, 1
    %p120 = scmp.eq.s32.totalorder %s19, 1
    %p121 = scmp.ne.s32.totalorder %s116, %s118
    %p122 = scmp.eq.s32.totalorder %s19, 0
    %p123 = por %p121, %p122
    %p124 = scmp.ne.s32.totalorder %s116, %s118
    %p125 = scmp.eq.s32.totalorder %s24, 1
    %p126 = por %p124, %p125
    %p127 = scmp.ne.s32.totalorder %s118, %s119
    %p128 = scmp.eq.s32.totalorder %s24, 0
    %p129 = por %p127, %p128
    %p130 = scmp.ne.s32.totalorder %s118, %s119
    %p131 = scmp.eq.s32.totalorder %s25, 1
    %p132 = por %p130, %p131
    %p134 = scmp.ne.s32.totalorder %s119, %s133
    %p135 = scmp.eq.s32.totalorder %s25, 0
    %p136 = por %p134, %p135
    %s138 = sadd.s32 %s137, 1
    %p141 = scmp.eq.s32.totalorder %s19, 1
    %p142 = scmp.ne.s32.totalorder %s137, %s139
    %p143 = scmp.eq.s32.totalorder %s19, 0
    %p144 = por %p142, %p143
    %p145 = scmp.ne.s32.totalorder %s137, %s139
    %p146 = scmp.eq.s32.totalorder %s24, 1
    %p147 = por %p145, %p146
    %p148 = scmp.ne.s32.totalorder %s139, %s140
    %p149 = scmp.eq.s32.totalorder %s24, 0
    %p150 = por %p148, %p149
    %p151 = scmp.ne.s32.totalorder %s139, %s140
    %p152 = scmp.eq.s32.totalorder %s25, 1
    %p153 = por %p151, %p152
    %p155 = scmp.ne.s32.totalorder %s140, %s154
    %p156 = scmp.eq.s32.totalorder %s25, 0
    %p157 = por %p155, %p156
    %s159 = sadd.s32 %s158, 1
    %p162 = scmp.eq.s32.totalorder %s19, 1
    %p163 = scmp.ne.s32.totalorder %s158, %s160
    %p164 = scmp.eq.s32.totalorder %s19, 0
    %p165 = por %p163, %p164
    %p166 = scmp.ne.s32.totalorder %s158, %s160
    %p167 = scmp.eq.s32.totalorder %s24, 1
    %p168 = por %p166, %p167
    %p169 = scmp.ne.s32.totalorder %s160, %s161
    %p170 = scmp.eq.s32.totalorder %s24, 0
    %p171 = por %p169, %p170
    %p172 = scmp.ne.s32.totalorder %s160, %s161
    %p173 = scmp.eq.s32.totalorder %s25, 1
    %p174 = por %p172, %p173
    %p176 = scmp.ne.s32.totalorder %s161, %s175
    %p177 = scmp.eq.s32.totalorder %s25, 0
    %p178 = por %p176, %p177
    %s180 = sadd.s32 %s179, 1
    %p183 = scmp.eq.s32.totalorder %s19, 1
    %p184 = scmp.ne.s32.totalorder %s179, %s181
    %p185 = scmp.eq.s32.totalorder %s19, 0
    %p186 = por %p184, %p185
    %p187 = scmp.ne.s32.totalorder %s179, %s181
    %p188 = scmp.eq.s32.totalorder %s24, 1
    %p189 = por %p187, %p188
    %p190 = scmp.ne.s32.totalorder %s181, %s182
    %p191 = scmp.eq.s32.totalorder %s24, 0
    %p192 = por %p190, %p191
    %p193 = scmp.ne.s32.totalorder %s181, %s182
    %p194 = scmp.eq.s32.totalorder %s25, 1
    %p195 = por %p193, %p194
    %p197 = scmp.ne.s32.totalorder %s182, %s196
    %p198 = scmp.eq.s32.totalorder %s25, 0
    %p199 = por %p197, %p198
    %s201 = sadd.s32 %s200, 1
    %p204 = scmp.eq.s32.totalorder %s19, 1
    %p205 = scmp.ne.s32.totalorder %s200, %s202
    %p206 = scmp.eq.s32.totalorder %s19, 0
    %p207 = por %p205, %p206
    %p208 = scmp.ne.s32.totalorder %s200, %s202
    %p209 = scmp.eq.s32.totalorder %s24, 1
    %p210 = por %p208, %p209
    %p211 = scmp.ne.s32.totalorder %s202, %s203
    %p212 = scmp.eq.s32.totalorder %s24, 0
    %p213 = por %p211, %p212
    %p214 = scmp.ne.s32.totalorder %s202, %s203
    %p215 = scmp.eq.s32.totalorder %s25, 1
    %p216 = por %p214, %p215
    %p218 = scmp.ne.s32.totalorder %s203, %s217
    %p219 = scmp.eq.s32.totalorder %s25, 0
    %p220 = por %p218, %p219
    %s222 = sadd.s32 %s221, 1
    %p225 = scmp.eq.s32.totalorder %s19, 1
    %p226 = scmp.ne.s32.totalorder %s221, %s223
    %p227 = scmp.eq.s32.totalorder %s19, 0
    %p228 = por %p226, %p227
    %p229 = scmp.ne.s32.totalorder %s221, %s223
    %p230 = scmp.eq.s32.totalorder %s24, 1
    %p231 = por %p229, %p230
    %p232 = scmp.ne.s32.totalorder %s223, %s224
    %p233 = scmp.eq.s32.totalorder %s24, 0
    %p234 = por %p232, %p233
    %p235 = scmp.ne.s32.totalorder %s223, %s224
    %p236 = scmp.eq.s32.totalorder %s25, 1
    %p237 = por %p235, %p236
    %p239 = scmp.ne.s32.totalorder %s224, %s238
    %p240 = scmp.eq.s32.totalorder %s25, 0
    %p241 = por %p239, %p240
    %s243 = sadd.s32 %s242, 1
    %p246 = scmp.eq.s32.totalorder %s19, 1
    %p247 = scmp.ne.s32.totalorder %s242, %s244
    %p248 = scmp.eq.s32.totalorder %s19, 0
    %p249 = por %p247, %p248
    %p250 = scmp.ne.s32.totalorder %s242, %s244
    %p251 = scmp.eq.s32.totalorder %s24, 1
    %p252 = por %p250, %p251
    %p253 = scmp.ne.s32.totalorder %s244, %s245
    %p254 = scmp.eq.s32.totalorder %s24, 0
    %p255 = por %p253, %p254
    %p256 = scmp.ne.s32.totalorder %s244, %s245
    %p257 = scmp.eq.s32.totalorder %s25, 1
    %p258 = por %p256, %p257
    %p260 = scmp.ne.s32.totalorder %s245, %s259
    %p261 = scmp.eq.s32.totalorder %s25, 0
    %p262 = por %p260, %p261
    %s264 = sadd.s32 %s263, 1
    %p267 = scmp.eq.s32.totalorder %s19, 1
    %p268 = scmp.ne.s32.totalorder %s263, %s265
    %p269 = scmp.eq.s32.totalorder %s19, 0
    %p270 = por %p268, %p269
    %p271 = scmp.ne.s32.totalorder %s263, %s265
    %p272 = scmp.eq.s32.totalorder %s24, 1
    %p273 = por %p271, %p272
    %p274 = scmp.ne.s32.totalorder %s265, %s266
    %p275 = scmp.eq.s32.totalorder %s24, 0
    %p276 = por %p274, %p275
    %p277 = scmp.ne.s32.totalorder %s265, %s266
    %p278 = scmp.eq.s32.totalorder %s25, 1
    %p279 = por %p277, %p278
    %p281 = scmp.ne.s32.totalorder %s266, %s280
    %p282 = scmp.eq.s32.totalorder %s25, 0
    %p283 = por %p281, %p282
    %s285 = sadd.s32 %s284, 1
    %p288 = scmp.eq.s32.totalorder %s19, 1
    %p289 = scmp.ne.s32.totalorder %s284, %s286
    %p290 = scmp.eq.s32.totalorder %s19, 0
    %p291 = por %p289, %p290
    %p292 = scmp.ne.s32.totalorder %s284, %s286
    %p293 = scmp.eq.s32.totalorder %s24, 1
    %p294 = por %p292, %p293
    %p295 = scmp.ne.s32.totalorder %s286, %s287
    %p296 = scmp.eq.s32.totalorder %s24, 0
    %p297 = por %p295, %p296
    %p298 = scmp.ne.s32.totalorder %s286, %s287
    %p299 = scmp.eq.s32.totalorder %s25, 1
    %p300 = por %p298, %p299
    %p302 = scmp.ne.s32.totalorder %s287, %s301
    %p303 = scmp.eq.s32.totalorder %s25, 0
    %p304 = por %p302, %p303
    %s305 = ssub.s32 %s19, %s26
    %p306 = scmp.eq.s32.totalorder %s305, 0
    %s308 = sadd.s32 %s307, 1
    %s309 = scalar_select %p306, %s307, %s308
    %p312 = pneg %p306
    %p313 = scmp.eq.s32.totalorder %s19, 1
    %p314 = por %p312, %p313
    %p315 = scmp.ne.s32.totalorder %s307, %s310
    %p316 = scmp.eq.s32.totalorder %s19, 0
    %p317 = por %p315, %p316
    %p318 = scmp.ne.s32.totalorder %s307, %s310
    %p319 = scmp.eq.s32.totalorder %s24, 1
    %p320 = por %p318, %p319
    %p321 = scmp.ne.s32.totalorder %s310, %s311
    %p322 = scmp.eq.s32.totalorder %s24, 0
    %p323 = por %p321, %p322
    %p324 = scmp.ne.s32.totalorder %s310, %s311
    %p325 = scmp.eq.s32.totalorder %s25, 1
    %p326 = por %p324, %p325
    %p328 = scmp.ne.s32.totalorder %s311, %s327
    %p329 = scmp.eq.s32.totalorder %s25, 0
    %p330 = por %p328, %p329
    %p331 = scmp.le.s32.totalorder 1, %s19
    %p332 = scmp.lt.s32.totalorder %s19, 3
    %p333 = pnand %p331, %p332
    %p334 = pneg %p333
    // Predicated region
    $region9: #{_lambda_.6} parent=5 // pred_check
      _
    $region10: #{_lambda_.6} parent=5 // pred_check_branch
      %336 = sbr.rel (%p333) target = $region12
    $region11: #{_lambda_.6} parent=5 // pred_region
      %s337 = ssub.s32 %s19, 1
      // Predicated region
      $region13: #{_lambda_.6} parent=11 // pred_check
        %p338 = pneg %p66
      $region14: #{_lambda_.6} parent=11 // pred_check_branch
        %340 = sbr.rel (%p338) target = $region16
      $region15: #{_lambda_.6} parent=11 // pred_region
        _
      $region16: #{_lambda_.6} parent=11 // pred_fallthru
        _
      // Predicated region
      $region17: #{_lambda_.6} parent=11 // pred_check
        %p341 = pneg %p87
      $region18: #{_lambda_.6} parent=11 // pred_check_branch
        %343 = sbr.rel (%p341) target = $region20
      $region19: #{_lambda_.6} parent=11 // pred_region
        _
      $region20: #{_lambda_.6} parent=11 // pred_fallthru
        _
      // Predicated region
      $region21: #{_lambda_.6} parent=11 // pred_check
        %p344 = pneg %p108
      $region22: #{_lambda_.6} parent=11 // pred_check_branch
        %346 = sbr.rel (%p344) target = $region24
      $region23: #{_lambda_.6} parent=11 // pred_region
        _
      $region24: #{_lambda_.6} parent=11 // pred_fallthru
        _
      // Predicated region
      $region25: #{_lambda_.6} parent=11 // pred_check
        %p347 = pneg %p129
      $region26: #{_lambda_.6} parent=11 // pred_check_branch
        %349 = sbr.rel (%p347) target = $region28
      $region27: #{_lambda_.6} parent=11 // pred_region
        _
      $region28: #{_lambda_.6} parent=11 // pred_fallthru
        _
      // Predicated region
      $region29: #{_lambda_.6} parent=11 // pred_check
        %p350 = pneg %p150
      $region30: #{_lambda_.6} parent=11 // pred_check_branch
        %352 = sbr.rel (%p350) target = $region32
      $region31: #{_lambda_.6} parent=11 // pred_region
        _
      $region32: #{_lambda_.6} parent=11 // pred_fallthru
        _
      // Predicated region
      $region33: #{_lambda_.6} parent=11 // pred_check
        %p353 = pneg %p171
      $region34: #{_lambda_.6} parent=11 // pred_check_branch
        %355 = sbr.rel (%p353) target = $region36
      $region35: #{_lambda_.6} parent=11 // pred_region
        _
      $region36: #{_lambda_.6} parent=11 // pred_fallthru
        _
      // Predicated region
      $region37: #{_lambda_.6} parent=11 // pred_check
        %p356 = pneg %p192
      $region38: #{_lambda_.6} parent=11 // pred_check_branch
        %358 = sbr.rel (%p356) target = $region40
      $region39: #{_lambda_.6} parent=11 // pred_region
        _
      $region40: #{_lambda_.6} parent=11 // pred_fallthru
        _
      // Predicated region
      $region41: #{_lambda_.6} parent=11 // pred_check
        %p359 = pneg %p213
      $region42: #{_lambda_.6} parent=11 // pred_check_branch
        %361 = sbr.rel (%p359) target = $region44
      $region43: #{_lambda_.6} parent=11 // pred_region
        _
      $region44: #{_lambda_.6} parent=11 // pred_fallthru
        _
      // Predicated region
      $region45: #{_lambda_.6} parent=11 // pred_check
        %p362 = pneg %p234
      $region46: #{_lambda_.6} parent=11 // pred_check_branch
        %364 = sbr.rel (%p362) target = $region48
      $region47: #{_lambda_.6} parent=11 // pred_region
        _
      $region48: #{_lambda_.6} parent=11 // pred_fallthru
        _
      // Predicated region
      $region49: #{_lambda_.6} parent=11 // pred_check
        %p365 = pneg %p255
      $region50: #{_lambda_.6} parent=11 // pred_check_branch
        %367 = sbr.rel (%p365) target = $region52
      $region51: #{_lambda_.6} parent=11 // pred_region
        _
      $region52: #{_lambda_.6} parent=11 // pred_fallthru
        _
      // Predicated region
      $region53: #{_lambda_.6} parent=11 // pred_check
        %p368 = pneg %p276
      $region54: #{_lambda_.6} parent=11 // pred_check_branch
        %370 = sbr.rel (%p368) target = $region56
      $region55: #{_lambda_.6} parent=11 // pred_region
        _
      $region56: #{_lambda_.6} parent=11 // pred_fallthru
        _
      // Predicated region
      $region57: #{_lambda_.6} parent=11 // pred_check
        %p371 = pneg %p297
      $region58: #{_lambda_.6} parent=11 // pred_check_branch
        %373 = sbr.rel (%p371) target = $region60
      $region59: #{_lambda_.6} parent=11 // pred_region
        _
      $region60: #{_lambda_.6} parent=11 // pred_fallthru
        _
    $region12: #{_lambda_.6} parent=5 // pred_fallthru
      _
    %p374 = scmp.lt.s32.totalorder %s19, 2
    // Predicated region
    $region61: #{_lambda_.6} parent=5 // pred_check
      %p375 = pneg %p374
    $region62: #{_lambda_.6} parent=5 // pred_check_branch
      %377 = sbr.rel (%p375) target = $region64
    $region63: #{_lambda_.6} parent=5 // pred_region
      // Predicated region
      $region65: #{_lambda_.6} parent=63 // pred_check
        %p378 = pneg %p39
      $region66: #{_lambda_.6} parent=63 // pred_check_branch
        %380 = sbr.rel (%p378) target = $region68
      $region67: #{_lambda_.6} parent=63 // pred_region
        %s381 = smul.u32 4, %s19
        %p382 = scmp.lt.s32.totalorder %s381, 7
        %s383 = scalar_select %p382, %s381, 7
        %s384 = smul.addr %s383, 4
        %s385 = scalar_lea.vmem %s0, %s384
        %s386 = smul.u32 4, %s19
      $region68: #{_lambda_.6} parent=63 // pred_fallthru
        _
    $region64: #{_lambda_.6} parent=5 // pred_fallthru
      _
    %p387 = scmp.le.s32.totalorder 1, %s19
    %p388 = scmp.lt.s32.totalorder %s19, 3
    %p389 = pnand %p387, %p388
    %p390 = pneg %p389
    // Predicated region
    $region69: #{_lambda_.6} parent=5 // pred_check
      _
    $region70: #{_lambda_.6} parent=5 // pred_check_branch
      %392 = sbr.rel (%p389) target = $region72
    $region71: #{_lambda_.6} parent=5 // pred_region
      %s393 = ssub.s32 %s19, 1
      %s394 = smul.u32 4, %s24
      %p395 = scmp.lt.s32.totalorder %s394, 7
      %s396 = scalar_select %p395, %s394, 7
      %s397 = smul.addr %s396, 4
      %s398 = scalar_lea.vmem %s0, %s397
      %p399 = pneg %p45
      %p400 = pneg %p42
      %p401 = pneg %p66
      %p402 = pneg %p63
      %p403 = pneg %p87
      %p404 = pneg %p84
      %p405 = pneg %p108
      %p406 = pneg %p105
      %p407 = pneg %p129
      %p408 = pneg %p126
      %p409 = pneg %p150
      %p410 = pneg %p147
      %p411 = pneg %p171
      %p412 = pneg %p168
      %p413 = pneg %p192
      %p414 = pneg %p189
      %p415 = pneg %p213
      %p416 = pneg %p210
      %p417 = pneg %p234
      %p418 = pneg %p231
      %p419 = pneg %p255
      %p420 = pneg %p252
      %p421 = pneg %p276
      %p422 = pneg %p273
      %p423 = pneg %p297
      %p424 = pneg %p294
      %p425 = pneg %p323
      %p426 = pneg %p320
      %s427 = smul.u32 4, %s24
      %p428 = scmp.lt.s32.totalorder %s427, 7
      %s429 = scalar_select %p428, %s427, 7
      %s430 = smul.addr %s429, 4
      %s431 = scalar_lea.vmem %s13, %s430
      %s432 = smul.u32 4, %s24
      %p433 = scmp.lt.s32.totalorder %s432, 7
      %s434 = scalar_select %p433, %s432, 7
      %s435 = smul.addr %s434, 4
      %s436 = scalar_lea.vmem %s0, %s435
      %s437 = smul.u32 4, %s24
      %s438 = smul.u32 4, %s24
      %p439 = scmp.lt.s32.totalorder %s438, 7
      %s440 = scalar_select %p439, %s438, 7
      %s441 = smul.addr %s440, 4
      %s442 = scalar_lea.vmem %s13, %s441
      %s443 = smul.u32 4, %s24
      %v445 = vld [vmem:[%s436] sm:$0xf]
      %v446 = vld [vmem:[%s436 + $0x4] sm:$0xf]
      %v447 = vld [vmem:[%s436 + $0x8] sm:$0xf]
      %v448 = vld [vmem:[%s436 + $0xc] sm:$0xf]
      %v449 = vunpack.c.l.bf16 %v445
      %v450 = vunpack.c.l.bf16 %v446
      %v451 = vunpack.c.l.bf16 %v447
      %v452 = vunpack.c.l.bf16 %v448
      %v453 = vld [vmem:[%s1] sm:$0x1]
      %v454 = vld [vmem:[%s2] sm:$0x1]
      %vm455 = vcmask 523264
      %v456 = vsel %vm455, %v449, 0.0
      %457 = vadd.xlane.f32.xlu0 %v456
      %v458 = vpop.xlane.xlu0 %457
      %v459 = vsel %vm455, %v450, 0.0
      %460 = vadd.xlane.f32.xlu0 %v459
      %v461 = vpop.xlane.xlu0 %460
      %v462 = vsel %vm455, %v451, 0.0
      %463 = vadd.xlane.f32.xlu0 %v462
      %v464 = vpop.xlane.xlu0 %463
      %v465 = vsel %vm455, %v452, 0.0
      %466 = vadd.xlane.f32.xlu0 %v465
      %v467 = vpop.xlane.xlu0 %466
      %v468 = vrcp.pop 64.0
      %v469 = vmul.f32 64.0, %v468
      %v470 = vsub.f32 1.0, %v469
      %v471 = vmul.f32 %v468, %v470
      %v472 = vadd.f32 %v468, %v471
      %vm473 = vweird.f32 %v468
      %v474 = vsel %vm473, %v468, %v472
      %v475 = vmul.f32 %v458, %v474
      %v476 = vmul.f32 %v461, %v474
      %v477 = vmul.f32 %v464, %v474
      %v478 = vmul.f32 %v467, %v474
      %v479 = vsub.f32 %v449, %v475
      %v480 = vsub.f32 %v450, %v476
      %v481 = vsub.f32 %v451, %v477
      %v482 = vsub.f32 %v452, %v478
      %v483 = vmul.f32 %v479, %v479
      %v484 = vmul.f32 %v480, %v480
      %v485 = vmul.f32 %v481, %v481
      %v486 = vmul.f32 %v482, %v482
      %v487 = vsel %vm455, %v483, 0.0
      %488 = vadd.xlane.f32.xlu0 %v487
      %v489 = vpop.xlane.xlu0 %488
      %v490 = vsel %vm455, %v484, 0.0
      %491 = vadd.xlane.f32.xlu0 %v490
      %v492 = vpop.xlane.xlu0 %491
      %v493 = vsel %vm455, %v485, 0.0
      %494 = vadd.xlane.f32.xlu0 %v493
      %v495 = vpop.xlane.xlu0 %494
      %v496 = vsel %vm455, %v486, 0.0
      %497 = vadd.xlane.f32.xlu0 %v496
      %v498 = vpop.xlane.xlu0 %497
      %v499 = vmul.f32 %v489, %v474
      %v500 = vmul.f32 %v492, %v474
      %v501 = vmul.f32 %v495, %v474
      %v502 = vmul.f32 %v498, %v474
      %v503 = vadd.f32 %v499, 1e-05
      %v504 = vadd.f32 %v500, 1e-05
      %v505 = vadd.f32 %v501, 1e-05
      %v506 = vadd.f32 %v502, 1e-05
      %v507 = vrsqrt.pop %v503
      %v508 = vmul.f32 %v507, %v503
      %v509 = vmul.f32 %v508, %v507
      %v510 = vmul.f32 0.5, %v509
      %v511 = vsub.f32 1.5, %v510
      %v512 = vmul.f32 %v507, %v511
      %vm513 = vweird.f32 %v503
      %vm514 = vweird.f32 %v507
      %vm515 = vmor %vm513, %vm514
      %v516 = vsel %vm515, %v507, %v512
      %v517 = vrsqrt.pop %v504
      %v518 = vmul.f32 %v517, %v504
      %v519 = vmul.f32 %v518, %v517
      %v520 = vmul.f32 0.5, %v519
      %v521 = vsub.f32 1.5, %v520
      %v522 = vmul.f32 %v517, %v521
      %vm523 = vweird.f32 %v504
      %vm524 = vweird.f32 %v517
      %vm525 = vmor %vm523, %vm524
      %v526 = vsel %vm525, %v517, %v522
      %v527 = vrsqrt.pop %v505
      %v528 = vmul.f32 %v527, %v505
      %v529 = vmul.f32 %v528, %v527
      %v530 = vmul.f32 0.5, %v529
      %v531 = vsub.f32 1.5, %v530
      %v532 = vmul.f32 %v527, %v531
      %vm533 = vweird.f32 %v505
      %vm534 = vweird.f32 %v527
      %vm535 = vmor %vm533, %vm534
      %v536 = vsel %vm535, %v527, %v532
      %v537 = vrsqrt.pop %v506
      %v538 = vmul.f32 %v537, %v506
      %v539 = vmul.f32 %v538, %v537
      %v540 = vmul.f32 0.5, %v539
      %v541 = vsub.f32 1.5, %v540
      %v542 = vmul.f32 %v537, %v541
      %vm543 = vweird.f32 %v506
      %vm544 = vweird.f32 %v537
      %vm545 = vmor %vm543, %vm544
      %v546 = vsel %vm545, %v537, %v542
      %v547 = vmul.f32 %v479, %v516
      %v548 = vmul.f32 %v480, %v526
      %v549 = vmul.f32 %v481, %v536
      %v550 = vmul.f32 %v482, %v546
      %v552 = vperm.slane %v453, 0
      %v554 = vmul.f32 %v547, %v552
      %v555 = vmul.f32 %v548, %v552
      %v556 = vmul.f32 %v549, %v552
      %v557 = vmul.f32 %v550, %v552
      %v559 = vperm.slane %v454, 0
      %v561 = vadd.f32 %v554, %v559
      %v562 = vadd.f32 %v555, %v559
      %v563 = vadd.f32 %v556, %v559
      %v564 = vadd.f32 %v557, %v559
      %v565 = vpack.c.bf16 %v562, %v561
      %v566 = vpack.c.bf16 %v564, %v563
      %v567 = vld [vmem:[%s3] sm:$0xff]
      %v568 = vld [vmem:[%s3 + $0x8] sm:$0xff]
      %v569 = vld [vmem:[%s3 + $0x10] sm:$0xff]
      %v570 = vld [vmem:[%s3 + $0x18] sm:$0xff]
      %v571 = vld [vmem:[%s3 + $0x20] sm:$0xff]
      %v572 = vld [vmem:[%s3 + $0x28] sm:$0xff]
      %v573 = vld [vmem:[%s3 + $0x30] sm:$0xff]
      %v574 = vld [vmem:[%s3 + $0x38] sm:$0xff]
      %v575 = vld [vmem:[%s4] sm:$0x3]
      %v577 = vperm.slane %v575, 0
      %v578 = vperm.slane %v575, 1
      %v589 = vunpack.c.l.b16 %v567
      %v590 = vunpack.c.h.b16 %v567
      %v591 = vunpack.c.l.b16 %v568
      %v592 = vunpack.c.h.b16 %v568
      %v593 = vunpack.c.l.b16 %v569
      %v594 = vunpack.c.h.b16 %v569
      %v595 = vunpack.c.l.b16 %v570
      %v596 = vunpack.c.h.b16 %v570
      %v597 = vunpack.c.l.b16 %v571
      %v598 = vunpack.c.h.b16 %v571
      %v599 = vunpack.c.l.b16 %v572
      %v600 = vunpack.c.h.b16 %v572
      %v601 = vunpack.c.l.b16 %v573
      %v602 = vunpack.c.h.b16 %v573
      %v603 = vunpack.c.l.b16 %v574
      %v604 = vunpack.c.h.b16 %v574
      %v605 = vpack.c.b16 %v591, %v589
      %v606 = vpack.c.b16 %v592, %v590
      %v607 = vpack.c.b16 %v595, %v593
      %v608 = vpack.c.b16 %v596, %v594
      %v609 = vpack.c.b16 %v599, %v597
      %v610 = vpack.c.b16 %v600, %v598
      %v611 = vpack.c.b16 %v603, %v601
      %v612 = vpack.c.b16 %v604, %v602
      %v622 = vsel %vm455, %v565, 0
      %v625 = vsel %vm455, %v566, 0
      %627 = vmatpush.bf16.msra.mxu0 0
      %628 = vmatpush.bf16.msra.mxu0 0
      %629 = vmatpush.bf16.msra.mxu0 0
      %630 = vmatpush.bf16.msra.mxu0 0
      %631 = vmatpush.bf16.msra.mxu0 %v611
      %632 = vmatpush.bf16.msra.mxu0 %v609
      %633 = vmatpush.bf16.msra.mxu0 %v607
      %634 = vmatpush.bf16.msra.mxu0 %v605
      %635 = vmatmul.bf16.gmra.mxu0 %v622
      %v636 = vpop.f32.mrf.mxu0
      %v637 = vadd.f32 %v577, %v636
      %v638 = vpop.f32.mrf.mxu0
      %v639 = vadd.f32 %v577, %v638
      %640 = vmatmul.bf16.gmra.mxu0 %v625
      %v641 = vpop.f32.mrf.mxu0
      %v642 = vadd.f32 %v577, %v641
      %v643 = vpop.f32.mrf.mxu0
      %v644 = vadd.f32 %v577, %v643
      %645 = vdwg.mxu0
      %646 = vmatpush.bf16.msra.mxu0 0
      %647 = vmatpush.bf16.msra.mxu0 0
      %648 = vmatpush.bf16.msra.mxu0 0
      %649 = vmatpush.bf16.msra.mxu0 0
      %650 = vmatpush.bf16.msra.mxu0 %v612
      %651 = vmatpush.bf16.msra.mxu0 %v610
      %652 = vmatpush.bf16.msra.mxu0 %v608
      %653 = vmatpush.bf16.msra.mxu0 %v606
      %654 = vmatmul.bf16.gmra.mxu0 %v622
      %v655 = vpop.f32.mrf.mxu0
      %v656 = vadd.f32 %v578, %v655
      %v657 = vpop.f32.mrf.mxu0
      %v658 = vadd.f32 %v578, %v657
      %659 = vmatmul.bf16.gmra.mxu0 %v625
      %v660 = vpop.f32.mrf.mxu0
      %v661 = vadd.f32 %v578, %v660
      %v662 = vpop.f32.mrf.mxu0
      %v663 = vadd.f32 %v578, %v662
      %664 = vdwg.mxu0
      %v665 = vld [vmem:[%s5] sm:$0xf]
      %v666 = vld [vmem:[%s5 + $0x4] sm:$0xf]
      %v667 = vld [vmem:[%s5 + $0x8] sm:$0xf]
      %v668 = vld [vmem:[%s5 + $0xc] sm:$0xf]
      %v669 = vld [vmem:[%s5 + $0x10] sm:$0xf]
      %v670 = vld [vmem:[%s5 + $0x14] sm:$0xf]
      %v671 = vld [vmem:[%s5 + $0x18] sm:$0xf]
      %v672 = vld [vmem:[%s5 + $0x1c] sm:$0xf]
      %v673 = vld [vmem:[%s6] sm:$0x1]
      %v675 = vperm.slane %v673, 0
      %v677 = vadd.f32 %v449, %v675
      %v678 = vadd.f32 %v450, %v675
      %v679 = vadd.f32 %v451, %v675
      %v680 = vadd.f32 %v452, %v675
      %v681 = vmul.f32 %v637, 0.17677669
      %v682 = vmul.f32 %v639, 0.17677669
      %v683 = vmul.f32 %v642, 0.17677669
      %v684 = vmul.f32 %v644, 0.17677669
      %686 = vrot.lane.b32.xlu0 %v637, 64
      %v687 = vpop.permute.xlu0 %686
      %vm688 = vcmask 261120
      %v690 = vsel %vm688, %v681, 0
      %v692 = vsel %vm688, %v687, 0
      %694 = vmatpush.xpose.msra.mxu0 0.0
      %695 = vmatpush.xpose.msra.mxu0 0.0
      %696 = vmatpush.xpose.msra.mxu0 0.0
      %697 = vmatpush.xpose.msra.mxu0 0.0
      %698 = vmatpush.xpose.msra.mxu0 0.0
      %699 = vmatpush.xpose.msra.mxu0 0.0
      %700 = vmatpush.xpose.msra.mxu0 0.0
      %701 = vmatpush.xpose.msra.mxu0 0.0
      %702 = vmatpush.xpose.msra.mxu0 0.0
      %703 = vmatpush.xpose.msra.mxu0 0.0
      %704 = vmatpush.xpose.msra.mxu0 0.0
      %705 = vmatpush.xpose.msra.mxu0 0.0
      %706 = vmatpush.xpose.msra.mxu0 0.0
      %707 = vmatpush.xpose.msra.mxu0 0.0
      %708 = vmatpush.xpose.msra.mxu0 0.0
      %709 = vmatpush.xpose.msra.mxu0 %v692
      %710 = vmatmul.f32.gmra.mxu0 %v690
      %v711 = vpop.f32.mrf.mxu0
      %v712 = vadd.f32 0.0, %v711
      %713 = vdwg.mxu0
      %715 = vrot.lane.b32.xlu0 %v639, 64
      %v716 = vpop.permute.xlu0 %715
      %v718 = vsel %vm688, %v682, 0
      %v720 = vsel %vm688, %v716, 0
      %722 = vmatpush.xpose.msra.mxu0 0.0
      %723 = vmatpush.xpose.msra.mxu0 0.0
      %724 = vmatpush.xpose.msra.mxu0 0.0
      %725 = vmatpush.xpose.msra.mxu0 0.0
      %726 = vmatpush.xpose.msra.mxu0 0.0
      %727 = vmatpush.xpose.msra.mxu0 0.0
      %728 = vmatpush.xpose.msra.mxu0 0.0
      %729 = vmatpush.xpose.msra.mxu0 0.0
      %730 = vmatpush.xpose.msra.mxu0 0.0
      %731 = vmatpush.xpose.msra.mxu0 0.0
      %732 = vmatpush.xpose.msra.mxu0 0.0
      %733 = vmatpush.xpose.msra.mxu0 0.0
      %734 = vmatpush.xpose.msra.mxu0 0.0
      %735 = vmatpush.xpose.msra.mxu0 0.0
      %736 = vmatpush.xpose.msra.mxu0 0.0
      %737 = vmatpush.xpose.msra.mxu0 %v720
      %738 = vmatmul.f32.gmra.mxu0 %v718
      %v739 = vpop.f32.mrf.mxu0
      %v740 = vadd.f32 0.0, %v739
      %741 = vdwg.mxu0
      %743 = vrot.lane.b32.xlu0 %v642, 64
      %v744 = vpop.permute.xlu0 %743
      %v746 = vsel %vm688, %v683, 0
      %v748 = vsel %vm688, %v744, 0
      %750 = vmatpush.xpose.msra.mxu0 0.0
      %751 = vmatpush.xpose.msra.mxu0 0.0
      %752 = vmatpush.xpose.msra.mxu0 0.0
      %753 = vmatpush.xpose.msra.mxu0 0.0
      %754 = vmatpush.xpose.msra.mxu0 0.0
      %755 = vmatpush.xpose.msra.mxu0 0.0
      %756 = vmatpush.xpose.msra.mxu0 0.0
      %757 = vmatpush.xpose.msra.mxu0 0.0
      %758 = vmatpush.xpose.msra.mxu0 0.0
      %759 = vmatpush.xpose.msra.mxu0 0.0
      %760 = vmatpush.xpose.msra.mxu0 0.0
      %761 = vmatpush.xpose.msra.mxu0 0.0
      %762 = vmatpush.xpose.msra.mxu0 0.0
      %763 = vmatpush.xpose.msra.mxu0 0.0
      %764 = vmatpush.xpose.msra.mxu0 0.0
      %765 = vmatpush.xpose.msra.mxu0 %v748
      %766 = vmatmul.f32.gmra.mxu0 %v746
      %v767 = vpop.f32.mrf.mxu0
      %v768 = vadd.f32 0.0, %v767
      %769 = vdwg.mxu0
      %771 = vrot.lane.b32.xlu0 %v644, 64
      %v772 = vpop.permute.xlu0 %771
      %v774 = vsel %vm688, %v684, 0
      %v776 = vsel %vm688, %v772, 0
      %778 = vmatpush.xpose.msra.mxu0 0.0
      %779 = vmatpush.xpose.msra.mxu0 0.0
      %780 = vmatpush.xpose.msra.mxu0 0.0
      %781 = vmatpush.xpose.msra.mxu0 0.0
      %782 = vmatpush.xpose.msra.mxu0 0.0
      %783 = vmatpush.xpose.msra.mxu0 0.0
      %784 = vmatpush.xpose.msra.mxu0 0.0
      %785 = vmatpush.xpose.msra.mxu0 0.0
      %786 = vmatpush.xpose.msra.mxu0 0.0
      %787 = vmatpush.xpose.msra.mxu0 0.0
      %788 = vmatpush.xpose.msra.mxu0 0.0
      %789 = vmatpush.xpose.msra.mxu0 0.0
      %790 = vmatpush.xpose.msra.mxu0 0.0
      %791 = vmatpush.xpose.msra.mxu0 0.0
      %792 = vmatpush.xpose.msra.mxu0 0.0
      %793 = vmatpush.xpose.msra.mxu0 %v776
      %794 = vmatmul.f32.gmra.mxu0 %v774
      %v795 = vpop.f32.mrf.mxu0
      %v796 = vadd.f32 0.0, %v795
      %797 = vdwg.mxu0
      %vm798 = vcmask 64512
      %v799 = vsel %vm798, %v712, -inf
      %800 = vmax.xlane.f32.xlu0 %v799
      %v801 = vpop.xlane.xlu0 %800
      %v802 = vsel %vm798, %v740, -inf
      %803 = vmax.xlane.f32.xlu0 %v802
      %v804 = vpop.xlane.xlu0 %803
      %v805 = vsel %vm798, %v768, -inf
      %806 = vmax.xlane.f32.xlu0 %v805
      %v807 = vpop.xlane.xlu0 %806
      %v808 = vsel %vm798, %v796, -inf
      %809 = vmax.xlane.f32.xlu0 %v808
      %v810 = vpop.xlane.xlu0 %809
      %v811 = vsub.f32 %v712, %v801
      %v812 = vsub.f32 %v740, %v804
      %v813 = vsub.f32 %v768, %v807
      %v814 = vsub.f32 %v796, %v810
      %v815 = vmul.f32 %v811, 1.442695
      %v816 = vpow.pop %v815
      %v817 = vmul.f32 %v812, 1.442695
      %v818 = vpow.pop %v817
      %v819 = vmul.f32 %v813, 1.442695
      %v820 = vpow.pop %v819
      %v821 = vmul.f32 %v814, 1.442695
      %v822 = vpow.pop %v821
      %v823 = vsel %vm798, %v816, 0.0
      %824 = vadd.xlane.f32.xlu0 %v823
      %v825 = vpop.xlane.xlu0 %824
      %v826 = vsel %vm798, %v818, 0.0
      %827 = vadd.xlane.f32.xlu0 %v826
      %v828 = vpop.xlane.xlu0 %827
      %v829 = vsel %vm798, %v820, 0.0
      %830 = vadd.xlane.f32.xlu0 %v829
      %v831 = vpop.xlane.xlu0 %830
      %v832 = vsel %vm798, %v822, 0.0
      %833 = vadd.xlane.f32.xlu0 %v832
      %v834 = vpop.xlane.xlu0 %833
      %v835 = vrcp.pop %v825
      %v836 = vrcp.pop %v828
      %v837 = vrcp.pop %v831
      %v838 = vrcp.pop %v834
      %v839 = vmul.f32 %v816, %v835
      %v840 = vmul.f32 %v818, %v836
      %v841 = vmul.f32 %v820, %v837
      %v842 = vmul.f32 %v822, %v838
      %v844 = vsel %vm798, %v839, 0
      %846 = vmatpush.msra.mxu0 0.0
      %847 = vmatpush.msra.mxu0 0.0
      %848 = vmatpush.msra.mxu0 0.0
      %849 = vmatpush.msra.mxu0 0.0
      %850 = vmatpush.msra.mxu0 0.0
      %851 = vmatpush.msra.mxu0 0.0
      %852 = vmatpush.msra.mxu0 0.0
      %853 = vmatpush.msra.mxu0 0.0
      %854 = vmatpush.msra.mxu0 0.0
      %855 = vmatpush.msra.mxu0 0.0
      %856 = vmatpush.msra.mxu0 0.0
      %857 = vmatpush.msra.mxu0 0.0
      %858 = vmatpush.msra.mxu0 0.0
      %859 = vmatpush.msra.mxu0 0.0
      %860 = vmatpush.msra.mxu0 0.0
      %861 = vmatpush.msra.mxu0 %v656
      %862 = vmatmul.f32.gmra.mxu0 %v844
      %v863 = vpop.f32.mrf.mxu0
      %v864 = vadd.f32 0.0, %v863
      %865 = vdwg.mxu0
      %v867 = vsel %vm798, %v840, 0
      %869 = vmatpush.msra.mxu0 0.0
      %870 = vmatpush.msra.mxu0 0.0
      %871 = vmatpush.msra.mxu0 0.0
      %872 = vmatpush.msra.mxu0 0.0
      %873 = vmatpush.msra.mxu0 0.0
      %874 = vmatpush.msra.mxu0 0.0
      %875 = vmatpush.msra.mxu0 0.0
      %876 = vmatpush.msra.mxu0 0.0
      %877 = vmatpush.msra.mxu0 0.0
      %878 = vmatpush.msra.mxu0 0.0
      %879 = vmatpush.msra.mxu0 0.0
      %880 = vmatpush.msra.mxu0 0.0
      %881 = vmatpush.msra.mxu0 0.0
      %882 = vmatpush.msra.mxu0 0.0
      %883 = vmatpush.msra.mxu0 0.0
      %884 = vmatpush.msra.mxu0 %v658
      %885 = vmatmul.f32.gmra.mxu0 %v867
      %v886 = vpop.f32.mrf.mxu0
      %v887 = vadd.f32 0.0, %v886
      %888 = vdwg.mxu0
      %v890 = vsel %vm798, %v841, 0
      %892 = vmatpush.msra.mxu0 0.0
      %893 = vmatpush.msra.mxu0 0.0
      %894 = vmatpush.msra.mxu0 0.0
      %895 = vmatpush.msra.mxu0 0.0
      %896 = vmatpush.msra.mxu0 0.0
      %897 = vmatpush.msra.mxu0 0.0
      %898 = vmatpush.msra.mxu0 0.0
      %899 = vmatpush.msra.mxu0 0.0
      %900 = vmatpush.msra.mxu0 0.0
      %901 = vmatpush.msra.mxu0 0.0
      %902 = vmatpush.msra.mxu0 0.0
      %903 = vmatpush.msra.mxu0 0.0
      %904 = vmatpush.msra.mxu0 0.0
      %905 = vmatpush.msra.mxu0 0.0
      %906 = vmatpush.msra.mxu0 0.0
      %907 = vmatpush.msra.mxu0 %v661
      %908 = vmatmul.f32.gmra.mxu0 %v890
      %v909 = vpop.f32.mrf.mxu0
      %v910 = vadd.f32 0.0, %v909
      %911 = vdwg.mxu0
      %v913 = vsel %vm798, %v842, 0
      %915 = vmatpush.msra.mxu0 0.0
      %916 = vmatpush.msra.mxu0 0.0
      %917 = vmatpush.msra.mxu0 0.0
      %918 = vmatpush.msra.mxu0 0.0
      %919 = vmatpush.msra.mxu0 0.0
      %920 = vmatpush.msra.mxu0 0.0
      %921 = vmatpush.msra.mxu0 0.0
      %922 = vmatpush.msra.mxu0 0.0
      %923 = vmatpush.msra.mxu0 0.0
      %924 = vmatpush.msra.mxu0 0.0
      %925 = vmatpush.msra.mxu0 0.0
      %926 = vmatpush.msra.mxu0 0.0
      %927 = vmatpush.msra.mxu0 0.0
      %928 = vmatpush.msra.mxu0 0.0
      %929 = vmatpush.msra.mxu0 0.0
      %930 = vmatpush.msra.mxu0 %v663
      %931 = vmatmul.f32.gmra.mxu0 %v913
      %v932 = vpop.f32.mrf.mxu0
      %v933 = vadd.f32 0.0, %v932
      %934 = vdwg.mxu0
      %v935 = vpack.c.bf16 %v887, %v864
      %v936 = vpack.c.bf16 %v933, %v910
      %v941 = vunpack.c.l.b16 %v665
      %v942 = vunpack.c.l.b16 %v666
      %v943 = vunpack.c.l.b16 %v667
      %v944 = vunpack.c.l.b16 %v668
      %v945 = vpack.c.b16 %v942, %v941
      %v946 = vpack.c.b16 %v944, %v943
      %v950 = vsel %vm688, %v935, 0
      %v953 = vsel %vm688, %v936, 0
      %955 = vmatpush.bf16.msra.mxu0 0
      %956 = vmatpush.bf16.msra.mxu0 0
      %957 = vmatpush.bf16.msra.mxu0 0
      %958 = vmatpush.bf16.msra.mxu0 0
      %959 = vmatpush.bf16.msra.mxu0 0
      %960 = vmatpush.bf16.msra.mxu0 0
      %961 = vmatpush.bf16.msra.mxu0 %v946
      %962 = vmatpush.bf16.msra.mxu0 %v945
      %963 = vmatmul.bf16.gmra.mxu0 %v950
      %v964 = vpop.f32.mrf.mxu0
      %v965 = vadd.f32 0.0, %v964
      %v966 = vpop.f32.mrf.mxu0
      %v967 = vadd.f32 0.0, %v966
      %968 = vmatmul.bf16.gmra.mxu0 %v953
      %v969 = vpop.f32.mrf.mxu0
      %v970 = vadd.f32 0.0, %v969
      %v971 = vpop.f32.mrf.mxu0
      %v972 = vadd.f32 0.0, %v971
      %973 = vdwg.mxu0
      %v974 = vadd.f32 %v677, %v965
      %v975 = vadd.f32 %v678, %v967
      %v976 = vadd.f32 %v679, %v970
      %v977 = vadd.f32 %v680, %v972
      %978 = vrot.lane.b32.xlu0 %v681, 96
      %v979 = vpop.permute.xlu0 %978
      %980 = vrot.lane.b32.xlu0 %v637, 32
      %v981 = vpop.permute.xlu0 %980
      %v982 = vsel %vm688, %v979, 0
      %v984 = vsel %vm688, %v981, 0
      %986 = vmatpush.xpose.msra.mxu0 0.0
      %987 = vmatpush.xpose.msra.mxu0 0.0
      %988 = vmatpush.xpose.msra.mxu0 0.0
      %989 = vmatpush.xpose.msra.mxu0 0.0
      %990 = vmatpush.xpose.msra.mxu0 0.0
      %991 = vmatpush.xpose.msra.mxu0 0.0
      %992 = vmatpush.xpose.msra.mxu0 0.0
      %993 = vmatpush.xpose.msra.mxu0 0.0
      %994 = vmatpush.xpose.msra.mxu0 0.0
      %995 = vmatpush.xpose.msra.mxu0 0.0
      %996 = vmatpush.xpose.msra.mxu0 0.0
      %997 = vmatpush.xpose.msra.mxu0 0.0
      %998 = vmatpush.xpose.msra.mxu0 0.0
      %999 = vmatpush.xpose.msra.mxu0 0.0
      %1000 = vmatpush.xpose.msra.mxu0 0.0
      %1001 = vmatpush.xpose.msra.mxu0 %v984
      %1002 = vmatmul.f32.gmra.mxu0 %v982
      %v1003 = vpop.f32.mrf.mxu0
      %v1004 = vadd.f32 0.0, %v1003
      %1005 = vdwg.mxu0
      %1006 = vrot.lane.b32.xlu0 %v682, 96
      %v1007 = vpop.permute.xlu0 %1006
      %1008 = vrot.lane.b32.xlu0 %v639, 32
      %v1009 = vpop.permute.xlu0 %1008
      %v1010 = vsel %vm688, %v1007, 0
      %v1012 = vsel %vm688, %v1009, 0
      %1014 = vmatpush.xpose.msra.mxu0 0.0
      %1015 = vmatpush.xpose.msra.mxu0 0.0
      %1016 = vmatpush.xpose.msra.mxu0 0.0
      %1017 = vmatpush.xpose.msra.mxu0 0.0
      %1018 = vmatpush.xpose.msra.mxu0 0.0
      %1019 = vmatpush.xpose.msra.mxu0 0.0
      %1020 = vmatpush.xpose.msra.mxu0 0.0
      %1021 = vmatpush.xpose.msra.mxu0 0.0
      %1022 = vmatpush.xpose.msra.mxu0 0.0
      %1023 = vmatpush.xpose.msra.mxu0 0.0
      %1024 = vmatpush.xpose.msra.mxu0 0.0
      %1025 = vmatpush.xpose.msra.mxu0 0.0
      %1026 = vmatpush.xpose.msra.mxu0 0.0
      %1027 = vmatpush.xpose.msra.mxu0 0.0
      %1028 = vmatpush.xpose.msra.mxu0 0.0
      %1029 = vmatpush.xpose.msra.mxu0 %v1012
      %1030 = vmatmul.f32.gmra.mxu0 %v1010
      %v1031 = vpop.f32.mrf.mxu0
      %v1032 = vadd.f32 0.0, %v1031
      %1033 = vdwg.mxu0
      %1034 = vrot.lane.b32.xlu0 %v683, 96
      %v1035 = vpop.permute.xlu0 %1034
      %1036 = vrot.lane.b32.xlu0 %v642, 32
      %v1037 = vpop.permute.xlu0 %1036
      %v1038 = vsel %vm688, %v1035, 0
      %v1040 = vsel %vm688, %v1037, 0
      %1042 = vmatpush.xpose.msra.mxu0 0.0
      %1043 = vmatpush.xpose.msra.mxu0 0.0
      %1044 = vmatpush.xpose.msra.mxu0 0.0
      %1045 = vmatpush.xpose.msra.mxu0 0.0
      %1046 = vmatpush.xpose.msra.mxu0 0.0
      %1047 = vmatpush.xpose.msra.mxu0 0.0
      %1048 = vmatpush.xpose.msra.mxu0 0.0
      %1049 = vmatpush.xpose.msra.mxu0 0.0
      %1050 = vmatpush.xpose.msra.mxu0 0.0
      %1051 = vmatpush.xpose.msra.mxu0 0.0
      %1052 = vmatpush.xpose.msra.mxu0 0.0
      %1053 = vmatpush.xpose.msra.mxu0 0.0
      %1054 = vmatpush.xpose.msra.mxu0 0.0
      %1055 = vmatpush.xpose.msra.mxu0 0.0
      %1056 = vmatpush.xpose.msra.mxu0 0.0
      %1057 = vmatpush.xpose.msra.mxu0 %v1040
      %1058 = vmatmul.f32.gmra.mxu0 %v1038
      %v1059 = vpop.f32.mrf.mxu0
      %v1060 = vadd.f32 0.0, %v1059
      %1061 = vdwg.mxu0
      %1062 = vrot.lane.b32.xlu0 %v684, 96
      %v1063 = vpop.permute.xlu0 %1062
      %1064 = vrot.lane.b32.xlu0 %v644, 32
      %v1065 = vpop.permute.xlu0 %1064
      %v1066 = vsel %vm688, %v1063, 0
      %v1068 = vsel %vm688, %v1065, 0
      %1070 = vmatpush.xpose.msra.mxu0 0.0
      %1071 = vmatpush.xpose.msra.mxu0 0.0
      %1072 = vmatpush.xpose.msra.mxu0 0.0
      %1073 = vmatpush.xpose.msra.mxu0 0.0
      %1074 = vmatpush.xpose.msra.mxu0 0.0
      %1075 = vmatpush.xpose.msra.mxu0 0.0
      %1076 = vmatpush.xpose.msra.mxu0 0.0
      %1077 = vmatpush.xpose.msra.mxu0 0.0
      %1078 = vmatpush.xpose.msra.mxu0 0.0
      %1079 = vmatpush.xpose.msra.mxu0 0.0
      %1080 = vmatpush.xpose.msra.mxu0 0.0
      %1081 = vmatpush.xpose.msra.mxu0 0.0
      %1082 = vmatpush.xpose.msra.mxu0 0.0
      %1083 = vmatpush.xpose.msra.mxu0 0.0
      %1084 = vmatpush.xpose.msra.mxu0 0.0
      %1085 = vmatpush.xpose.msra.mxu0 %v1068
      %1086 = vmatmul.f32.gmra.mxu0 %v1066
      %v1087 = vpop.f32.mrf.mxu0
      %v1088 = vadd.f32 0.0, %v1087
      %1089 = vdwg.mxu0
      %v1090 = vsel %vm798, %v1004, -inf
      %1091 = vmax.xlane.f32.xlu0 %v1090
      %v1092 = vpop.xlane.xlu0 %1091
      %v1093 = vsel %vm798, %v1032, -inf
      %1094 = vmax.xlane.f32.xlu0 %v1093
      %v1095 = vpop.xlane.xlu0 %1094
      %v1096 = vsel %vm798, %v1060, -inf
      %1097 = vmax.xlane.f32.xlu0 %v1096
      %v1098 = vpop.xlane.xlu0 %1097
      %v1099 = vsel %vm798, %v1088, -inf
      %1100 = vmax.xlane.f32.xlu0 %v1099
      %v1101 = vpop.xlane.xlu0 %1100
      %v1102 = vsub.f32 %v1004, %v1092
      %v1103 = vsub.f32 %v1032, %v1095
      %v1104 = vsub.f32 %v1060, %v1098
      %v1105 = vsub.f32 %v1088, %v1101
      %v1106 = vmul.f32 %v1102, 1.442695
      %v1107 = vpow.pop %v1106
      %v1108 = vmul.f32 %v1103, 1.442695
      %v1109 = vpow.pop %v1108
      %v1110 = vmul.f32 %v1104, 1.442695
      %v1111 = vpow.pop %v1110
      %v1112 = vmul.f32 %v1105, 1.442695
      %v1113 = vpow.pop %v1112
      %v1114 = vsel %vm798, %v1107, 0.0
      %1115 = vadd.xlane.f32.xlu0 %v1114
      %v1116 = vpop.xlane.xlu0 %1115
      %v1117 = vsel %vm798, %v1109, 0.0
      %1118 = vadd.xlane.f32.xlu0 %v1117
      %v1119 = vpop.xlane.xlu0 %1118
      %v1120 = vsel %vm798, %v1111, 0.0
      %1121 = vadd.xlane.f32.xlu0 %v1120
      %v1122 = vpop.xlane.xlu0 %1121
      %v1123 = vsel %vm798, %v1113, 0.0
      %1124 = vadd.xlane.f32.xlu0 %v1123
      %v1125 = vpop.xlane.xlu0 %1124
      %v1126 = vrcp.pop %v1116
      %v1127 = vrcp.pop %v1119
      %v1128 = vrcp.pop %v1122
      %v1129 = vrcp.pop %v1125
      %v1130 = vmul.f32 %v1107, %v1126
      %v1131 = vmul.f32 %v1109, %v1127
      %v1132 = vmul.f32 %v1111, %v1128
      %v1133 = vmul.f32 %v1113, %v1129
      %1135 = vrot.lane.b32.xlu0 %v656, 96
      %v1136 = vpop.permute.xlu0 %1135
      %v1139 = vsel %vm798, %v1130, 0
      %1141 = vmatpush.msra.mxu0 0.0
      %1142 = vmatpush.msra.mxu0 0.0
      %1143 = vmatpush.msra.mxu0 0.0
      %1144 = vmatpush.msra.mxu0 0.0
      %1145 = vmatpush.msra.mxu0 0.0
      %1146 = vmatpush.msra.mxu0 0.0
      %1147 = vmatpush.msra.mxu0 0.0
      %1148 = vmatpush.msra.mxu0 0.0
      %1149 = vmatpush.msra.mxu0 0.0
      %1150 = vmatpush.msra.mxu0 0.0
      %1151 = vmatpush.msra.mxu0 0.0
      %1152 = vmatpush.msra.mxu0 0.0
      %1153 = vmatpush.msra.mxu0 0.0
      %1154 = vmatpush.msra.mxu0 0.0
      %1155 = vmatpush.msra.mxu0 0.0
      %1156 = vmatpush.msra.mxu0 %v1136
      %1157 = vmatmul.f32.gmra.mxu0 %v1139
      %v1158 = vpop.f32.mrf.mxu0
      %v1159 = vadd.f32 0.0, %v1158
      %1160 = vdwg.mxu0
      %1162 = vrot.lane.b32.xlu0 %v658, 96
      %v1163 = vpop.permute.xlu0 %1162
      %v1166 = vsel %vm798, %v1131, 0
      %1168 = vmatpush.msra.mxu0 0.0
      %1169 = vmatpush.msra.mxu0 0.0
      %1170 = vmatpush.msra.mxu0 0.0
      %1171 = vmatpush.msra.mxu0 0.0
      %1172 = vmatpush.msra.mxu0 0.0
      %1173 = vmatpush.msra.mxu0 0.0
      %1174 = vmatpush.msra.mxu0 0.0
      %1175 = vmatpush.msra.mxu0 0.0
      %1176 = vmatpush.msra.mxu0 0.0
      %1177 = vmatpush.msra.mxu0 0.0
      %1178 = vmatpush.msra.mxu0 0.0
      %1179 = vmatpush.msra.mxu0 0.0
      %1180 = vmatpush.msra.mxu0 0.0
      %1181 = vmatpush.msra.mxu0 0.0
      %1182 = vmatpush.msra.mxu0 0.0
      %1183 = vmatpush.msra.mxu0 %v1163
      %1184 = vmatmul.f32.gmra.mxu0 %v1166
      %v1185 = vpop.f32.mrf.mxu0
      %v1186 = vadd.f32 0.0, %v1185
      %1187 = vdwg.mxu0
      %1189 = vrot.lane.b32.xlu0 %v661, 96
      %v1190 = vpop.permute.xlu0 %1189
      %v1193 = vsel %vm798, %v1132, 0
      %1195 = vmatpush.msra.mxu0 0.0
      %1196 = vmatpush.msra.mxu0 0.0
      %1197 = vmatpush.msra.mxu0 0.0
      %1198 = vmatpush.msra.mxu0 0.0
      %1199 = vmatpush.msra.mxu0 0.0
      %1200 = vmatpush.msra.mxu0 0.0
      %1201 = vmatpush.msra.mxu0 0.0
      %1202 = vmatpush.msra.mxu0 0.0
      %1203 = vmatpush.msra.mxu0 0.0
      %1204 = vmatpush.msra.mxu0 0.0
      %1205 = vmatpush.msra.mxu0 0.0
      %1206 = vmatpush.msra.mxu0 0.0
      %1207 = vmatpush.msra.mxu0 0.0
      %1208 = vmatpush.msra.mxu0 0.0
      %1209 = vmatpush.msra.mxu0 0.0
      %1210 = vmatpush.msra.mxu0 %v1190
      %1211 = vmatmul.f32.gmra.mxu0 %v1193
      %v1212 = vpop.f32.mrf.mxu0
      %v1213 = vadd.f32 0.0, %v1212
      %1214 = vdwg.mxu0
      %1216 = vrot.lane.b32.xlu0 %v663, 96
      %v1217 = vpop.permute.xlu0 %1216
      %v1220 = vsel %vm798, %v1133, 0
      %1222 = vmatpush.msra.mxu0 0.0
      %1223 = vmatpush.msra.mxu0 0.0
      %1224 = vmatpush.msra.mxu0 0.0
      %1225 = vmatpush.msra.mxu0 0.0
      %1226 = vmatpush.msra.mxu0 0.0
      %1227 = vmatpush.msra.mxu0 0.0
      %1228 = vmatpush.msra.mxu0 0.0
      %1229 = vmatpush.msra.mxu0 0.0
      %1230 = vmatpush.msra.mxu0 0.0
      %1231 = vmatpush.msra.mxu0 0.0
      %1232 = vmatpush.msra.mxu0 0.0
      %1233 = vmatpush.msra.mxu0 0.0
      %1234 = vmatpush.msra.mxu0 0.0
      %1235 = vmatpush.msra.mxu0 0.0
      %1236 = vmatpush.msra.mxu0 0.0
      %1237 = vmatpush.msra.mxu0 %v1217
      %1238 = vmatmul.f32.gmra.mxu0 %v1220
      %v1239 = vpop.f32.mrf.mxu0
      %v1240 = vadd.f32 0.0, %v1239
      %1241 = vdwg.mxu0
      %v1242 = vpack.c.bf16 %v1186, %v1159
      %v1243 = vpack.c.bf16 %v1240, %v1213
      %v1248 = vunpack.c.l.b16 %v669
      %v1249 = vunpack.c.l.b16 %v670
      %v1250 = vunpack.c.l.b16 %v671
      %v1251 = vunpack.c.l.b16 %v672
      %v1252 = vpack.c.b16 %v1249, %v1248
      %v1253 = vpack.c.b16 %v1251, %v1250
      %v1257 = vsel %vm688, %v1242, 0
      %v1260 = vsel %vm688, %v1243, 0
      %1262 = vmatpush.bf16.msra.mxu0 0
      %1263 = vmatpush.bf16.msra.mxu0 0
      %1264 = vmatpush.bf16.msra.mxu0 0
      %1265 = vmatpush.bf16.msra.mxu0 0
      %1266 = vmatpush.bf16.msra.mxu0 0
      %1267 = vmatpush.bf16.msra.mxu0 0
      %1268 = vmatpush.bf16.msra.mxu0 %v1253
      %1269 = vmatpush.bf16.msra.mxu0 %v1252
      %1270 = vmatmul.bf16.gmra.mxu0 %v1257
      %v1271 = vpop.f32.mrf.mxu0
      %v1272 = vadd.f32 0.0, %v1271
      %v1273 = vpop.f32.mrf.mxu0
      %v1274 = vadd.f32 0.0, %v1273
      %1275 = vmatmul.bf16.gmra.mxu0 %v1260
      %v1276 = vpop.f32.mrf.mxu0
      %v1277 = vadd.f32 0.0, %v1276
      %v1278 = vpop.f32.mrf.mxu0
      %v1279 = vadd.f32 0.0, %v1278
      %1280 = vdwg.mxu0
      %v1281 = vadd.f32 %v974, %v1272
      %v1282 = vadd.f32 %v975, %v1274
      %v1283 = vadd.f32 %v976, %v1277
      %v1284 = vadd.f32 %v977, %v1279
      %v1285 = vld [vmem:[%s7] sm:$0x1]
      %v1286 = vld [vmem:[%s8] sm:$0x1]
      %v1287 = vsel %vm455, %v1281, 0.0
      %1288 = vadd.xlane.f32.xlu0 %v1287
      %v1289 = vpop.xlane.xlu0 %1288
      %v1290 = vsel %vm455, %v1282, 0.0
      %1291 = vadd.xlane.f32.xlu0 %v1290
      %v1292 = vpop.xlane.xlu0 %1291
      %v1293 = vsel %vm455, %v1283, 0.0
      %1294 = vadd.xlane.f32.xlu0 %v1293
      %v1295 = vpop.xlane.xlu0 %1294
      %v1296 = vsel %vm455, %v1284, 0.0
      %1297 = vadd.xlane.f32.xlu0 %v1296
      %v1298 = vpop.xlane.xlu0 %1297
      %v1299 = vmul.f32 %v1289, %v474
      %v1300 = vmul.f32 %v1292, %v474
      %v1301 = vmul.f32 %v1295, %v474
      %v1302 = vmul.f32 %v1298, %v474
      %v1303 = vsub.f32 %v1281, %v1299
      %v1304 = vsub.f32 %v1282, %v1300
      %v1305 = vsub.f32 %v1283, %v1301
      %v1306 = vsub.f32 %v1284, %v1302
      %v1307 = vmul.f32 %v1303, %v1303
      %v1308 = vmul.f32 %v1304, %v1304
      %v1309 = vmul.f32 %v1305, %v1305
      %v1310 = vmul.f32 %v1306, %v1306
      %v1311 = vsel %vm455, %v1307, 0.0
      %1312 = vadd.xlane.f32.xlu0 %v1311
      %v1313 = vpop.xlane.xlu0 %1312
      %v1314 = vsel %vm455, %v1308, 0.0
      %1315 = vadd.xlane.f32.xlu0 %v1314
      %v1316 = vpop.xlane.xlu0 %1315
      %v1317 = vsel %vm455, %v1309, 0.0
      %1318 = vadd.xlane.f32.xlu0 %v1317
      %v1319 = vpop.xlane.xlu0 %1318
      %v1320 = vsel %vm455, %v1310, 0.0
      %1321 = vadd.xlane.f32.xlu0 %v1320
      %v1322 = vpop.xlane.xlu0 %1321
      %v1323 = vmul.f32 %v1313, %v474
      %v1324 = vmul.f32 %v1316, %v474
      %v1325 = vmul.f32 %v1319, %v474
      %v1326 = vmul.f32 %v1322, %v474
      %v1327 = vadd.f32 %v1323, 1e-05
      %v1328 = vadd.f32 %v1324, 1e-05
      %v1329 = vadd.f32 %v1325, 1e-05
      %v1330 = vadd.f32 %v1326, 1e-05
      %v1331 = vrsqrt.pop %v1327
      %v1332 = vmul.f32 %v1331, %v1327
      %v1333 = vmul.f32 %v1332, %v1331
      %v1334 = vmul.f32 0.5, %v1333
      %v1335 = vsub.f32 1.5, %v1334
      %v1336 = vmul.f32 %v1331, %v1335
      %vm1337 = vweird.f32 %v1327
      %vm1338 = vweird.f32 %v1331
      %vm1339 = vmor %vm1337, %vm1338
      %v1340 = vsel %vm1339, %v1331, %v1336
      %v1341 = vrsqrt.pop %v1328
      %v1342 = vmul.f32 %v1341, %v1328
      %v1343 = vmul.f32 %v1342, %v1341
      %v1344 = vmul.f32 0.5, %v1343
      %v1345 = vsub.f32 1.5, %v1344
      %v1346 = vmul.f32 %v1341, %v1345
      %vm1347 = vweird.f32 %v1328
      %vm1348 = vweird.f32 %v1341
      %vm1349 = vmor %vm1347, %vm1348
      %v1350 = vsel %vm1349, %v1341, %v1346
      %v1351 = vrsqrt.pop %v1329
      %v1352 = vmul.f32 %v1351, %v1329
      %v1353 = vmul.f32 %v1352, %v1351
      %v1354 = vmul.f32 0.5, %v1353
      %v1355 = vsub.f32 1.5, %v1354
      %v1356 = vmul.f32 %v1351, %v1355
      %vm1357 = vweird.f32 %v1329
      %vm1358 = vweird.f32 %v1351
      %vm1359 = vmor %vm1357, %vm1358
      %v1360 = vsel %vm1359, %v1351, %v1356
      %v1361 = vrsqrt.pop %v1330
      %v1362 = vmul.f32 %v1361, %v1330
      %v1363 = vmul.f32 %v1362, %v1361
      %v1364 = vmul.f32 0.5, %v1363
      %v1365 = vsub.f32 1.5, %v1364
      %v1366 = vmul.f32 %v1361, %v1365
      %vm1367 = vweird.f32 %v1330
      %vm1368 = vweird.f32 %v1361
      %vm1369 = vmor %vm1367, %vm1368
      %v1370 = vsel %vm1369, %v1361, %v1366
      %v1371 = vmul.f32 %v1303, %v1340
      %v1372 = vmul.f32 %v1304, %v1350
      %v1373 = vmul.f32 %v1305, %v1360
      %v1374 = vmul.f32 %v1306, %v1370
      %v1376 = vperm.slane %v1285, 0
      %v1378 = vmul.f32 %v1371, %v1376
      %v1379 = vmul.f32 %v1372, %v1376
      %v1380 = vmul.f32 %v1373, %v1376
      %v1381 = vmul.f32 %v1374, %v1376
      %v1383 = vperm.slane %v1286, 0
      %v1385 = vadd.f32 %v1378, %v1383
      %v1386 = vadd.f32 %v1379, %v1383
      %v1387 = vadd.f32 %v1380, %v1383
      %v1388 = vadd.f32 %v1381, %v1383
      %v1389 = vpack.c.bf16 %v1386, %v1385
      %v1390 = vpack.c.bf16 %v1388, %v1387
      %v1391 = vld [vmem:[%s9] sm:$0xff]
      %v1392 = vld [vmem:[%s9 + $0x8] sm:$0xff]
      %v1393 = vld [vmem:[%s9 + $0x10] sm:$0xff]
      %v1394 = vld [vmem:[%s9 + $0x18] sm:$0xff]
      %v1395 = vld [vmem:[%s9 + $0x20] sm:$0xff]
      %v1396 = vld [vmem:[%s9 + $0x28] sm:$0xff]
      %v1397 = vld [vmem:[%s9 + $0x30] sm:$0xff]
      %v1398 = vld [vmem:[%s9 + $0x38] sm:$0xff]
      %v1399 = vld [vmem:[%s10] sm:$0x3]
      %v1401 = vperm.slane %v1399, 0
      %v1402 = vperm.slane %v1399, 1
      %v1413 = vunpack.c.l.b16 %v1391
      %v1414 = vunpack.c.h.b16 %v1391
      %v1415 = vunpack.c.l.b16 %v1392
      %v1416 = vunpack.c.h.b16 %v1392
      %v1417 = vunpack.c.l.b16 %v1393
      %v1418 = vunpack.c.h.b16 %v1393
      %v1419 = vunpack.c.l.b16 %v1394
      %v1420 = vunpack.c.h.b16 %v1394
      %v1421 = vunpack.c.l.b16 %v1395
      %v1422 = vunpack.c.h.b16 %v1395
      %v1423 = vunpack.c.l.b16 %v1396
      %v1424 = vunpack.c.h.b16 %v1396
      %v1425 = vunpack.c.l.b16 %v1397
      %v1426 = vunpack.c.h.b16 %v1397
      %v1427 = vunpack.c.l.b16 %v1398
      %v1428 = vunpack.c.h.b16 %v1398
      %v1429 = vpack.c.b16 %v1415, %v1413
      %v1430 = vpack.c.b16 %v1416, %v1414
      %v1431 = vpack.c.b16 %v1419, %v1417
      %v1432 = vpack.c.b16 %v1420, %v1418
      %v1433 = vpack.c.b16 %v1423, %v1421
      %v1434 = vpack.c.b16 %v1424, %v1422
      %v1435 = vpack.c.b16 %v1427, %v1425
      %v1436 = vpack.c.b16 %v1428, %v1426
      %v1446 = vsel %vm455, %v1389, 0
      %v1449 = vsel %vm455, %v1390, 0
      %1451 = vmatpush.bf16.msra.mxu0 0
      %1452 = vmatpush.bf16.msra.mxu0 0
      %1453 = vmatpush.bf16.msra.mxu0 0
      %1454 = vmatpush.bf16.msra.mxu0 0
      %1455 = vmatpush.bf16.msra.mxu0 %v1435
      %1456 = vmatpush.bf16.msra.mxu0 %v1433
      %1457 = vmatpush.bf16.msra.mxu0 %v1431
      %1458 = vmatpush.bf16.msra.mxu0 %v1429
      %1459 = vmatmul.bf16.gmra.mxu0 %v1446
      %v1460 = vpop.f32.mrf.mxu0
      %v1461 = vadd.f32 %v1401, %v1460
      %v1462 = vpop.f32.mrf.mxu0
      %v1463 = vadd.f32 %v1401, %v1462
      %1464 = vmatmul.bf16.gmra.mxu0 %v1449
      %v1465 = vpop.f32.mrf.mxu0
      %v1466 = vadd.f32 %v1401, %v1465
      %v1467 = vpop.f32.mrf.mxu0
      %v1468 = vadd.f32 %v1401, %v1467
      %1469 = vdwg.mxu0
      %1470 = vmatpush.bf16.msra.mxu0 0
      %1471 = vmatpush.bf16.msra.mxu0 0
      %1472 = vmatpush.bf16.msra.mxu0 0
      %1473 = vmatpush.bf16.msra.mxu0 0
      %1474 = vmatpush.bf16.msra.mxu0 %v1436
      %1475 = vmatpush.bf16.msra.mxu0 %v1434
      %1476 = vmatpush.bf16.msra.mxu0 %v1432
      %1477 = vmatpush.bf16.msra.mxu0 %v1430
      %1478 = vmatmul.bf16.gmra.mxu0 %v1446
      %v1479 = vpop.f32.mrf.mxu0
      %v1480 = vadd.f32 %v1402, %v1479
      %v1481 = vpop.f32.mrf.mxu0
      %v1482 = vadd.f32 %v1402, %v1481
      %1483 = vmatmul.bf16.gmra.mxu0 %v1449
      %v1484 = vpop.f32.mrf.mxu0
      %v1485 = vadd.f32 %v1402, %v1484
      %v1486 = vpop.f32.mrf.mxu0
      %v1487 = vadd.f32 %v1402, %v1486
      %1488 = vdwg.mxu0
      %v1489 = vmul.f32 %v1461, %v1461
      %v1490 = vmul.f32 %v1480, %v1480
      %v1491 = vmul.f32 %v1463, %v1463
      %v1492 = vmul.f32 %v1482, %v1482
      %v1493 = vmul.f32 %v1466, %v1466
      %v1494 = vmul.f32 %v1485, %v1485
      %v1495 = vmul.f32 %v1468, %v1468
      %v1496 = vmul.f32 %v1487, %v1487
      %v1497 = vmul.f32 %v1461, %v1489
      %v1498 = vmul.f32 %v1480, %v1490
      %v1499 = vmul.f32 %v1463, %v1491
      %v1500 = vmul.f32 %v1482, %v1492
      %v1501 = vmul.f32 %v1466, %v1493
      %v1502 = vmul.f32 %v1485, %v1494
      %v1503 = vmul.f32 %v1468, %v1495
      %v1504 = vmul.f32 %v1487, %v1496
      %v1505 = vmul.f32 %v1497, 0.044715
      %v1506 = vmul.f32 %v1498, 0.044715
      %v1507 = vmul.f32 %v1499, 0.044715
      %v1508 = vmul.f32 %v1500, 0.044715
      %v1509 = vmul.f32 %v1501, 0.044715
      %v1510 = vmul.f32 %v1502, 0.044715
      %v1511 = vmul.f32 %v1503, 0.044715
      %v1512 = vmul.f32 %v1504, 0.044715
      %v1513 = vadd.f32 %v1461, %v1505
      %v1514 = vadd.f32 %v1480, %v1506
      %v1515 = vadd.f32 %v1463, %v1507
      %v1516 = vadd.f32 %v1482, %v1508
      %v1517 = vadd.f32 %v1466, %v1509
      %v1518 = vadd.f32 %v1485, %v1510
      %v1519 = vadd.f32 %v1468, %v1511
      %v1520 = vadd.f32 %v1487, %v1512
      %v1521 = vmul.f32 %v1513, 0.7978846
      %v1522 = vmul.f32 %v1514, 0.7978846
      %v1523 = vmul.f32 %v1515, 0.7978846
      %v1524 = vmul.f32 %v1516, 0.7978846
      %v1525 = vmul.f32 %v1517, 0.7978846
      %v1526 = vmul.f32 %v1518, 0.7978846
      %v1527 = vmul.f32 %v1519, 0.7978846
      %v1528 = vmul.f32 %v1520, 0.7978846
      %v1529 = vtanh.pop %v1521
      %v1530 = vtanh.pop %v1522
      %v1531 = vtanh.pop %v1523
      %v1532 = vtanh.pop %v1524
      %v1533 = vtanh.pop %v1525
      %v1534 = vtanh.pop %v1526
      %v1535 = vtanh.pop %v1527
      %v1536 = vtanh.pop %v1528
      %v1537 = vadd.f32 %v1529, 1.0
      %v1538 = vadd.f32 %v1530, 1.0
      %v1539 = vadd.f32 %v1531, 1.0
      %v1540 = vadd.f32 %v1532, 1.0
      %v1541 = vadd.f32 %v1533, 1.0
      %v1542 = vadd.f32 %v1534, 1.0
      %v1543 = vadd.f32 %v1535, 1.0
      %v1544 = vadd.f32 %v1536, 1.0
      %v1545 = vmul.f32 %v1537, 0.5
      %v1546 = vmul.f32 %v1538, 0.5
      %v1547 = vmul.f32 %v1539, 0.5
      %v1548 = vmul.f32 %v1540, 0.5
      %v1549 = vmul.f32 %v1541, 0.5
      %v1550 = vmul.f32 %v1542, 0.5
      %v1551 = vmul.f32 %v1543, 0.5
      %v1552 = vmul.f32 %v1544, 0.5
      %v1553 = vmul.f32 %v1461, %v1545
      %v1554 = vmul.f32 %v1480, %v1546
      %v1555 = vmul.f32 %v1463, %v1547
      %v1556 = vmul.f32 %v1482, %v1548
      %v1557 = vmul.f32 %v1466, %v1549
      %v1558 = vmul.f32 %v1485, %v1550
      %v1559 = vmul.f32 %v1468, %v1551
      %v1560 = vmul.f32 %v1487, %v1552
      %v1561 = vpack.c.bf16 %v1555, %v1553
      %v1562 = vpack.c.bf16 %v1556, %v1554
      %v1563 = vpack.c.bf16 %v1559, %v1557
      %v1564 = vpack.c.bf16 %v1560, %v1558
      %v1565 = vld [vmem:[%s11] sm:$0xf]
      %v1566 = vld [vmem:[%s11 + $0x4] sm:$0xf]
      %v1567 = vld [vmem:[%s11 + $0x8] sm:$0xf]
      %v1568 = vld [vmem:[%s11 + $0xc] sm:$0xf]
      %v1569 = vld [vmem:[%s11 + $0x10] sm:$0xf]
      %v1570 = vld [vmem:[%s11 + $0x14] sm:$0xf]
      %v1571 = vld [vmem:[%s11 + $0x18] sm:$0xf]
      %v1572 = vld [vmem:[%s11 + $0x1c] sm:$0xf]
      %v1573 = vld [vmem:[%s11 + $0x20] sm:$0xf]
      %v1574 = vld [vmem:[%s11 + $0x24] sm:$0xf]
      %v1575 = vld [vmem:[%s11 + $0x28] sm:$0xf]
      %v1576 = vld [vmem:[%s11 + $0x2c] sm:$0xf]
      %v1577 = vld [vmem:[%s11 + $0x30] sm:$0xf]
      %v1578 = vld [vmem:[%s11 + $0x34] sm:$0xf]
      %v1579 = vld [vmem:[%s11 + $0x38] sm:$0xf]
      %v1580 = vld [vmem:[%s11 + $0x3c] sm:$0xf]
      %v1581 = vld [vmem:[%s11 + $0x40] sm:$0xf]
      %v1582 = vld [vmem:[%s11 + $0x44] sm:$0xf]
      %v1583 = vld [vmem:[%s11 + $0x48] sm:$0xf]
      %v1584 = vld [vmem:[%s11 + $0x4c] sm:$0xf]
      %v1585 = vld [vmem:[%s11 + $0x50] sm:$0xf]
      %v1586 = vld [vmem:[%s11 + $0x54] sm:$0xf]
      %v1587 = vld [vmem:[%s11 + $0x58] sm:$0xf]
      %v1588 = vld [vmem:[%s11 + $0x5c] sm:$0xf]
      %v1589 = vld [vmem:[%s11 + $0x60] sm:$0xf]
      %v1590 = vld [vmem:[%s11 + $0x64] sm:$0xf]
      %v1591 = vld [vmem:[%s11 + $0x68] sm:$0xf]
      %v1592 = vld [vmem:[%s11 + $0x6c] sm:$0xf]
      %v1593 = vld [vmem:[%s11 + $0x70] sm:$0xf]
      %v1594 = vld [vmem:[%s11 + $0x74] sm:$0xf]
      %v1595 = vld [vmem:[%s11 + $0x78] sm:$0xf]
      %v1596 = vld [vmem:[%s11 + $0x7c] sm:$0xf]
      %v1597 = vld [vmem:[%s12] sm:$0x1]
      %v1599 = vperm.slane %v1597, 0
      %v1633 = vunpack.c.l.b16 %v1565
      %v1634 = vunpack.c.l.b16 %v1566
      %v1635 = vunpack.c.l.b16 %v1567
      %v1636 = vunpack.c.l.b16 %v1568
      %v1637 = vunpack.c.l.b16 %v1569
      %v1638 = vunpack.c.l.b16 %v1570
      %v1639 = vunpack.c.l.b16 %v1571
      %v1640 = vunpack.c.l.b16 %v1572
      %v1641 = vunpack.c.l.b16 %v1573
      %v1642 = vunpack.c.l.b16 %v1574
      %v1643 = vunpack.c.l.b16 %v1575
      %v1644 = vunpack.c.l.b16 %v1576
      %v1645 = vunpack.c.l.b16 %v1577
      %v1646 = vunpack.c.l.b16 %v1578
      %v1647 = vunpack.c.l.b16 %v1579
      %v1648 = vunpack.c.l.b16 %v1580
      %v1649 = vunpack.c.l.b16 %v1581
      %v1650 = vunpack.c.l.b16 %v1582
      %v1651 = vunpack.c.l.b16 %v1583
      %v1652 = vunpack.c.l.b16 %v1584
      %v1653 = vunpack.c.l.b16 %v1585
      %v1654 = vunpack.c.l.b16 %v1586
      %v1655 = vunpack.c.l.b16 %v1587
      %v1656 = vunpack.c.l.b16 %v1588
      %v1657 = vunpack.c.l.b16 %v1589
      %v1658 = vunpack.c.l.b16 %v1590
      %v1659 = vunpack.c.l.b16 %v1591
      %v1660 = vunpack.c.l.b16 %v1592
      %v1661 = vunpack.c.l.b16 %v1593
      %v1662 = vunpack.c.l.b16 %v1594
      %v1663 = vunpack.c.l.b16 %v1595
      %v1664 = vunpack.c.l.b16 %v1596
      %v1665 = vpack.c.b16 %v1634, %v1633
      %v1666 = vpack.c.b16 %v1636, %v1635
      %v1667 = vpack.c.b16 %v1638, %v1637
      %v1668 = vpack.c.b16 %v1640, %v1639
      %v1669 = vpack.c.b16 %v1642, %v1641
      %v1670 = vpack.c.b16 %v1644, %v1643
      %v1671 = vpack.c.b16 %v1646, %v1645
      %v1672 = vpack.c.b16 %v1648, %v1647
      %v1673 = vpack.c.b16 %v1650, %v1649
      %v1674 = vpack.c.b16 %v1652, %v1651
      %v1675 = vpack.c.b16 %v1654, %v1653
      %v1676 = vpack.c.b16 %v1656, %v1655
      %v1677 = vpack.c.b16 %v1658, %v1657
      %v1678 = vpack.c.b16 %v1660, %v1659
      %v1679 = vpack.c.b16 %v1662, %v1661
      %v1680 = vpack.c.b16 %v1664, %v1663
      %1697 = vmatpush.bf16.msra.mxu0 %v1672
      %1698 = vmatpush.bf16.msra.mxu0 %v1671
      %1699 = vmatpush.bf16.msra.mxu0 %v1670
      %1700 = vmatpush.bf16.msra.mxu0 %v1669
      %1701 = vmatpush.bf16.msra.mxu0 %v1668
      %1702 = vmatpush.bf16.msra.mxu0 %v1667
      %1703 = vmatpush.bf16.msra.mxu0 %v1666
      %1704 = vmatpush.bf16.msra.mxu0 %v1665
      %1705 = vmatmul.bf16.gmra.mxu0 %v1561
      %v1706 = vpop.f32.mrf.mxu0
      %v1707 = vadd.f32 %v1599, %v1706
      %v1708 = vpop.f32.mrf.mxu0
      %v1709 = vadd.f32 %v1599, %v1708
      %1710 = vmatmul.bf16.gmra.mxu0 %v1563
      %v1711 = vpop.f32.mrf.mxu0
      %v1712 = vadd.f32 %v1599, %v1711
      %v1713 = vpop.f32.mrf.mxu0
      %v1714 = vadd.f32 %v1599, %v1713
      %1715 = vdwg.mxu0
      %1716 = vmatpush.bf16.msra.mxu0 %v1680
      %1717 = vmatpush.bf16.msra.mxu0 %v1679
      %1718 = vmatpush.bf16.msra.mxu0 %v1678
      %1719 = vmatpush.bf16.msra.mxu0 %v1677
      %1720 = vmatpush.bf16.msra.mxu0 %v1676
      %1721 = vmatpush.bf16.msra.mxu0 %v1675
      %1722 = vmatpush.bf16.msra.mxu0 %v1674
      %1723 = vmatpush.bf16.msra.mxu0 %v1673
      %1724 = vmatmul.bf16.gmra.mxu0 %v1562
      %v1725 = vpop.f32.mrf.mxu0
      %v1726 = vadd.f32 %v1707, %v1725
      %v1727 = vpop.f32.mrf.mxu0
      %v1728 = vadd.f32 %v1709, %v1727
      %1729 = vmatmul.bf16.gmra.mxu0 %v1564
      %v1730 = vpop.f32.mrf.mxu0
      %v1731 = vadd.f32 %v1712, %v1730
      %v1732 = vpop.f32.mrf.mxu0
      %v1733 = vadd.f32 %v1714, %v1732
      %1734 = vdwg.mxu0
      %v1735 = vadd.f32 %v1726, %v1281
      %v1736 = vadd.f32 %v1728, %v1282
      %v1737 = vadd.f32 %v1731, %v1283
      %v1738 = vadd.f32 %v1733, %v1284
      %v1739 = vpack.c.bf16 %v1735, %v1735
      %v1740 = vpack.c.bf16 %v1736, %v1736
      %v1741 = vpack.c.bf16 %v1737, %v1737
      %v1742 = vpack.c.bf16 %v1738, %v1738
      %vm1743 = vcmask 519168
      %1744 = vst.msk [vmem:[%s442] sm:$0xf] %vm1743, %v1739
      %1745 = vst.msk [vmem:[%s442 + $0x4] sm:$0xf] %vm1743, %v1740
      %1746 = vst.msk [vmem:[%s442 + $0x8] sm:$0xf] %vm1743, %v1741
      %1747 = vst.msk [vmem:[%s442 + $0xc] sm:$0xf] %vm1743, %v1742
      %s1748 = smul.u32 4, %s24
      %p1749 = scmp.lt.s32.totalorder %s1748, 7
      %s1750 = scalar_select %p1749, %s1748, 7
      %s1751 = smul.addr %s1750, 4
      %s1752 = scalar_lea.vmem %s13, %s1751
      // Predicated region
      $region73: #{_lambda_.6} parent=71 // pred_check
        %p1753 = pneg %p320
      $region74: #{_lambda_.6} parent=71 // pred_check_branch
        %1755 = sbr.rel (%p1753) target = $region76
      $region75: #{_lambda_.6} parent=71 // pred_region
        %s1756 = smul.u32 4, %s24
      $region76: #{_lambda_.6} parent=71 // pred_fallthru
        _
    $region72: #{_lambda_.6} parent=5 // pred_fallthru
      _
    %p1757 = scmp.le.s32.totalorder 2, %s19
    // Predicated region
    $region77: #{_lambda_.6} parent=5 // pred_check
      %p1758 = pneg %p1757
    $region78: #{_lambda_.6} parent=5 // pred_check_branch
      %1760 = sbr.rel (%p1758) target = $region80
    $region79: #{_lambda_.6} parent=5 // pred_region
      %s1761 = ssub.s32 %s19, 2
      // Predicated region
      $region81: #{_lambda_.6} parent=79 // pred_check
        %p1762 = pneg %p326
      $region82: #{_lambda_.6} parent=79 // pred_check_branch
        %1764 = sbr.rel (%p1762) target = $region84
      $region83: #{_lambda_.6} parent=79 // pred_region
        %s1765 = smul.u32 4, %s25
        %p1766 = scmp.lt.s32.totalorder %s1765, 7
        %s1767 = scalar_select %p1766, %s1765, 7
        %s1768 = smul.addr %s1767, 4
        %s1769 = scalar_lea.vmem %s13, %s1768
      $region84: #{_lambda_.6} parent=79 // pred_fallthru
        _
    $region80: #{_lambda_.6} parent=5 // pred_fallthru
      _
  $region6: #{_lambda_.6} parent=0 // loop_footer
    %s23 = sadd.s32 1, %s19
  $region7: #{_lambda_.6} parent=0 // loop_footer_branch
    %18 = sbr.rel target = $region3
  $region8: #{_lambda_.6} parent=0 // loop_exit
    _

// kernel: _lambda_.9
$region0: #{_lambda_.9}
  #allocation0 [shape = 'u32[]', space=smem, size = 0x4, offset = 0x4, fixed_abs, tag = 'smem constant byte address 0x4 - core index']
  #allocation1 [shape = 'u32[72,128]{1,0:T(1,128)}', space=vmem, size = 0x9000, scoped, tag = 'internal scratch']
  %s0 = inlined_call_operand.vmem [shape: bf16[16,128], index: 0, kind: input, shape index: {}]
  %s1 = inlined_call_operand.vmem [shape: bf16[128,128], index: 1, kind: input, shape index: {}]
  %s2 = inlined_call_operand.vmem [shape: f32[1,128], index: 2, kind: input, shape index: {}]
  %s3 = inlined_call_operand.vmem [shape: f32[16,128], index: 3, kind: output, shape index: {}]
  %s4 = sld [smem:[#allocation0]]
  $region22: #{_lambda_.9} parent=0
    _
  %s6 = ssub.s32 1, %s4
  %s7 = scalar_select 0, %s6, %s4
  // Predicated region
  $region2: #{_lambda_.9} parent=0 // pred_check
    _
  $region3: #{_lambda_.9} parent=0 // pred_check_branch
    %9 = sbr.rel (0) target = $region5
  $region4: #{_lambda_.9} parent=0 // pred_region
    _
  $region5: #{_lambda_.9} parent=0 // pred_fallthru
    _
  // Predicated region
  $region6: #{_lambda_.9} parent=0 // pred_check
    _
  $region7: #{_lambda_.9} parent=0 // pred_check_branch
    %11 = sbr.rel (0) target = $region9
  $region8: #{_lambda_.9} parent=0 // pred_region
    _
  $region9: #{_lambda_.9} parent=0 // pred_fallthru
    _
  // Predicated region
  $region10: #{_lambda_.9} parent=0 // pred_check
    _
  $region11: #{_lambda_.9} parent=0 // pred_check_branch
    %13 = sbr.rel (0) target = $region13
  $region12: #{_lambda_.9} parent=0 // pred_region
    _
  $region13: #{_lambda_.9} parent=0 // pred_fallthru
    _
  %v14 = vld [vmem:[%s0] sm:$0xf]
  %v15 = vld [vmem:[%s0 + $0x4] sm:$0xf]
  %v16 = vld [vmem:[%s1] sm:$0xf]
  %v17 = vld [vmem:[%s1 + $0x4] sm:$0xf]
  %v18 = vld [vmem:[%s1 + $0x8] sm:$0xf]
  %v19 = vld [vmem:[%s1 + $0xc] sm:$0xf]
  %v20 = vld [vmem:[%s1 + $0x10] sm:$0xf]
  %v21 = vld [vmem:[%s1 + $0x14] sm:$0xf]
  %v22 = vld [vmem:[%s1 + $0x18] sm:$0xf]
  %v23 = vld [vmem:[%s1 + $0x1c] sm:$0xf]
  %v24 = vld [vmem:[%s1 + $0x20] sm:$0xf]
  %v25 = vld [vmem:[%s1 + $0x24] sm:$0xf]
  %v26 = vld [vmem:[%s1 + $0x28] sm:$0xf]
  %v27 = vld [vmem:[%s1 + $0x2c] sm:$0xf]
  %v28 = vld [vmem:[%s1 + $0x30] sm:$0xf]
  %v29 = vld [vmem:[%s1 + $0x34] sm:$0xf]
  %v30 = vld [vmem:[%s1 + $0x38] sm:$0xf]
  %v31 = vld [vmem:[%s1 + $0x3c] sm:$0xf]
  %v32 = vld [vmem:[%s2] sm:$0x1]
  %v34 = vperm.slane %v32, 0
  %v38 = vunpack.c.l.b16 %v14
  %v39 = vunpack.c.l.b16 %v15
  %v40 = vpack.c.b16 %v39, %v38
  %v58 = vunpack.c.l.b16 %v16
  %v59 = vunpack.c.l.b16 %v17
  %v60 = vunpack.c.l.b16 %v18
  %v61 = vunpack.c.l.b16 %v19
  %v62 = vunpack.c.l.b16 %v20
  %v63 = vunpack.c.l.b16 %v21
  %v64 = vunpack.c.l.b16 %v22
  %v65 = vunpack.c.l.b16 %v23
  %v66 = vunpack.c.l.b16 %v24
  %v67 = vunpack.c.l.b16 %v25
  %v68 = vunpack.c.l.b16 %v26
  %v69 = vunpack.c.l.b16 %v27
  %v70 = vunpack.c.l.b16 %v28
  %v71 = vunpack.c.l.b16 %v29
  %v72 = vunpack.c.l.b16 %v30
  %v73 = vunpack.c.l.b16 %v31
  %v74 = vpack.c.b16 %v59, %v58
  %v75 = vpack.c.b16 %v61, %v60
  %v76 = vpack.c.b16 %v63, %v62
  %v77 = vpack.c.b16 %v65, %v64
  %v78 = vpack.c.b16 %v67, %v66
  %v79 = vpack.c.b16 %v69, %v68
  %v80 = vpack.c.b16 %v71, %v70
  %v81 = vpack.c.b16 %v73, %v72
  %90 = vmatpush.bf16.msra.mxu0 %v81
  %91 = vmatpush.bf16.msra.mxu0 %v80
  %92 = vmatpush.bf16.msra.mxu0 %v79
  %93 = vmatpush.bf16.msra.mxu0 %v78
  %94 = vmatpush.bf16.msra.mxu0 %v77
  %95 = vmatpush.bf16.msra.mxu0 %v76
  %96 = vmatpush.bf16.msra.mxu0 %v75
  %97 = vmatpush.bf16.msra.mxu0 %v74
  %98 = vmatmul.bf16.gmra.mxu0 %v40
  %v99 = vpop.f32.mrf.mxu0
  %v100 = vadd.f32 %v34, %v99
  %v101 = vpop.f32.mrf.mxu0
  %v102 = vadd.f32 %v34, %v101
  %103 = vdwg.mxu0
  %104 = vst [vmem:[%s3] sm:$0xff] %v100
  %105 = vst [vmem:[%s3 + $0x8] sm:$0xff] %v102
  // Predicated region
  $region14: #{_lambda_.9} parent=0 // pred_check
    _
  $region15: #{_lambda_.9} parent=0 // pred_check_branch
    %107 = sbr.rel (0) target = $region17
  $region16: #{_lambda_.9} parent=0 // pred_region
    _
  $region17: #{_lambda_.9} parent=0 // pred_fallthru
    _
  // Predicated region
  $region18: #{_lambda_.9} parent=0 // pred_check
    _
  $region19: #{_lambda_.9} parent=0 // pred_check_branch
    %109 = sbr.rel (0) target = $region21
  $region20: #{_lambda_.9} parent=0 // pred_region
    _
  $region21: #{_lambda_.9} parent=0 // pred_fallthru
    _

// kernel: _lambda_.8
$region0: #{_lambda_.8}
  #allocation0 [shape = 'u32[]', space=smem, size = 0x4, offset = 0x4, fixed_abs, tag = 'smem constant byte address 0x4 - core index']
  #allocation1 [shape = 'u32[72,128]{1,0:T(1,128)}', space=vmem, size = 0x9000, scoped, tag = 'internal scratch']
  %s0 = inlined_call_operand.vmem [shape: bf16[2,8,128], index: 0, kind: input, shape index: {}]
  %s1 = inlined_call_operand.vmem [shape: f32[1,128], index: 1, kind: input, shape index: {}, may-alias: {1,7}]
  %s2 = inlined_call_operand.vmem [shape: f32[1,128], index: 2, kind: input, shape index: {}, may-alias: {2,6,8,12}]
  %s3 = inlined_call_operand.vmem [shape: bf16[128,384], index: 3, kind: input, shape index: {}]
  %s4 = inlined_call_operand.vmem [shape: f32[1,384], index: 4, kind: input, shape index: {}]
  %s5 = inlined_call_operand.vmem [shape: bf16[128,128], index: 5, kind: input, shape index: {}]
  %s6 = inlined_call_operand.vmem [shape: f32[1,128], index: 6, kind: input, shape index: {}, may-alias: {2,6,8,12}]
  %s7 = inlined_call_operand.vmem [shape: f32[1,128], index: 7, kind: input, shape index: {}, may-alias: {1,7}]
  %s8 = inlined_call_operand.vmem [shape: f32[1,128], index: 8, kind: input, shape index: {}, may-alias: {2,6,8,12}]
  %s9 = inlined_call_operand.vmem [shape: bf16[128,512], index: 9, kind: input, shape index: {}]
  %s10 = inlined_call_operand.vmem [shape: f32[1,512], index: 10, kind: input, shape index: {}]
  %s11 = inlined_call_operand.vmem [shape: bf16[512,128], index: 11, kind: input, shape index: {}]
  %s12 = inlined_call_operand.vmem [shape: f32[1,128], index: 12, kind: input, shape index: {}, may-alias: {2,6,8,12}]
  %s13 = inlined_call_operand.vmem [shape: bf16[2,8,128], index: 13, kind: output, shape index: {}]
  %s14 = sld [smem:[#allocation0]]
  $region85: #{_lambda_.8} parent=0
    _
  %s16 = ssub.s32 1, %s14
  %s17 = scalar_select 0, %s16, %s14
  loop: start=0, step=1, limit=4
  $region2: #{_lambda_.8} parent=0 // loop_pre_header
    _
  $region3: #{_lambda_.8} parent=0 // loop_header
    %s19 = sphi 0, %s23
    %p20 = scmp.ge.s32.totalorder %s19, 4
    %s29 = sphi 0, %s31
    %s32 = sphi 0, %s29
    %s33 = sphi 0, %s32
    %s49 = sphi 0, %s33
    %s53 = sphi 0, %s53
    %s55 = sphi 0, %s53
    %s56 = sphi 0, %s55
    %s70 = sphi 0, %s56
    %s74 = sphi 0, %s74
    %s76 = sphi 0, %s74
    %s77 = sphi 0, %s76
    %s91 = sphi 0, %s77
    %s95 = sphi 0, %s95
    %s97 = sphi 0, %s95
    %s98 = sphi 0, %s97
    %s112 = sphi 0, %s98
    %s116 = sphi 0, %s116
    %s118 = sphi 0, %s116
    %s119 = sphi 0, %s118
    %s133 = sphi 0, %s119
    %s137 = sphi 0, %s137
    %s139 = sphi 0, %s137
    %s140 = sphi 0, %s139
    %s154 = sphi 0, %s140
    %s158 = sphi 0, %s158
    %s160 = sphi 0, %s158
    %s161 = sphi 0, %s160
    %s175 = sphi 0, %s161
    %s179 = sphi 0, %s179
    %s181 = sphi 0, %s179
    %s182 = sphi 0, %s181
    %s196 = sphi 0, %s182
    %s200 = sphi 0, %s200
    %s202 = sphi 0, %s200
    %s203 = sphi 0, %s202
    %s217 = sphi 0, %s203
    %s221 = sphi 0, %s221
    %s223 = sphi 0, %s221
    %s224 = sphi 0, %s223
    %s238 = sphi 0, %s224
    %s242 = sphi 0, %s242
    %s244 = sphi 0, %s242
    %s245 = sphi 0, %s244
    %s259 = sphi 0, %s245
    %s263 = sphi 0, %s263
    %s265 = sphi 0, %s263
    %s266 = sphi 0, %s265
    %s280 = sphi 0, %s266
    %s284 = sphi 0, %s284
    %s286 = sphi 0, %s284
    %s287 = sphi 0, %s286
    %s301 = sphi 0, %s287
    %s307 = sphi 0, %s309
    %s310 = sphi 0, %s307
    %s311 = sphi 0, %s310
    %s327 = sphi 0, %s311
  $region4: #{_lambda_.8} parent=0 // loop_header_branch
    %22 = sbr.rel (%p20) target = $region8
  $region5: #{_lambda_.8} parent=0 // loop_body
    %s24 = ssub.s32 %s19, 1
    %s25 = ssub.s32 %s19, 2
    %s26 = sadd.s32 %s19, 1
    %s27 = ssub.s32 %s19, %s26
    %p28 = scmp.eq.s32.totalorder %s27, 0
    %s30 = sadd.s32 %s29, 1
    %s31 = scalar_select %p28, %s29, %s30
    %p34 = pneg %p28
    %p35 = scmp.eq.s32.totalorder %s19, 1
    %p36 = por %p34, %p35
    %p37 = scmp.ne.s32.totalorder %s29, %s32
    %p38 = scmp.eq.s32.totalorder %s19, 0
    %p39 = por %p37, %p38
    %p40 = scmp.ne.s32.totalorder %s29, %s32
    %p41 = scmp.eq.s32.totalorder %s24, 1
    %p42 = por %p40, %p41
    %p43 = scmp.ne.s32.totalorder %s32, %s33
    %p44 = scmp.eq.s32.totalorder %s24, 0
    %p45 = por %p43, %p44
    %p46 = scmp.ne.s32.totalorder %s32, %s33
    %p47 = scmp.eq.s32.totalorder %s25, 1
    %p48 = por %p46, %p47
    %p50 = scmp.ne.s32.totalorder %s33, %s49
    %p51 = scmp.eq.s32.totalorder %s25, 0
    %p52 = por %p50, %p51
    %s54 = sadd.s32 %s53, 1
    %p57 = scmp.eq.s32.totalorder %s19, 1
    %p58 = scmp.ne.s32.totalorder %s53, %s55
    %p59 = scmp.eq.s32.totalorder %s19, 0
    %p60 = por %p58, %p59
    %p61 = scmp.ne.s32.totalorder %s53, %s55
    %p62 = scmp.eq.s32.totalorder %s24, 1
    %p63 = por %p61, %p62
    %p64 = scmp.ne.s32.totalorder %s55, %s56
    %p65 = scmp.eq.s32.totalorder %s24, 0
    %p66 = por %p64, %p65
    %p67 = scmp.ne.s32.totalorder %s55, %s56
    %p68 = scmp.eq.s32.totalorder %s25, 1
    %p69 = por %p67, %p68
    %p71 = scmp.ne.s32.totalorder %s56, %s70
    %p72 = scmp.eq.s32.totalorder %s25, 0
    %p73 = por %p71, %p72
    %s75 = sadd.s32 %s74, 1
    %p78 = scmp.eq.s32.totalorder %s19, 1
    %p79 = scmp.ne.s32.totalorder %s74, %s76
    %p80 = scmp.eq.s32.totalorder %s19, 0
    %p81 = por %p79, %p80
    %p82 = scmp.ne.s32.totalorder %s74, %s76
    %p83 = scmp.eq.s32.totalorder %s24, 1
    %p84 = por %p82, %p83
    %p85 = scmp.ne.s32.totalorder %s76, %s77
    %p86 = scmp.eq.s32.totalorder %s24, 0
    %p87 = por %p85, %p86
    %p88 = scmp.ne.s32.totalorder %s76, %s77
    %p89 = scmp.eq.s32.totalorder %s25, 1
    %p90 = por %p88, %p89
    %p92 = scmp.ne.s32.totalorder %s77, %s91
    %p93 = scmp.eq.s32.totalorder %s25, 0
    %p94 = por %p92, %p93
    %s96 = sadd.s32 %s95, 1
    %p99 = scmp.eq.s32.totalorder %s19, 1
    %p100 = scmp.ne.s32.totalorder %s95, %s97
    %p101 = scmp.eq.s32.totalorder %s19, 0
    %p102 = por %p100, %p101
    %p103 = scmp.ne.s32.totalorder %s95, %s97
    %p104 = scmp.eq.s32.totalorder %s24, 1
    %p105 = por %p103, %p104
    %p106 = scmp.ne.s32.totalorder %s97, %s98
    %p107 = scmp.eq.s32.totalorder %s24, 0
    %p108 = por %p106, %p107
    %p109 = scmp.ne.s32.totalorder %s97, %s98
    %p110 = scmp.eq.s32.totalorder %s25, 1
    %p111 = por %p109, %p110
    %p113 = scmp.ne.s32.totalorder %s98, %s112
    %p114 = scmp.eq.s32.totalorder %s25, 0
    %p115 = por %p113, %p114
    %s117 = sadd.s32 %s116, 1
    %p120 = scmp.eq.s32.totalorder %s19, 1
    %p121 = scmp.ne.s32.totalorder %s116, %s118
    %p122 = scmp.eq.s32.totalorder %s19, 0
    %p123 = por %p121, %p122
    %p124 = scmp.ne.s32.totalorder %s116, %s118
    %p125 = scmp.eq.s32.totalorder %s24, 1
    %p126 = por %p124, %p125
    %p127 = scmp.ne.s32.totalorder %s118, %s119
    %p128 = scmp.eq.s32.totalorder %s24, 0
    %p129 = por %p127, %p128
    %p130 = scmp.ne.s32.totalorder %s118, %s119
    %p131 = scmp.eq.s32.totalorder %s25, 1
    %p132 = por %p130, %p131
    %p134 = scmp.ne.s32.totalorder %s119, %s133
    %p135 = scmp.eq.s32.totalorder %s25, 0
    %p136 = por %p134, %p135
    %s138 = sadd.s32 %s137, 1
    %p141 = scmp.eq.s32.totalorder %s19, 1
    %p142 = scmp.ne.s32.totalorder %s137, %s139
    %p143 = scmp.eq.s32.totalorder %s19, 0
    %p144 = por %p142, %p143
    %p145 = scmp.ne.s32.totalorder %s137, %s139
    %p146 = scmp.eq.s32.totalorder %s24, 1
    %p147 = por %p145, %p146
    %p148 = scmp.ne.s32.totalorder %s139, %s140
    %p149 = scmp.eq.s32.totalorder %s24, 0
    %p150 = por %p148, %p149
    %p151 = scmp.ne.s32.totalorder %s139, %s140
    %p152 = scmp.eq.s32.totalorder %s25, 1
    %p153 = por %p151, %p152
    %p155 = scmp.ne.s32.totalorder %s140, %s154
    %p156 = scmp.eq.s32.totalorder %s25, 0
    %p157 = por %p155, %p156
    %s159 = sadd.s32 %s158, 1
    %p162 = scmp.eq.s32.totalorder %s19, 1
    %p163 = scmp.ne.s32.totalorder %s158, %s160
    %p164 = scmp.eq.s32.totalorder %s19, 0
    %p165 = por %p163, %p164
    %p166 = scmp.ne.s32.totalorder %s158, %s160
    %p167 = scmp.eq.s32.totalorder %s24, 1
    %p168 = por %p166, %p167
    %p169 = scmp.ne.s32.totalorder %s160, %s161
    %p170 = scmp.eq.s32.totalorder %s24, 0
    %p171 = por %p169, %p170
    %p172 = scmp.ne.s32.totalorder %s160, %s161
    %p173 = scmp.eq.s32.totalorder %s25, 1
    %p174 = por %p172, %p173
    %p176 = scmp.ne.s32.totalorder %s161, %s175
    %p177 = scmp.eq.s32.totalorder %s25, 0
    %p178 = por %p176, %p177
    %s180 = sadd.s32 %s179, 1
    %p183 = scmp.eq.s32.totalorder %s19, 1
    %p184 = scmp.ne.s32.totalorder %s179, %s181
    %p185 = scmp.eq.s32.totalorder %s19, 0
    %p186 = por %p184, %p185
    %p187 = scmp.ne.s32.totalorder %s179, %s181
    %p188 = scmp.eq.s32.totalorder %s24, 1
    %p189 = por %p187, %p188
    %p190 = scmp.ne.s32.totalorder %s181, %s182
    %p191 = scmp.eq.s32.totalorder %s24, 0
    %p192 = por %p190, %p191
    %p193 = scmp.ne.s32.totalorder %s181, %s182
    %p194 = scmp.eq.s32.totalorder %s25, 1
    %p195 = por %p193, %p194
    %p197 = scmp.ne.s32.totalorder %s182, %s196
    %p198 = scmp.eq.s32.totalorder %s25, 0
    %p199 = por %p197, %p198
    %s201 = sadd.s32 %s200, 1
    %p204 = scmp.eq.s32.totalorder %s19, 1
    %p205 = scmp.ne.s32.totalorder %s200, %s202
    %p206 = scmp.eq.s32.totalorder %s19, 0
    %p207 = por %p205, %p206
    %p208 = scmp.ne.s32.totalorder %s200, %s202
    %p209 = scmp.eq.s32.totalorder %s24, 1
    %p210 = por %p208, %p209
    %p211 = scmp.ne.s32.totalorder %s202, %s203
    %p212 = scmp.eq.s32.totalorder %s24, 0
    %p213 = por %p211, %p212
    %p214 = scmp.ne.s32.totalorder %s202, %s203
    %p215 = scmp.eq.s32.totalorder %s25, 1
    %p216 = por %p214, %p215
    %p218 = scmp.ne.s32.totalorder %s203, %s217
    %p219 = scmp.eq.s32.totalorder %s25, 0
    %p220 = por %p218, %p219
    %s222 = sadd.s32 %s221, 1
    %p225 = scmp.eq.s32.totalorder %s19, 1
    %p226 = scmp.ne.s32.totalorder %s221, %s223
    %p227 = scmp.eq.s32.totalorder %s19, 0
    %p228 = por %p226, %p227
    %p229 = scmp.ne.s32.totalorder %s221, %s223
    %p230 = scmp.eq.s32.totalorder %s24, 1
    %p231 = por %p229, %p230
    %p232 = scmp.ne.s32.totalorder %s223, %s224
    %p233 = scmp.eq.s32.totalorder %s24, 0
    %p234 = por %p232, %p233
    %p235 = scmp.ne.s32.totalorder %s223, %s224
    %p236 = scmp.eq.s32.totalorder %s25, 1
    %p237 = por %p235, %p236
    %p239 = scmp.ne.s32.totalorder %s224, %s238
    %p240 = scmp.eq.s32.totalorder %s25, 0
    %p241 = por %p239, %p240
    %s243 = sadd.s32 %s242, 1
    %p246 = scmp.eq.s32.totalorder %s19, 1
    %p247 = scmp.ne.s32.totalorder %s242, %s244
    %p248 = scmp.eq.s32.totalorder %s19, 0
    %p249 = por %p247, %p248
    %p250 = scmp.ne.s32.totalorder %s242, %s244
    %p251 = scmp.eq.s32.totalorder %s24, 1
    %p252 = por %p250, %p251
    %p253 = scmp.ne.s32.totalorder %s244, %s245
    %p254 = scmp.eq.s32.totalorder %s24, 0
    %p255 = por %p253, %p254
    %p256 = scmp.ne.s32.totalorder %s244, %s245
    %p257 = scmp.eq.s32.totalorder %s25, 1
    %p258 = por %p256, %p257
    %p260 = scmp.ne.s32.totalorder %s245, %s259
    %p261 = scmp.eq.s32.totalorder %s25, 0
    %p262 = por %p260, %p261
    %s264 = sadd.s32 %s263, 1
    %p267 = scmp.eq.s32.totalorder %s19, 1
    %p268 = scmp.ne.s32.totalorder %s263, %s265
    %p269 = scmp.eq.s32.totalorder %s19, 0
    %p270 = por %p268, %p269
    %p271 = scmp.ne.s32.totalorder %s263, %s265
    %p272 = scmp.eq.s32.totalorder %s24, 1
    %p273 = por %p271, %p272
    %p274 = scmp.ne.s32.totalorder %s265, %s266
    %p275 = scmp.eq.s32.totalorder %s24, 0
    %p276 = por %p274, %p275
    %p277 = scmp.ne.s32.totalorder %s265, %s266
    %p278 = scmp.eq.s32.totalorder %s25, 1
    %p279 = por %p277, %p278
    %p281 = scmp.ne.s32.totalorder %s266, %s280
    %p282 = scmp.eq.s32.totalorder %s25, 0
    %p283 = por %p281, %p282
    %s285 = sadd.s32 %s284, 1
    %p288 = scmp.eq.s32.totalorder %s19, 1
    %p289 = scmp.ne.s32.totalorder %s284, %s286
    %p290 = scmp.eq.s32.totalorder %s19, 0
    %p291 = por %p289, %p290
    %p292 = scmp.ne.s32.totalorder %s284, %s286
    %p293 = scmp.eq.s32.totalorder %s24, 1
    %p294 = por %p292, %p293
    %p295 = scmp.ne.s32.totalorder %s286, %s287
    %p296 = scmp.eq.s32.totalorder %s24, 0
    %p297 = por %p295, %p296
    %p298 = scmp.ne.s32.totalorder %s286, %s287
    %p299 = scmp.eq.s32.totalorder %s25, 1
    %p300 = por %p298, %p299
    %p302 = scmp.ne.s32.totalorder %s287, %s301
    %p303 = scmp.eq.s32.totalorder %s25, 0
    %p304 = por %p302, %p303
    %s305 = ssub.s32 %s19, %s26
    %p306 = scmp.eq.s32.totalorder %s305, 0
    %s308 = sadd.s32 %s307, 1
    %s309 = scalar_select %p306, %s307, %s308
    %p312 = pneg %p306
    %p313 = scmp.eq.s32.totalorder %s19, 1
    %p314 = por %p312, %p313
    %p315 = scmp.ne.s32.totalorder %s307, %s310
    %p316 = scmp.eq.s32.totalorder %s19, 0
    %p317 = por %p315, %p316
    %p318 = scmp.ne.s32.totalorder %s307, %s310
    %p319 = scmp.eq.s32.totalorder %s24, 1
    %p320 = por %p318, %p319
    %p321 = scmp.ne.s32.totalorder %s310, %s311
    %p322 = scmp.eq.s32.totalorder %s24, 0
    %p323 = por %p321, %p322
    %p324 = scmp.ne.s32.totalorder %s310, %s311
    %p325 = scmp.eq.s32.totalorder %s25, 1
    %p326 = por %p324, %p325
    %p328 = scmp.ne.s32.totalorder %s311, %s327
    %p329 = scmp.eq.s32.totalorder %s25, 0
    %p330 = por %p328, %p329
    %p331 = scmp.le.s32.totalorder 1, %s19
    %p332 = scmp.lt.s32.totalorder %s19, 3
    %p333 = pnand %p331, %p332
    %p334 = pneg %p333
    // Predicated region
    $region9: #{_lambda_.8} parent=5 // pred_check
      _
    $region10: #{_lambda_.8} parent=5 // pred_check_branch
      %336 = sbr.rel (%p333) target = $region12
    $region11: #{_lambda_.8} parent=5 // pred_region
      %s337 = ssub.s32 %s19, 1
      // Predicated region
      $region13: #{_lambda_.8} parent=11 // pred_check
        %p338 = pneg %p66
      $region14: #{_lambda_.8} parent=11 // pred_check_branch
        %340 = sbr.rel (%p338) target = $region16
      $region15: #{_lambda_.8} parent=11 // pred_region
        _
      $region16: #{_lambda_.8} parent=11 // pred_fallthru
        _
      // Predicated region
      $region17: #{_lambda_.8} parent=11 // pred_check
        %p341 = pneg %p87
      $region18: #{_lambda_.8} parent=11 // pred_check_branch
        %343 = sbr.rel (%p341) target = $region20
      $region19: #{_lambda_.8} parent=11 // pred_region
        _
      $region20: #{_lambda_.8} parent=11 // pred_fallthru
        _
      // Predicated region
      $region21: #{_lambda_.8} parent=11 // pred_check
        %p344 = pneg %p108
      $region22: #{_lambda_.8} parent=11 // pred_check_branch
        %346 = sbr.rel (%p344) target = $region24
      $region23: #{_lambda_.8} parent=11 // pred_region
        _
      $region24: #{_lambda_.8} parent=11 // pred_fallthru
        _
      // Predicated region
      $region25: #{_lambda_.8} parent=11 // pred_check
        %p347 = pneg %p129
      $region26: #{_lambda_.8} parent=11 // pred_check_branch
        %349 = sbr.rel (%p347) target = $region28
      $region27: #{_lambda_.8} parent=11 // pred_region
        _
      $region28: #{_lambda_.8} parent=11 // pred_fallthru
        _
      // Predicated region
      $region29: #{_lambda_.8} parent=11 // pred_check
        %p350 = pneg %p150
      $region30: #{_lambda_.8} parent=11 // pred_check_branch
        %352 = sbr.rel (%p350) target = $region32
      $region31: #{_lambda_.8} parent=11 // pred_region
        _
      $region32: #{_lambda_.8} parent=11 // pred_fallthru
        _
      // Predicated region
      $region33: #{_lambda_.8} parent=11 // pred_check
        %p353 = pneg %p171
      $region34: #{_lambda_.8} parent=11 // pred_check_branch
        %355 = sbr.rel (%p353) target = $region36
      $region35: #{_lambda_.8} parent=11 // pred_region
        _
      $region36: #{_lambda_.8} parent=11 // pred_fallthru
        _
      // Predicated region
      $region37: #{_lambda_.8} parent=11 // pred_check
        %p356 = pneg %p192
      $region38: #{_lambda_.8} parent=11 // pred_check_branch
        %358 = sbr.rel (%p356) target = $region40
      $region39: #{_lambda_.8} parent=11 // pred_region
        _
      $region40: #{_lambda_.8} parent=11 // pred_fallthru
        _
      // Predicated region
      $region41: #{_lambda_.8} parent=11 // pred_check
        %p359 = pneg %p213
      $region42: #{_lambda_.8} parent=11 // pred_check_branch
        %361 = sbr.rel (%p359) target = $region44
      $region43: #{_lambda_.8} parent=11 // pred_region
        _
      $region44: #{_lambda_.8} parent=11 // pred_fallthru
        _
      // Predicated region
      $region45: #{_lambda_.8} parent=11 // pred_check
        %p362 = pneg %p234
      $region46: #{_lambda_.8} parent=11 // pred_check_branch
        %364 = sbr.rel (%p362) target = $region48
      $region47: #{_lambda_.8} parent=11 // pred_region
        _
      $region48: #{_lambda_.8} parent=11 // pred_fallthru
        _
      // Predicated region
      $region49: #{_lambda_.8} parent=11 // pred_check
        %p365 = pneg %p255
      $region50: #{_lambda_.8} parent=11 // pred_check_branch
        %367 = sbr.rel (%p365) target = $region52
      $region51: #{_lambda_.8} parent=11 // pred_region
        _
      $region52: #{_lambda_.8} parent=11 // pred_fallthru
        _
      // Predicated region
      $region53: #{_lambda_.8} parent=11 // pred_check
        %p368 = pneg %p276
      $region54: #{_lambda_.8} parent=11 // pred_check_branch
        %370 = sbr.rel (%p368) target = $region56
      $region55: #{_lambda_.8} parent=11 // pred_region
        _
      $region56: #{_lambda_.8} parent=11 // pred_fallthru
        _
      // Predicated region
      $region57: #{_lambda_.8} parent=11 // pred_check
        %p371 = pneg %p297
      $region58: #{_lambda_.8} parent=11 // pred_check_branch
        %373 = sbr.rel (%p371) target = $region60
      $region59: #{_lambda_.8} parent=11 // pred_region
        _
      $region60: #{_lambda_.8} parent=11 // pred_fallthru
        _
    $region12: #{_lambda_.8} parent=5 // pred_fallthru
      _
    %p374 = scmp.lt.s32.totalorder %s19, 2
    // Predicated region
    $region61: #{_lambda_.8} parent=5 // pred_check
      %p375 = pneg %p374
    $region62: #{_lambda_.8} parent=5 // pred_check_branch
      %377 = sbr.rel (%p375) target = $region64
    $region63: #{_lambda_.8} parent=5 // pred_region
      // Predicated region
      $region65: #{_lambda_.8} parent=63 // pred_check
        %p378 = pneg %p39
      $region66: #{_lambda_.8} parent=63 // pred_check_branch
        %380 = sbr.rel (%p378) target = $region68
      $region67: #{_lambda_.8} parent=63 // pred_region
        %p381 = scmp.lt.s32.totalorder %s19, 1
        %s382 = scalar_select %p381, %s19, 1
        %s383 = smul.addr %s382, 4
        %s384 = scalar_lea.vmem %s0, %s383
      $region68: #{_lambda_.8} parent=63 // pred_fallthru
        _
    $region64: #{_lambda_.8} parent=5 // pred_fallthru
      _
    %p385 = scmp.le.s32.totalorder 1, %s19
    %p386 = scmp.lt.s32.totalorder %s19, 3
    %p387 = pnand %p385, %p386
    %p388 = pneg %p387
    // Predicated region
    $region69: #{_lambda_.8} parent=5 // pred_check
      _
    $region70: #{_lambda_.8} parent=5 // pred_check_branch
      %390 = sbr.rel (%p387) target = $region72
    $region71: #{_lambda_.8} parent=5 // pred_region
      %s391 = ssub.s32 %s19, 1
      %p392 = scmp.lt.s32.totalorder %s24, 1
      %s393 = scalar_select %p392, %s24, 1
      %s394 = smul.addr %s393, 4
      %s395 = scalar_lea.vmem %s0, %s394
      %p396 = pneg %p45
      %p397 = pneg %p42
      %p398 = pneg %p66
      %p399 = pneg %p63
      %p400 = pneg %p87
      %p401 = pneg %p84
      %p402 = pneg %p108
      %p403 = pneg %p105
      %p404 = pneg %p129
      %p405 = pneg %p126
      %p406 = pneg %p150
      %p407 = pneg %p147
      %p408 = pneg %p171
      %p409 = pneg %p168
      %p410 = pneg %p192
      %p411 = pneg %p189
      %p412 = pneg %p213
      %p413 = pneg %p210
      %p414 = pneg %p234
      %p415 = pneg %p231
      %p416 = pneg %p255
      %p417 = pneg %p252
      %p418 = pneg %p276
      %p419 = pneg %p273
      %p420 = pneg %p297
      %p421 = pneg %p294
      %p422 = pneg %p323
      %p423 = pneg %p320
      %p424 = scmp.lt.s32.totalorder %s24, 1
      %s425 = scalar_select %p424, %s24, 1
      %s426 = smul.addr %s425, 4
      %s427 = scalar_lea.vmem %s13, %s426
      %p428 = scmp.lt.s32.totalorder %s24, 1
      %s429 = scalar_select %p428, %s24, 1
      %s430 = smul.addr %s429, 4
      %s431 = scalar_lea.vmem %s0, %s430
      %p432 = scmp.lt.s32.totalorder %s24, 1
      %s433 = scalar_select %p432, %s24, 1
      %s434 = smul.addr %s433, 4
      %s435 = scalar_lea.vmem %s13, %s434
      %v437 = vld [vmem:[%s431] sm:$0xf]
      %v438 = vunpack.c.l.bf16 %v437
      %v439 = vld [vmem:[%s1] sm:$0x1]
      %v440 = vld [vmem:[%s2] sm:$0x1]
      %441 = vadd.xlane.f32.xlu0 %v438
      %v442 = vpop.xlane.xlu0 %441
      %v443 = vrcp.pop 128.0
      %v444 = vmul.f32 128.0, %v443
      %v445 = vsub.f32 1.0, %v444
      %v446 = vmul.f32 %v443, %v445
      %v447 = vadd.f32 %v443, %v446
      %vm448 = vweird.f32 %v443
      %v449 = vsel %vm448, %v443, %v447
      %v450 = vmul.f32 %v442, %v449
      %v451 = vsub.f32 %v438, %v450
      %v452 = vmul.f32 %v451, %v451
      %453 = vadd.xlane.f32.xlu0 %v452
      %v454 = vpop.xlane.xlu0 %453
      %v455 = vmul.f32 %v454, %v449
      %v456 = vadd.f32 %v455, 1e-05
      %v457 = vrsqrt.pop %v456
      %v458 = vmul.f32 %v457, %v456
      %v459 = vmul.f32 %v458, %v457
      %v460 = vmul.f32 0.5, %v459
      %v461 = vsub.f32 1.5, %v460
      %v462 = vmul.f32 %v457, %v461
      %vm463 = vweird.f32 %v456
      %vm464 = vweird.f32 %v457
      %vm465 = vmor %vm463, %vm464
      %v466 = vsel %vm465, %v457, %v462
      %v467 = vmul.f32 %v451, %v466
      %v469 = vperm.slane %v439, 0
      %v471 = vmul.f32 %v467, %v469
      %v473 = vperm.slane %v440, 0
      %v475 = vadd.f32 %v471, %v473
      %v476 = vpack.c.bf16 %v475, %v475
      %v477 = vld [vmem:[%s3] sm:$0xff]
      %v478 = vld [vmem:[%s3 + $0x8] sm:$0xf]
      %v479 = vld [vmem:[%s3 + $0xc] sm:$0xff]
      %v480 = vld [vmem:[%s3 + $0x14] sm:$0xf]
      %v481 = vld [vmem:[%s3 + $0x18] sm:$0xff]
      %v482 = vld [vmem:[%s3 + $0x20] sm:$0xf]
      %v483 = vld [vmem:[%s3 + $0x24] sm:$0xff]
      %v484 = vld [vmem:[%s3 + $0x2c] sm:$0xf]
      %v485 = vld [vmem:[%s3 + $0x30] sm:$0xff]
      %v486 = vld [vmem:[%s3 + $0x38] sm:$0xf]
      %v487 = vld [vmem:[%s3 + $0x3c] sm:$0xff]
      %v488 = vld [vmem:[%s3 + $0x44] sm:$0xf]
      %v489 = vld [vmem:[%s3 + $0x48] sm:$0xff]
      %v490 = vld [vmem:[%s3 + $0x50] sm:$0xf]
      %v491 = vld [vmem:[%s3 + $0x54] sm:$0xff]
      %v492 = vld [vmem:[%s3 + $0x5c] sm:$0xf]
      %v493 = vld [vmem:[%s3 + $0x60] sm:$0xff]
      %v494 = vld [vmem:[%s3 + $0x68] sm:$0xf]
      %v495 = vld [vmem:[%s3 + $0x6c] sm:$0xff]
      %v496 = vld [vmem:[%s3 + $0x74] sm:$0xf]
      %v497 = vld [vmem:[%s3 + $0x78] sm:$0xff]
      %v498 = vld [vmem:[%s3 + $0x80] sm:$0xf]
      %v499 = vld [vmem:[%s3 + $0x84] sm:$0xff]
      %v500 = vld [vmem:[%s3 + $0x8c] sm:$0xf]
      %v501 = vld [vmem:[%s3 + $0x90] sm:$0xff]
      %v502 = vld [vmem:[%s3 + $0x98] sm:$0xf]
      %v503 = vld [vmem:[%s3 + $0x9c] sm:$0xff]
      %v504 = vld [vmem:[%s3 + $0xa4] sm:$0xf]
      %v505 = vld [vmem:[%s3 + $0xa8] sm:$0xff]
      %v506 = vld [vmem:[%s3 + $0xb0] sm:$0xf]
      %v507 = vld [vmem:[%s3 + $0xb4] sm:$0xff]
      %v508 = vld [vmem:[%s3 + $0xbc] sm:$0xf]
      %v509 = vld [vmem:[%s4] sm:$0x7]
      %v511 = vperm.slane %v509, 0
      %v512 = vperm.slane %v509, 1
      %v513 = vperm.slane %v509, 2
      %v549 = vunpack.c.l.b16 %v477
      %v550 = vunpack.c.h.b16 %v477
      %v551 = vunpack.c.l.b16 %v478
      %v552 = vunpack.c.l.b16 %v479
      %v553 = vunpack.c.h.b16 %v479
      %v554 = vunpack.c.l.b16 %v480
      %v555 = vunpack.c.l.b16 %v481
      %v556 = vunpack.c.h.b16 %v481
      %v557 = vunpack.c.l.b16 %v482
      %v558 = vunpack.c.l.b16 %v483
      %v559 = vunpack.c.h.b16 %v483
      %v560 = vunpack.c.l.b16 %v484
      %v561 = vunpack.c.l.b16 %v485
      %v562 = vunpack.c.h.b16 %v485
      %v563 = vunpack.c.l.b16 %v486
      %v564 = vunpack.c.l.b16 %v487
      %v565 = vunpack.c.h.b16 %v487
      %v566 = vunpack.c.l.b16 %v488
      %v567 = vunpack.c.l.b16 %v489
      %v568 = vunpack.c.h.b16 %v489
      %v569 = vunpack.c.l.b16 %v490
      %v570 = vunpack.c.l.b16 %v491
      %v571 = vunpack.c.h.b16 %v491
      %v572 = vunpack.c.l.b16 %v492
      %v573 = vunpack.c.l.b16 %v493
      %v574 = vunpack.c.h.b16 %v493
      %v575 = vunpack.c.l.b16 %v494
      %v576 = vunpack.c.l.b16 %v495
      %v577 = vunpack.c.h.b16 %v495
      %v578 = vunpack.c.l.b16 %v496
      %v579 = vunpack.c.l.b16 %v497
      %v580 = vunpack.c.h.b16 %v497
      %v581 = vunpack.c.l.b16 %v498
      %v582 = vunpack.c.l.b16 %v499
      %v583 = vunpack.c.h.b16 %v499
      %v584 = vunpack.c.l.b16 %v500
      %v585 = vunpack.c.l.b16 %v501
      %v586 = vunpack.c.h.b16 %v501
      %v587 = vunpack.c.l.b16 %v502
      %v588 = vunpack.c.l.b16 %v503
      %v589 = vunpack.c.h.b16 %v503
      %v590 = vunpack.c.l.b16 %v504
      %v591 = vunpack.c.l.b16 %v505
      %v592 = vunpack.c.h.b16 %v505
      %v593 = vunpack.c.l.b16 %v506
      %v594 = vunpack.c.l.b16 %v507
      %v595 = vunpack.c.h.b16 %v507
      %v596 = vunpack.c.l.b16 %v508
      %v597 = vpack.c.b16 %v552, %v549
      %v598 = vpack.c.b16 %v553, %v550
      %v599 = vpack.c.b16 %v554, %v551
      %v600 = vpack.c.b16 %v558, %v555
      %v601 = vpack.c.b16 %v559, %v556
      %v602 = vpack.c.b16 %v560, %v557
      %v603 = vpack.c.b16 %v564, %v561
      %v604 = vpack.c.b16 %v565, %v562
      %v605 = vpack.c.b16 %v566, %v563
      %v606 = vpack.c.b16 %v570, %v567
      %v607 = vpack.c.b16 %v571, %v568
      %v608 = vpack.c.b16 %v572, %v569
      %v609 = vpack.c.b16 %v576, %v573
      %v610 = vpack.c.b16 %v577, %v574
      %v611 = vpack.c.b16 %v578, %v575
      %v612 = vpack.c.b16 %v582, %v579
      %v613 = vpack.c.b16 %v583, %v580
      %v614 = vpack.c.b16 %v584, %v581
      %v615 = vpack.c.b16 %v588, %v585
      %v616 = vpack.c.b16 %v589, %v586
      %v617 = vpack.c.b16 %v590, %v587
      %v618 = vpack.c.b16 %v594, %v591
      %v619 = vpack.c.b16 %v595, %v592
      %v620 = vpack.c.b16 %v596, %v593
      %645 = vmatpush.bf16.msra.mxu0 %v618
      %646 = vmatpush.bf16.msra.mxu0 %v615
      %647 = vmatpush.bf16.msra.mxu0 %v612
      %648 = vmatpush.bf16.msra.mxu0 %v609
      %649 = vmatpush.bf16.msra.mxu0 %v606
      %650 = vmatpush.bf16.msra.mxu0 %v603
      %651 = vmatpush.bf16.msra.mxu0 %v600
      %652 = vmatpush.bf16.msra.mxu0 %v597
      %653 = vmatmul.bf16.gmra.mxu0 %v476
      %v654 = vpop.f32.mrf.mxu0
      %v655 = vadd.f32 %v511, %v654
      %v656 = vpop.f32.mrf.mxu0
      %657 = vdwg.mxu0
      %658 = vmatpush.bf16.msra.mxu0 %v619
      %659 = vmatpush.bf16.msra.mxu0 %v616
      %660 = vmatpush.bf16.msra.mxu0 %v613
      %661 = vmatpush.bf16.msra.mxu0 %v610
      %662 = vmatpush.bf16.msra.mxu0 %v607
      %663 = vmatpush.bf16.msra.mxu0 %v604
      %664 = vmatpush.bf16.msra.mxu0 %v601
      %665 = vmatpush.bf16.msra.mxu0 %v598
      %666 = vmatmul.bf16.gmra.mxu0 %v476
      %v667 = vpop.f32.mrf.mxu0
      %v668 = vadd.f32 %v512, %v667
      %v669 = vpop.f32.mrf.mxu0
      %670 = vdwg.mxu0
      %671 = vmatpush.bf16.msra.mxu0 %v620
      %672 = vmatpush.bf16.msra.mxu0 %v617
      %673 = vmatpush.bf16.msra.mxu0 %v614
      %674 = vmatpush.bf16.msra.mxu0 %v611
      %675 = vmatpush.bf16.msra.mxu0 %v608
      %676 = vmatpush.bf16.msra.mxu0 %v605
      %677 = vmatpush.bf16.msra.mxu0 %v602
      %678 = vmatpush.bf16.msra.mxu0 %v599
      %679 = vmatmul.bf16.gmra.mxu0 %v476
      %v680 = vpop.f32.mrf.mxu0
      %v681 = vadd.f32 %v513, %v680
      %v682 = vpop.f32.mrf.mxu0
      %683 = vdwg.mxu0
      %v684 = vld [vmem:[%s5] sm:$0xf]
      %v685 = vld [vmem:[%s5 + $0x4] sm:$0xf]
      %v686 = vld [vmem:[%s5 + $0x8] sm:$0xf]
      %v687 = vld [vmem:[%s5 + $0xc] sm:$0xf]
      %v688 = vld [vmem:[%s5 + $0x10] sm:$0xf]
      %v689 = vld [vmem:[%s5 + $0x14] sm:$0xf]
      %v690 = vld [vmem:[%s5 + $0x18] sm:$0xf]
      %v691 = vld [vmem:[%s5 + $0x1c] sm:$0xf]
      %v692 = vld [vmem:[%s5 + $0x20] sm:$0xf]
      %v693 = vld [vmem:[%s5 + $0x24] sm:$0xf]
      %v694 = vld [vmem:[%s5 + $0x28] sm:$0xf]
      %v695 = vld [vmem:[%s5 + $0x2c] sm:$0xf]
      %v696 = vld [vmem:[%s5 + $0x30] sm:$0xf]
      %v697 = vld [vmem:[%s5 + $0x34] sm:$0xf]
      %v698 = vld [vmem:[%s5 + $0x38] sm:$0xf]
      %v699 = vld [vmem:[%s5 + $0x3c] sm:$0xf]
      %v700 = vld [vmem:[%s6] sm:$0x1]
      %v702 = vperm.slane %v700, 0
      %v704 = vadd.f32 %v438, %v702
      %v705 = vmul.f32 %v655, 0.125
      %vm706 = vcmask 523264
      %v708 = vsel %vm706, %v705, 0
      %v711 = vsel %vm706, %v668, 0
      %713 = vmatpush.xpose.msra.mxu0 0.0
      %714 = vmatpush.xpose.msra.mxu0 0.0
      %715 = vmatpush.xpose.msra.mxu0 0.0
      %716 = vmatpush.xpose.msra.mxu0 0.0
      %717 = vmatpush.xpose.msra.mxu0 0.0
      %718 = vmatpush.xpose.msra.mxu0 0.0
      %719 = vmatpush.xpose.msra.mxu0 0.0
      %720 = vmatpush.xpose.msra.mxu0 0.0
      %721 = vmatpush.xpose.msra.mxu0 0.0
      %722 = vmatpush.xpose.msra.mxu0 0.0
      %723 = vmatpush.xpose.msra.mxu0 0.0
      %724 = vmatpush.xpose.msra.mxu0 0.0
      %725 = vmatpush.xpose.msra.mxu0 0.0
      %726 = vmatpush.xpose.msra.mxu0 0.0
      %727 = vmatpush.xpose.msra.mxu0 0.0
      %728 = vmatpush.xpose.msra.mxu0 %v711
      %729 = vmatmul.f32.gmra.mxu0 %v708
      %v730 = vpop.f32.mrf.mxu0
      %v731 = vadd.f32 0.0, %v730
      %732 = vdwg.mxu0
      %vm733 = vcmask 64512
      %v734 = vsel %vm733, %v731, -inf
      %735 = vmax.xlane.f32.xlu0 %v734
      %v736 = vpop.xlane.xlu0 %735
      %v737 = vsub.f32 %v731, %v736
      %v738 = vmul.f32 %v737, 1.442695
      %v739 = vpow.pop %v738
      %v740 = vsel %vm733, %v739, 0.0
      %741 = vadd.xlane.f32.xlu0 %v740
      %v742 = vpop.xlane.xlu0 %741
      %v743 = vrcp.pop %v742
      %v744 = vmul.f32 %v739, %v743
      %v746 = vsel %vm733, %v744, 0
      %748 = vmatpush.msra.mxu0 0.0
      %749 = vmatpush.msra.mxu0 0.0
      %750 = vmatpush.msra.mxu0 0.0
      %751 = vmatpush.msra.mxu0 0.0
      %752 = vmatpush.msra.mxu0 0.0
      %753 = vmatpush.msra.mxu0 0.0
      %754 = vmatpush.msra.mxu0 0.0
      %755 = vmatpush.msra.mxu0 0.0
      %756 = vmatpush.msra.mxu0 0.0
      %757 = vmatpush.msra.mxu0 0.0
      %758 = vmatpush.msra.mxu0 0.0
      %759 = vmatpush.msra.mxu0 0.0
      %760 = vmatpush.msra.mxu0 0.0
      %761 = vmatpush.msra.mxu0 0.0
      %762 = vmatpush.msra.mxu0 0.0
      %763 = vmatpush.msra.mxu0 %v681
      %764 = vmatmul.f32.gmra.mxu0 %v746
      %v765 = vpop.f32.mrf.mxu0
      %v766 = vadd.f32 0.0, %v765
      %767 = vdwg.mxu0
      %v768 = vpack.c.bf16 %v766, %v766
      %v777 = vunpack.c.l.b16 %v684
      %v778 = vunpack.c.l.b16 %v685
      %v779 = vunpack.c.l.b16 %v686
      %v780 = vunpack.c.l.b16 %v687
      %v781 = vunpack.c.l.b16 %v688
      %v782 = vunpack.c.l.b16 %v689
      %v783 = vunpack.c.l.b16 %v690
      %v784 = vunpack.c.l.b16 %v691
      %v785 = vpack.c.b16 %v778, %v777
      %v786 = vpack.c.b16 %v780, %v779
      %v787 = vpack.c.b16 %v782, %v781
      %v788 = vpack.c.b16 %v784, %v783
      %v794 = vsel %vm706, %v768, 0
      %796 = vmatpush.bf16.msra.mxu0 0
      %797 = vmatpush.bf16.msra.mxu0 0
      %798 = vmatpush.bf16.msra.mxu0 0
      %799 = vmatpush.bf16.msra.mxu0 0
      %800 = vmatpush.bf16.msra.mxu0 %v788
      %801 = vmatpush.bf16.msra.mxu0 %v787
      %802 = vmatpush.bf16.msra.mxu0 %v786
      %803 = vmatpush.bf16.msra.mxu0 %v785
      %804 = vmatmul.bf16.gmra.mxu0 %v794
      %v805 = vpop.f32.mrf.mxu0
      %v806 = vadd.f32 0.0, %v805
      %v807 = vpop.f32.mrf.mxu0
      %808 = vdwg.mxu0
      %v809 = vadd.f32 %v704, %v806
      %810 = vrot.lane.b32.xlu0 %v705, 64
      %v811 = vpop.permute.xlu0 %810
      %812 = vrot.lane.b32.xlu0 %v668, 64
      %v813 = vpop.permute.xlu0 %812
      %v814 = vsel %vm706, %v811, 0
      %v816 = vsel %vm706, %v813, 0
      %818 = vmatpush.xpose.msra.mxu0 0.0
      %819 = vmatpush.xpose.msra.mxu0 0.0
      %820 = vmatpush.xpose.msra.mxu0 0.0
      %821 = vmatpush.xpose.msra.mxu0 0.0
      %822 = vmatpush.xpose.msra.mxu0 0.0
      %823 = vmatpush.xpose.msra.mxu0 0.0
      %824 = vmatpush.xpose.msra.mxu0 0.0
      %825 = vmatpush.xpose.msra.mxu0 0.0
      %826 = vmatpush.xpose.msra.mxu0 0.0
      %827 = vmatpush.xpose.msra.mxu0 0.0
      %828 = vmatpush.xpose.msra.mxu0 0.0
      %829 = vmatpush.xpose.msra.mxu0 0.0
      %830 = vmatpush.xpose.msra.mxu0 0.0
      %831 = vmatpush.xpose.msra.mxu0 0.0
      %832 = vmatpush.xpose.msra.mxu0 0.0
      %833 = vmatpush.xpose.msra.mxu0 %v816
      %834 = vmatmul.f32.gmra.mxu0 %v814
      %v835 = vpop.f32.mrf.mxu0
      %v836 = vadd.f32 0.0, %v835
      %837 = vdwg.mxu0
      %v838 = vsel %vm733, %v836, -inf
      %839 = vmax.xlane.f32.xlu0 %v838
      %v840 = vpop.xlane.xlu0 %839
      %v841 = vsub.f32 %v836, %v840
      %v842 = vmul.f32 %v841, 1.442695
      %v843 = vpow.pop %v842
      %v844 = vsel %vm733, %v843, 0.0
      %845 = vadd.xlane.f32.xlu0 %v844
      %v846 = vpop.xlane.xlu0 %845
      %v847 = vrcp.pop %v846
      %v848 = vmul.f32 %v843, %v847
      %850 = vrot.lane.b32.xlu0 %v681, 64
      %v851 = vpop.permute.xlu0 %850
      %v854 = vsel %vm733, %v848, 0
      %856 = vmatpush.msra.mxu0 0.0
      %857 = vmatpush.msra.mxu0 0.0
      %858 = vmatpush.msra.mxu0 0.0
      %859 = vmatpush.msra.mxu0 0.0
      %860 = vmatpush.msra.mxu0 0.0
      %861 = vmatpush.msra.mxu0 0.0
      %862 = vmatpush.msra.mxu0 0.0
      %863 = vmatpush.msra.mxu0 0.0
      %864 = vmatpush.msra.mxu0 0.0
      %865 = vmatpush.msra.mxu0 0.0
      %866 = vmatpush.msra.mxu0 0.0
      %867 = vmatpush.msra.mxu0 0.0
      %868 = vmatpush.msra.mxu0 0.0
      %869 = vmatpush.msra.mxu0 0.0
      %870 = vmatpush.msra.mxu0 0.0
      %871 = vmatpush.msra.mxu0 %v851
      %872 = vmatmul.f32.gmra.mxu0 %v854
      %v873 = vpop.f32.mrf.mxu0
      %v874 = vadd.f32 0.0, %v873
      %875 = vdwg.mxu0
      %v876 = vpack.c.bf16 %v874, %v874
      %v885 = vunpack.c.l.b16 %v692
      %v886 = vunpack.c.l.b16 %v693
      %v887 = vunpack.c.l.b16 %v694
      %v888 = vunpack.c.l.b16 %v695
      %v889 = vunpack.c.l.b16 %v696
      %v890 = vunpack.c.l.b16 %v697
      %v891 = vunpack.c.l.b16 %v698
      %v892 = vunpack.c.l.b16 %v699
      %v893 = vpack.c.b16 %v886, %v885
      %v894 = vpack.c.b16 %v888, %v887
      %v895 = vpack.c.b16 %v890, %v889
      %v896 = vpack.c.b16 %v892, %v891
      %v902 = vsel %vm706, %v876, 0
      %904 = vmatpush.bf16.msra.mxu0 0
      %905 = vmatpush.bf16.msra.mxu0 0
      %906 = vmatpush.bf16.msra.mxu0 0
      %907 = vmatpush.bf16.msra.mxu0 0
      %908 = vmatpush.bf16.msra.mxu0 %v896
      %909 = vmatpush.bf16.msra.mxu0 %v895
      %910 = vmatpush.bf16.msra.mxu0 %v894
      %911 = vmatpush.bf16.msra.mxu0 %v893
      %912 = vmatmul.bf16.gmra.mxu0 %v902
      %v913 = vpop.f32.mrf.mxu0
      %v914 = vadd.f32 0.0, %v913
      %v915 = vpop.f32.mrf.mxu0
      %916 = vdwg.mxu0
      %v917 = vadd.f32 %v809, %v914
      %v918 = vld [vmem:[%s7] sm:$0x1]
      %v919 = vld [vmem:[%s8] sm:$0x1]
      %920 = vadd.xlane.f32.xlu0 %v917
      %v921 = vpop.xlane.xlu0 %920
      %v922 = vmul.f32 %v921, %v449
      %v923 = vsub.f32 %v917, %v922
      %v924 = vmul.f32 %v923, %v923
      %925 = vadd.xlane.f32.xlu0 %v924
      %v926 = vpop.xlane.xlu0 %925
      %v927 = vmul.f32 %v926, %v449
      %v928 = vadd.f32 %v927, 1e-05
      %v929 = vrsqrt.pop %v928
      %v930 = vmul.f32 %v929, %v928
      %v931 = vmul.f32 %v930, %v929
      %v932 = vmul.f32 0.5, %v931
      %v933 = vsub.f32 1.5, %v932
      %v934 = vmul.f32 %v929, %v933
      %vm935 = vweird.f32 %v928
      %vm936 = vweird.f32 %v929
      %vm937 = vmor %vm935, %vm936
      %v938 = vsel %vm937, %v929, %v934
      %v939 = vmul.f32 %v923, %v938
      %v941 = vperm.slane %v918, 0
      %v943 = vmul.f32 %v939, %v941
      %v945 = vperm.slane %v919, 0
      %v947 = vadd.f32 %v943, %v945
      %v948 = vpack.c.bf16 %v947, %v947
      %v949 = vld [vmem:[%s9] sm:$0xff]
      %v950 = vld [vmem:[%s9 + $0x8] sm:$0xff]
      %v951 = vld [vmem:[%s9 + $0x10] sm:$0xff]
      %v952 = vld [vmem:[%s9 + $0x18] sm:$0xff]
      %v953 = vld [vmem:[%s9 + $0x20] sm:$0xff]
      %v954 = vld [vmem:[%s9 + $0x28] sm:$0xff]
      %v955 = vld [vmem:[%s9 + $0x30] sm:$0xff]
      %v956 = vld [vmem:[%s9 + $0x38] sm:$0xff]
      %v957 = vld [vmem:[%s9 + $0x40] sm:$0xff]
      %v958 = vld [vmem:[%s9 + $0x48] sm:$0xff]
      %v959 = vld [vmem:[%s9 + $0x50] sm:$0xff]
      %v960 = vld [vmem:[%s9 + $0x58] sm:$0xff]
      %v961 = vld [vmem:[%s9 + $0x60] sm:$0xff]
      %v962 = vld [vmem:[%s9 + $0x68] sm:$0xff]
      %v963 = vld [vmem:[%s9 + $0x70] sm:$0xff]
      %v964 = vld [vmem:[%s9 + $0x78] sm:$0xff]
      %v965 = vld [vmem:[%s9 + $0x80] sm:$0xff]
      %v966 = vld [vmem:[%s9 + $0x88] sm:$0xff]
      %v967 = vld [vmem:[%s9 + $0x90] sm:$0xff]
      %v968 = vld [vmem:[%s9 + $0x98] sm:$0xff]
      %v969 = vld [vmem:[%s9 + $0xa0] sm:$0xff]
      %v970 = vld [vmem:[%s9 + $0xa8] sm:$0xff]
      %v971 = vld [vmem:[%s9 + $0xb0] sm:$0xff]
      %v972 = vld [vmem:[%s9 + $0xb8] sm:$0xff]
      %v973 = vld [vmem:[%s9 + $0xc0] sm:$0xff]
      %v974 = vld [vmem:[%s9 + $0xc8] sm:$0xff]
      %v975 = vld [vmem:[%s9 + $0xd0] sm:$0xff]
      %v976 = vld [vmem:[%s9 + $0xd8] sm:$0xff]
      %v977 = vld [vmem:[%s9 + $0xe0] sm:$0xff]
      %v978 = vld [vmem:[%s9 + $0xe8] sm:$0xff]
      %v979 = vld [vmem:[%s9 + $0xf0] sm:$0xff]
      %v980 = vld [vmem:[%s9 + $0xf8] sm:$0xff]
      %v981 = vld [vmem:[%s10] sm:$0xf]
      %v983 = vperm.slane %v981, 0
      %v984 = vperm.slane %v981, 1
      %v985 = vperm.slane %v981, 2
      %v986 = vperm.slane %v981, 3
      %v1023 = vunpack.c.l.b16 %v949
      %v1024 = vunpack.c.h.b16 %v949
      %v1025 = vunpack.c.l.b16 %v950
      %v1026 = vunpack.c.h.b16 %v950
      %v1027 = vunpack.c.l.b16 %v951
      %v1028 = vunpack.c.h.b16 %v951
      %v1029 = vunpack.c.l.b16 %v952
      %v1030 = vunpack.c.h.b16 %v952
      %v1031 = vunpack.c.l.b16 %v953
      %v1032 = vunpack.c.h.b16 %v953
      %v1033 = vunpack.c.l.b16 %v954
      %v1034 = vunpack.c.h.b16 %v954
      %v1035 = vunpack.c.l.b16 %v955
      %v1036 = vunpack.c.h.b16 %v955
      %v1037 = vunpack.c.l.b16 %v956
      %v1038 = vunpack.c.h.b16 %v956
      %v1039 = vunpack.c.l.b16 %v957
      %v1040 = vunpack.c.h.b16 %v957
      %v1041 = vunpack.c.l.b16 %v958
      %v1042 = vunpack.c.h.b16 %v958
      %v1043 = vunpack.c.l.b16 %v959
      %v1044 = vunpack.c.h.b16 %v959
      %v1045 = vunpack.c.l.b16 %v960
      %v1046 = vunpack.c.h.b16 %v960
      %v1047 = vunpack.c.l.b16 %v961
      %v1048 = vunpack.c.h.b16 %v961
      %v1049 = vunpack.c.l.b16 %v962
      %v1050 = vunpack.c.h.b16 %v962
      %v1051 = vunpack.c.l.b16 %v963
      %v1052 = vunpack.c.h.b16 %v963
      %v1053 = vunpack.c.l.b16 %v964
      %v1054 = vunpack.c.h.b16 %v964
      %v1055 = vunpack.c.l.b16 %v965
      %v1056 = vunpack.c.h.b16 %v965
      %v1057 = vunpack.c.l.b16 %v966
      %v1058 = vunpack.c.h.b16 %v966
      %v1059 = vunpack.c.l.b16 %v967
      %v1060 = vunpack.c.h.b16 %v967
      %v1061 = vunpack.c.l.b16 %v968
      %v1062 = vunpack.c.h.b16 %v968
      %v1063 = vunpack.c.l.b16 %v969
      %v1064 = vunpack.c.h.b16 %v969
      %v1065 = vunpack.c.l.b16 %v970
      %v1066 = vunpack.c.h.b16 %v970
      %v1067 = vunpack.c.l.b16 %v971
      %v1068 = vunpack.c.h.b16 %v971
      %v1069 = vunpack.c.l.b16 %v972
      %v1070 = vunpack.c.h.b16 %v972
      %v1071 = vunpack.c.l.b16 %v973
      %v1072 = vunpack.c.h.b16 %v973
      %v1073 = vunpack.c.l.b16 %v974
      %v1074 = vunpack.c.h.b16 %v974
      %v1075 = vunpack.c.l.b16 %v975
      %v1076 = vunpack.c.h.b16 %v975
      %v1077 = vunpack.c.l.b16 %v976
      %v1078 = vunpack.c.h.b16 %v976
      %v1079 = vunpack.c.l.b16 %v977
      %v1080 = vunpack.c.h.b16 %v977
      %v1081 = vunpack.c.l.b16 %v978
      %v1082 = vunpack.c.h.b16 %v978
      %v1083 = vunpack.c.l.b16 %v979
      %v1084 = vunpack.c.h.b16 %v979
      %v1085 = vunpack.c.l.b16 %v980
      %v1086 = vunpack.c.h.b16 %v980
      %v1087 = vpack.c.b16 %v1027, %v1023
      %v1088 = vpack.c.b16 %v1028, %v1024
      %v1089 = vpack.c.b16 %v1029, %v1025
      %v1090 = vpack.c.b16 %v1030, %v1026
      %v1091 = vpack.c.b16 %v1035, %v1031
      %v1092 = vpack.c.b16 %v1036, %v1032
      %v1093 = vpack.c.b16 %v1037, %v1033
      %v1094 = vpack.c.b16 %v1038, %v1034
      %v1095 = vpack.c.b16 %v1043, %v1039
      %v1096 = vpack.c.b16 %v1044, %v1040
      %v1097 = vpack.c.b16 %v1045, %v1041
      %v1098 = vpack.c.b16 %v1046, %v1042
      %v1099 = vpack.c.b16 %v1051, %v1047
      %v1100 = vpack.c.b16 %v1052, %v1048
      %v1101 = vpack.c.b16 %v1053, %v1049
      %v1102 = vpack.c.b16 %v1054, %v1050
      %v1103 = vpack.c.b16 %v1059, %v1055
      %v1104 = vpack.c.b16 %v1060, %v1056
      %v1105 = vpack.c.b16 %v1061, %v1057
      %v1106 = vpack.c.b16 %v1062, %v1058
      %v1107 = vpack.c.b16 %v1067, %v1063
      %v1108 = vpack.c.b16 %v1068, %v1064
      %v1109 = vpack.c.b16 %v1069, %v1065
      %v1110 = vpack.c.b16 %v1070, %v1066
      %v1111 = vpack.c.b16 %v1075, %v1071
      %v1112 = vpack.c.b16 %v1076, %v1072
      %v1113 = vpack.c.b16 %v1077, %v1073
      %v1114 = vpack.c.b16 %v1078, %v1074
      %v1115 = vpack.c.b16 %v1083, %v1079
      %v1116 = vpack.c.b16 %v1084, %v1080
      %v1117 = vpack.c.b16 %v1085, %v1081
      %v1118 = vpack.c.b16 %v1086, %v1082
      %1151 = vmatpush.bf16.msra.mxu0 %v1115
      %1152 = vmatpush.bf16.msra.mxu0 %v1111
      %1153 = vmatpush.bf16.msra.mxu0 %v1107
      %1154 = vmatpush.bf16.msra.mxu0 %v1103
      %1155 = vmatpush.bf16.msra.mxu0 %v1099
      %1156 = vmatpush.bf16.msra.mxu0 %v1095
      %1157 = vmatpush.bf16.msra.mxu0 %v1091
      %1158 = vmatpush.bf16.msra.mxu0 %v1087
      %1159 = vmatmul.bf16.gmra.mxu0 %v948
      %v1160 = vpop.f32.mrf.mxu0
      %v1161 = vadd.f32 %v983, %v1160
      %v1162 = vpop.f32.mrf.mxu0
      %1163 = vdwg.mxu0
      %1164 = vmatpush.bf16.msra.mxu0 %v1116
      %1165 = vmatpush.bf16.msra.mxu0 %v1112
      %1166 = vmatpush.bf16.msra.mxu0 %v1108
      %1167 = vmatpush.bf16.msra.mxu0 %v1104
      %1168 = vmatpush.bf16.msra.mxu0 %v1100
      %1169 = vmatpush.bf16.msra.mxu0 %v1096
      %1170 = vmatpush.bf16.msra.mxu0 %v1092
      %1171 = vmatpush.bf16.msra.mxu0 %v1088
      %1172 = vmatmul.bf16.gmra.mxu0 %v948
      %v1173 = vpop.f32.mrf.mxu0
      %v1174 = vadd.f32 %v984, %v1173
      %v1175 = vpop.f32.mrf.mxu0
      %1176 = vdwg.mxu0
      %1177 = vmatpush.bf16.msra.mxu0 %v1117
      %1178 = vmatpush.bf16.msra.mxu0 %v1113
      %1179 = vmatpush.bf16.msra.mxu0 %v1109
      %1180 = vmatpush.bf16.msra.mxu0 %v1105
      %1181 = vmatpush.bf16.msra.mxu0 %v1101
      %1182 = vmatpush.bf16.msra.mxu0 %v1097
      %1183 = vmatpush.bf16.msra.mxu0 %v1093
      %1184 = vmatpush.bf16.msra.mxu0 %v1089
      %1185 = vmatmul.bf16.gmra.mxu0 %v948
      %v1186 = vpop.f32.mrf.mxu0
      %v1187 = vadd.f32 %v985, %v1186
      %v1188 = vpop.f32.mrf.mxu0
      %1189 = vdwg.mxu0
      %1190 = vmatpush.bf16.msra.mxu0 %v1118
      %1191 = vmatpush.bf16.msra.mxu0 %v1114
      %1192 = vmatpush.bf16.msra.mxu0 %v1110
      %1193 = vmatpush.bf16.msra.mxu0 %v1106
      %1194 = vmatpush.bf16.msra.mxu0 %v1102
      %1195 = vmatpush.bf16.msra.mxu0 %v1098
      %1196 = vmatpush.bf16.msra.mxu0 %v1094
      %1197 = vmatpush.bf16.msra.mxu0 %v1090
      %1198 = vmatmul.bf16.gmra.mxu0 %v948
      %v1199 = vpop.f32.mrf.mxu0
      %v1200 = vadd.f32 %v986, %v1199
      %v1201 = vpop.f32.mrf.mxu0
      %1202 = vdwg.mxu0
      %v1203 = vmul.f32 %v1161, %v1161
      %v1204 = vmul.f32 %v1174, %v1174
      %v1205 = vmul.f32 %v1187, %v1187
      %v1206 = vmul.f32 %v1200, %v1200
      %v1207 = vmul.f32 %v1161, %v1203
      %v1208 = vmul.f32 %v1174, %v1204
      %v1209 = vmul.f32 %v1187, %v1205
      %v1210 = vmul.f32 %v1200, %v1206
      %v1211 = vmul.f32 %v1207, 0.044715
      %v1212 = vmul.f32 %v1208, 0.044715
      %v1213 = vmul.f32 %v1209, 0.044715
      %v1214 = vmul.f32 %v1210, 0.044715
      %v1215 = vadd.f32 %v1161, %v1211
      %v1216 = vadd.f32 %v1174, %v1212
      %v1217 = vadd.f32 %v1187, %v1213
      %v1218 = vadd.f32 %v1200, %v1214
      %v1219 = vmul.f32 %v1215, 0.7978846
      %v1220 = vmul.f32 %v1216, 0.7978846
      %v1221 = vmul.f32 %v1217, 0.7978846
      %v1222 = vmul.f32 %v1218, 0.7978846
      %v1223 = vtanh.pop %v1219
      %v1224 = vtanh.pop %v1220
      %v1225 = vtanh.pop %v1221
      %v1226 = vtanh.pop %v1222
      %v1227 = vadd.f32 %v1223, 1.0
      %v1228 = vadd.f32 %v1224, 1.0
      %v1229 = vadd.f32 %v1225, 1.0
      %v1230 = vadd.f32 %v1226, 1.0
      %v1231 = vmul.f32 %v1227, 0.5
      %v1232 = vmul.f32 %v1228, 0.5
      %v1233 = vmul.f32 %v1229, 0.5
      %v1234 = vmul.f32 %v1230, 0.5
      %v1235 = vmul.f32 %v1161, %v1231
      %v1236 = vmul.f32 %v1174, %v1232
      %v1237 = vmul.f32 %v1187, %v1233
      %v1238 = vmul.f32 %v1200, %v1234
      %v1239 = vpack.c.bf16 %v1235, %v1235
      %v1240 = vpack.c.bf16 %v1236, %v1236
      %v1241 = vpack.c.bf16 %v1237, %v1237
      %v1242 = vpack.c.bf16 %v1238, %v1238
      %v1243 = vld [vmem:[%s11] sm:$0xf]
      %v1244 = vld [vmem:[%s11 + $0x4] sm:$0xf]
      %v1245 = vld [vmem:[%s11 + $0x8] sm:$0xf]
      %v1246 = vld [vmem:[%s11 + $0xc] sm:$0xf]
      %v1247 = vld [vmem:[%s11 + $0x10] sm:$0xf]
      %v1248 = vld [vmem:[%s11 + $0x14] sm:$0xf]
      %v1249 = vld [vmem:[%s11 + $0x18] sm:$0xf]
      %v1250 = vld [vmem:[%s11 + $0x1c] sm:$0xf]
      %v1251 = vld [vmem:[%s11 + $0x20] sm:$0xf]
      %v1252 = vld [vmem:[%s11 + $0x24] sm:$0xf]
      %v1253 = vld [vmem:[%s11 + $0x28] sm:$0xf]
      %v1254 = vld [vmem:[%s11 + $0x2c] sm:$0xf]
      %v1255 = vld [vmem:[%s11 + $0x30] sm:$0xf]
      %v1256 = vld [vmem:[%s11 + $0x34] sm:$0xf]
      %v1257 = vld [vmem:[%s11 + $0x38] sm:$0xf]
      %v1258 = vld [vmem:[%s11 + $0x3c] sm:$0xf]
      %v1259 = vld [vmem:[%s11 + $0x40] sm:$0xf]
      %v1260 = vld [vmem:[%s11 + $0x44] sm:$0xf]
      %v1261 = vld [vmem:[%s11 + $0x48] sm:$0xf]
      %v1262 = vld [vmem:[%s11 + $0x4c] sm:$0xf]
      %v1263 = vld [vmem:[%s11 + $0x50] sm:$0xf]
      %v1264 = vld [vmem:[%s11 + $0x54] sm:$0xf]
      %v1265 = vld [vmem:[%s11 + $0x58] sm:$0xf]
      %v1266 = vld [vmem:[%s11 + $0x5c] sm:$0xf]
      %v1267 = vld [vmem:[%s11 + $0x60] sm:$0xf]
      %v1268 = vld [vmem:[%s11 + $0x64] sm:$0xf]
      %v1269 = vld [vmem:[%s11 + $0x68] sm:$0xf]
      %v1270 = vld [vmem:[%s11 + $0x6c] sm:$0xf]
      %v1271 = vld [vmem:[%s11 + $0x70] sm:$0xf]
      %v1272 = vld [vmem:[%s11 + $0x74] sm:$0xf]
      %v1273 = vld [vmem:[%s11 + $0x78] sm:$0xf]
      %v1274 = vld [vmem:[%s11 + $0x7c] sm:$0xf]
      %v1275 = vld [vmem:[%s11 + $0x80] sm:$0xf]
      %v1276 = vld [vmem:[%s11 + $0x84] sm:$0xf]
      %v1277 = vld [vmem:[%s11 + $0x88] sm:$0xf]
      %v1278 = vld [vmem:[%s11 + $0x8c] sm:$0xf]
      %v1279 = vld [vmem:[%s11 + $0x90] sm:$0xf]
      %v1280 = vld [vmem:[%s11 + $0x94] sm:$0xf]
      %v1281 = vld [vmem:[%s11 + $0x98] sm:$0xf]
      %v1282 = vld [vmem:[%s11 + $0x9c] sm:$0xf]
      %v1283 = vld [vmem:[%s11 + $0xa0] sm:$0xf]
      %v1284 = vld [vmem:[%s11 + $0xa4] sm:$0xf]
      %v1285 = vld [vmem:[%s11 + $0xa8] sm:$0xf]
      %v1286 = vld [vmem:[%s11 + $0xac] sm:$0xf]
      %v1287 = vld [vmem:[%s11 + $0xb0] sm:$0xf]
      %v1288 = vld [vmem:[%s11 + $0xb4] sm:$0xf]
      %v1289 = vld [vmem:[%s11 + $0xb8] sm:$0xf]
      %v1290 = vld [vmem:[%s11 + $0xbc] sm:$0xf]
      %v1291 = vld [vmem:[%s11 + $0xc0] sm:$0xf]
      %v1292 = vld [vmem:[%s11 + $0xc4] sm:$0xf]
      %v1293 = vld [vmem:[%s11 + $0xc8] sm:$0xf]
      %v1294 = vld [vmem:[%s11 + $0xcc] sm:$0xf]
      %v1295 = vld [vmem:[%s11 + $0xd0] sm:$0xf]
      %v1296 = vld [vmem:[%s11 + $0xd4] sm:$0xf]
      %v1297 = vld [vmem:[%s11 + $0xd8] sm:$0xf]
      %v1298 = vld [vmem:[%s11 + $0xdc] sm:$0xf]
      %v1299 = vld [vmem:[%s11 + $0xe0] sm:$0xf]
      %v1300 = vld [vmem:[%s11 + $0xe4] sm:$0xf]
      %v1301 = vld [vmem:[%s11 + $0xe8] sm:$0xf]
      %v1302 = vld [vmem:[%s11 + $0xec] sm:$0xf]
      %v1303 = vld [vmem:[%s11 + $0xf0] sm:$0xf]
      %v1304 = vld [vmem:[%s11 + $0xf4] sm:$0xf]
      %v1305 = vld [vmem:[%s11 + $0xf8] sm:$0xf]
      %v1306 = vld [vmem:[%s11 + $0xfc] sm:$0xf]
      %v1307 = vld [vmem:[%s12] sm:$0x1]
      %v1309 = vperm.slane %v1307, 0
      %v1375 = vunpack.c.l.b16 %v1243
      %v1376 = vunpack.c.l.b16 %v1244
      %v1377 = vunpack.c.l.b16 %v1245
      %v1378 = vunpack.c.l.b16 %v1246
      %v1379 = vunpack.c.l.b16 %v1247
      %v1380 = vunpack.c.l.b16 %v1248
      %v1381 = vunpack.c.l.b16 %v1249
      %v1382 = vunpack.c.l.b16 %v1250
      %v1383 = vunpack.c.l.b16 %v1251
      %v1384 = vunpack.c.l.b16 %v1252
      %v1385 = vunpack.c.l.b16 %v1253
      %v1386 = vunpack.c.l.b16 %v1254
      %v1387 = vunpack.c.l.b16 %v1255
      %v1388 = vunpack.c.l.b16 %v1256
      %v1389 = vunpack.c.l.b16 %v1257
      %v1390 = vunpack.c.l.b16 %v1258
      %v1391 = vunpack.c.l.b16 %v1259
      %v1392 = vunpack.c.l.b16 %v1260
      %v1393 = vunpack.c.l.b16 %v1261
      %v1394 = vunpack.c.l.b16 %v1262
      %v1395 = vunpack.c.l.b16 %v1263
      %v1396 = vunpack.c.l.b16 %v1264
      %v1397 = vunpack.c.l.b16 %v1265
      %v1398 = vunpack.c.l.b16 %v1266
      %v1399 = vunpack.c.l.b16 %v1267
      %v1400 = vunpack.c.l.b16 %v1268
      %v1401 = vunpack.c.l.b16 %v1269
      %v1402 = vunpack.c.l.b16 %v1270
      %v1403 = vunpack.c.l.b16 %v1271
      %v1404 = vunpack.c.l.b16 %v1272
      %v1405 = vunpack.c.l.b16 %v1273
      %v1406 = vunpack.c.l.b16 %v1274
      %v1407 = vunpack.c.l.b16 %v1275
      %v1408 = vunpack.c.l.b16 %v1276
      %v1409 = vunpack.c.l.b16 %v1277
      %v1410 = vunpack.c.l.b16 %v1278
      %v1411 = vunpack.c.l.b16 %v1279
      %v1412 = vunpack.c.l.b16 %v1280
      %v1413 = vunpack.c.l.b16 %v1281
      %v1414 = vunpack.c.l.b16 %v1282
      %v1415 = vunpack.c.l.b16 %v1283
      %v1416 = vunpack.c.l.b16 %v1284
      %v1417 = vunpack.c.l.b16 %v1285
      %v1418 = vunpack.c.l.b16 %v1286
      %v1419 = vunpack.c.l.b16 %v1287
      %v1420 = vunpack.c.l.b16 %v1288
      %v1421 = vunpack.c.l.b16 %v1289
      %v1422 = vunpack.c.l.b16 %v1290
      %v1423 = vunpack.c.l.b16 %v1291
      %v1424 = vunpack.c.l.b16 %v1292
      %v1425 = vunpack.c.l.b16 %v1293
      %v1426 = vunpack.c.l.b16 %v1294
      %v1427 = vunpack.c.l.b16 %v1295
      %v1428 = vunpack.c.l.b16 %v1296
      %v1429 = vunpack.c.l.b16 %v1297
      %v1430 = vunpack.c.l.b16 %v1298
      %v1431 = vunpack.c.l.b16 %v1299
      %v1432 = vunpack.c.l.b16 %v1300
      %v1433 = vunpack.c.l.b16 %v1301
      %v1434 = vunpack.c.l.b16 %v1302
      %v1435 = vunpack.c.l.b16 %v1303
      %v1436 = vunpack.c.l.b16 %v1304
      %v1437 = vunpack.c.l.b16 %v1305
      %v1438 = vunpack.c.l.b16 %v1306
      %v1439 = vpack.c.b16 %v1376, %v1375
      %v1440 = vpack.c.b16 %v1378, %v1377
      %v1441 = vpack.c.b16 %v1380, %v1379
      %v1442 = vpack.c.b16 %v1382, %v1381
      %v1443 = vpack.c.b16 %v1384, %v1383
      %v1444 = vpack.c.b16 %v1386, %v1385
      %v1445 = vpack.c.b16 %v1388, %v1387
      %v1446 = vpack.c.b16 %v1390, %v1389
      %v1447 = vpack.c.b16 %v1392, %v1391
      %v1448 = vpack.c.b16 %v1394, %v1393
      %v1449 = vpack.c.b16 %v1396, %v1395
      %v1450 = vpack.c.b16 %v1398, %v1397
      %v1451 = vpack.c.b16 %v1400, %v1399
      %v1452 = vpack.c.b16 %v1402, %v1401
      %v1453 = vpack.c.b16 %v1404, %v1403
      %v1454 = vpack.c.b16 %v1406, %v1405
      %v1455 = vpack.c.b16 %v1408, %v1407
      %v1456 = vpack.c.b16 %v1410, %v1409
      %v1457 = vpack.c.b16 %v1412, %v1411
      %v1458 = vpack.c.b16 %v1414, %v1413
      %v1459 = vpack.c.b16 %v1416, %v1415
      %v1460 = vpack.c.b16 %v1418, %v1417
      %v1461 = vpack.c.b16 %v1420, %v1419
      %v1462 = vpack.c.b16 %v1422, %v1421
      %v1463 = vpack.c.b16 %v1424, %v1423
      %v1464 = vpack.c.b16 %v1426, %v1425
      %v1465 = vpack.c.b16 %v1428, %v1427
      %v1466 = vpack.c.b16 %v1430, %v1429
      %v1467 = vpack.c.b16 %v1432, %v1431
      %v1468 = vpack.c.b16 %v1434, %v1433
      %v1469 = vpack.c.b16 %v1436, %v1435
      %v1470 = vpack.c.b16 %v1438, %v1437
      %1503 = vmatpush.bf16.msra.mxu0 %v1446
      %1504 = vmatpush.bf16.msra.mxu0 %v1445
      %1505 = vmatpush.bf16.msra.mxu0 %v1444
      %1506 = vmatpush.bf16.msra.mxu0 %v1443
      %1507 = vmatpush.bf16.msra.mxu0 %v1442
      %1508 = vmatpush.bf16.msra.mxu0 %v1441
      %1509 = vmatpush.bf16.msra.mxu0 %v1440
      %1510 = vmatpush.bf16.msra.mxu0 %v1439
      %1511 = vmatmul.bf16.gmra.mxu0 %v1239
      %v1512 = vpop.f32.mrf.mxu0
      %v1513 = vadd.f32 %v1309, %v1512
      %v1514 = vpop.f32.mrf.mxu0
      %1515 = vdwg.mxu0
      %1516 = vmatpush.bf16.msra.mxu0 %v1454
      %1517 = vmatpush.bf16.msra.mxu0 %v1453
      %1518 = vmatpush.bf16.msra.mxu0 %v1452
      %1519 = vmatpush.bf16.msra.mxu0 %v1451
      %1520 = vmatpush.bf16.msra.mxu0 %v1450
      %1521 = vmatpush.bf16.msra.mxu0 %v1449
      %1522 = vmatpush.bf16.msra.mxu0 %v1448
      %1523 = vmatpush.bf16.msra.mxu0 %v1447
      %1524 = vmatmul.bf16.gmra.mxu0 %v1240
      %v1525 = vpop.f32.mrf.mxu0
      %v1526 = vadd.f32 %v1513, %v1525
      %v1527 = vpop.f32.mrf.mxu0
      %1528 = vdwg.mxu0
      %1529 = vmatpush.bf16.msra.mxu0 %v1462
      %1530 = vmatpush.bf16.msra.mxu0 %v1461
      %1531 = vmatpush.bf16.msra.mxu0 %v1460
      %1532 = vmatpush.bf16.msra.mxu0 %v1459
      %1533 = vmatpush.bf16.msra.mxu0 %v1458
      %1534 = vmatpush.bf16.msra.mxu0 %v1457
      %1535 = vmatpush.bf16.msra.mxu0 %v1456
      %1536 = vmatpush.bf16.msra.mxu0 %v1455
      %1537 = vmatmul.bf16.gmra.mxu0 %v1241
      %v1538 = vpop.f32.mrf.mxu0
      %v1539 = vadd.f32 %v1526, %v1538
      %v1540 = vpop.f32.mrf.mxu0
      %1541 = vdwg.mxu0
      %1542 = vmatpush.bf16.msra.mxu0 %v1470
      %1543 = vmatpush.bf16.msra.mxu0 %v1469
      %1544 = vmatpush.bf16.msra.mxu0 %v1468
      %1545 = vmatpush.bf16.msra.mxu0 %v1467
      %1546 = vmatpush.bf16.msra.mxu0 %v1466
      %1547 = vmatpush.bf16.msra.mxu0 %v1465
      %1548 = vmatpush.bf16.msra.mxu0 %v1464
      %1549 = vmatpush.bf16.msra.mxu0 %v1463
      %1550 = vmatmul.bf16.gmra.mxu0 %v1242
      %v1551 = vpop.f32.mrf.mxu0
      %v1552 = vadd.f32 %v1539, %v1551
      %v1553 = vpop.f32.mrf.mxu0
      %1554 = vdwg.mxu0
      %v1555 = vadd.f32 %v1552, %v917
      %v1556 = vpack.c.bf16 %v1555, %v1555
      %1557 = vst [vmem:[%s435] sm:$0xf] %v1556
      %p1558 = scmp.lt.s32.totalorder %s24, 1
      %s1559 = scalar_select %p1558, %s24, 1
      %s1560 = smul.addr %s1559, 4
      %s1561 = scalar_lea.vmem %s13, %s1560
      // Predicated region
      $region73: #{_lambda_.8} parent=71 // pred_check
        %p1562 = pneg %p320
      $region74: #{_lambda_.8} parent=71 // pred_check_branch
        %1564 = sbr.rel (%p1562) target = $region76
      $region75: #{_lambda_.8} parent=71 // pred_region
        _
      $region76: #{_lambda_.8} parent=71 // pred_fallthru
        _
    $region72: #{_lambda_.8} parent=5 // pred_fallthru
      _
    %p1565 = scmp.le.s32.totalorder 2, %s19
    // Predicated region
    $region77: #{_lambda_.8} parent=5 // pred_check
      %p1566 = pneg %p1565
    $region78: #{_lambda_.8} parent=5 // pred_check_branch
      %1568 = sbr.rel (%p1566) target = $region80
    $region79: #{_lambda_.8} parent=5 // pred_region
      %s1569 = ssub.s32 %s19, 2
      // Predicated region
      $region81: #{_lambda_.8} parent=79 // pred_check
        %p1570 = pneg %p326
      $region82: #{_lambda_.8} parent=79 // pred_check_branch
        %1572 = sbr.rel (%p1570) target = $region84
      $region83: #{_lambda_.8} parent=79 // pred_region
        %p1573 = scmp.lt.s32.totalorder %s25, 1
        %s1574 = scalar_select %p1573, %s25, 1
        %s1575 = smul.addr %s1574, 4
        %s1576 = scalar_lea.vmem %s13, %s1575
      $region84: #{_lambda_.8} parent=79 // pred_fallthru
        _
    $region80: #{_lambda_.8} parent=5 // pred_fallthru
      _
  $region6: #{_lambda_.8} parent=0 // loop_footer
    %s23 = sadd.s32 1, %s19
  $region7: #{_lambda_.8} parent=0 // loop_footer_branch
    %18 = sbr.rel target = $region3
  $region8: #{_lambda_.8} parent=0 // loop_exit
    _

</llo_original>
